<compile_context>
chip_gen: v7x
topology: tpu7x:2x2x1
jax: 0.10.0
libtpu: 0.0.40
codegen_flags: <defaults>
</compile_context>

<pallas_src>
import functools
import math

import jax
import jax.numpy as jnp
import numpy as np
from jax import lax
from jax.experimental import pallas as pl
from jax.experimental.pallas import tpu as pltpu

_OFF = 8  # top/left zero margin; 8-aligned so the interior store is aligned.


# ----------------------------------------------------------------------------
# Fused kernel: conv3x3 -> act -> conv3x3 -> +x, one batch element per program
# ----------------------------------------------------------------------------
def _residual_block_kernel(x_ref, w1_ref, b1_ref, w2_ref, b2_ref, o_ref,
                           pad_ref, *, H, W, C, negative_slope):
    # x_ref: (1, H, W, C) f32      w*_ref: (3, 3, C, C) bf16 (HWIO)
    # b*_ref: (1, C) f32           pad_ref: (_OFF+H+1, _OFF+W+1, C) f32 scratch
    x = x_ref[0].astype(jnp.float32)                      # (H, W, C)

    # Zero the padding scratch once per step; only the interior is overwritten
    # below, so the 1-element zero border around the data is preserved.
    pad_ref[...] = jnp.zeros_like(pad_ref)

    def conv3x3(w_ref, b_ref):
        """3x3 conv over the zero-padded slab in pad_ref -> (H*W, C) f32."""
        w = w_ref[...]                                    # (3, 3, C, C) bf16
        acc = jnp.zeros((H * W, C), jnp.float32)
        for dh in range(3):
            for dw in range(3):
                r0 = _OFF - 1 + dh
                c0 = _OFF - 1 + dw
                patch = pad_ref[r0:r0 + H, c0:c0 + W, :]  # (H, W, C)
                acc = acc + jnp.dot(
                    patch.reshape(H * W, C).astype(jnp.bfloat16),
                    w[dh, dw],
                    preferred_element_type=jnp.float32)
        return acc + b_ref[...]                           # (H*W, C)

    # conv1 + activation
    pad_ref[_OFF:_OFF + H, _OFF:_OFF + W, :] = x
    y = conv3x3(w1_ref, b1_ref)
    if negative_slope == 0.0:
        y = jnp.maximum(y, 0.0)                           # ReLU
    else:
        y = jnp.where(y > 0.0, y, negative_slope * y)     # LeakyReLU

    # conv2 + residual add (borders of pad_ref are still zero)
    pad_ref[_OFF:_OFF + H, _OFF:_OFF + W, :] = y.reshape(H, W, C)
    out = conv3x3(w2_ref, b2_ref).reshape(H, W, C) + x

    o_ref[0] = out.astype(o_ref.dtype)


# ----------------------------------------------------------------------------
# Wrapper (NCHW module boundary, single pallas_call)
# ----------------------------------------------------------------------------
@functools.partial(jax.jit, static_argnames=("act",))
def residual_block_forward(params, x_nchw, *, act="relu"):
    """x_nchw: (N, nf, H, W) -> (N, nf, H, W), matching the PyTorch module."""
    x = jnp.transpose(x_nchw, (0, 2, 3, 1)).astype(jnp.float32)  # NHWC
    N, H, W, C = x.shape

    w1 = params["w1"].astype(jnp.bfloat16)                # (3, 3, C, C) HWIO
    w2 = params["w2"].astype(jnp.bfloat16)
    b1 = params["b1"].reshape(1, C).astype(jnp.float32)
    b2 = params["b2"].reshape(1, C).astype(jnp.float32)

    slope = 0.0 if act == "relu" else 0.1
    kernel = functools.partial(_residual_block_kernel,
                               H=H, W=W, C=C, negative_slope=slope)

    out = pl.pallas_call(
        kernel,
        out_shape=jax.ShapeDtypeStruct((N, H, W, C), jnp.float32),
        grid=(N,),
        in_specs=[
            pl.BlockSpec((1, H, W, C), lambda n: (n, 0, 0, 0)),
            pl.BlockSpec((3, 3, C, C), lambda n: (0, 0, 0, 0)),
            pl.BlockSpec((1, C), lambda n: (0, 0)),
            pl.BlockSpec((3, 3, C, C), lambda n: (0, 0, 0, 0)),
            pl.BlockSpec((1, C), lambda n: (0, 0)),
        ],
        out_specs=pl.BlockSpec((1, H, W, C), lambda n: (n, 0, 0, 0)),
        scratch_shapes=[pltpu.VMEM((_OFF + H + 1, _OFF + W + 1, C),
                                   jnp.float32)],
        compiler_params=pltpu.CompilerParams(
            dimension_semantics=("parallel",)),
    )(x, w1, b1, w2, b2)

    return jnp.transpose(out, (0, 3, 1, 2))               # NHWC -> NCHW


# ----------------------------------------------------------------------------
# Parameter init (matches nn.Conv2d default scale) + pure-JAX reference
# ----------------------------------------------------------------------------
def init_residual_block_params(key, nf):
    k1, k2, k3, k4 = jax.random.split(key, 4)
    bound = 1.0 / math.sqrt(9 * nf)                       # kaiming_uniform(a=sqrt(5))
    return dict(
        w1=jax.random.uniform(k1, (3, 3, nf, nf), jnp.float32, -bound, bound),
        b1=jax.random.uniform(k2, (nf,), jnp.float32, -bound, bound),
        w2=jax.random.uniform(k3, (3, 3, nf, nf), jnp.float32, -bound, bound),
        b2=jax.random.uniform(k4, (nf,), jnp.float32, -bound, bound),
    )


def _ref_forward(params, x_nchw, act="relu"):
    x = jnp.transpose(x_nchw, (0, 2, 3, 1)).astype(jnp.float32)

    def conv(h, w, b):
        return lax.conv_general_dilated(
            h, w, (1, 1), "SAME",
            dimension_numbers=("NHWC", "HWIO", "NHWC")) + b

    y = conv(x, params["w1"], params["b1"])
    y = jnp.maximum(y, 0.0) if act == "relu" else jnp.where(y > 0, y, 0.1 * y)
    out = conv(y, params["w2"], params["b2"]) + x
    return jnp.transpose(out, (0, 3, 1, 2))


# ----------------------------------------------------------------------------
if __name__ == "__main__":
    root = jax.random.PRNGKey(0)
    k_params, k_input = jax.random.split(root)

    N, nf, H, W = 2, 32, 16, 16
    params = init_residual_block_params(k_params, nf)
    x = jax.random.normal(k_input, (N, nf, H, W), jnp.float32)

    out = residual_block_forward(params, x)
    jax.block_until_ready(out)

    assert out.shape == (N, nf, H, W), out.shape
    ref = _ref_forward(params, x)
    np.testing.assert_allclose(np.asarray(out), np.asarray(ref),
                               rtol=2e-2, atol=2e-2)
    print("KERNEL_OK")
</pallas_src>

<mosaic_0001>
module attributes {stable_mosaic.version = 11 : i64} {
  func.func @_residual_block_kernel(%arg0: i32, %arg1: memref<1x16x16x32xf32, #tpu.memory_space<vmem>>, %arg2: memref<3x3x32x32xbf16, #tpu.memory_space<vmem>>, %arg3: memref<1x32xf32, #tpu.memory_space<vmem>>, %arg4: memref<3x3x32x32xbf16, #tpu.memory_space<vmem>>, %arg5: memref<1x32xf32, #tpu.memory_space<vmem>>, %arg6: memref<1x16x16x32xf32, #tpu.memory_space<vmem>>, %arg7: memref<25x25x32xf32, #tpu.memory_space<vmem>>) attributes {dimension_semantics = [#tpu.dimension_semantics<parallel>], iteration_bounds = array<i64: 2>, scalar_prefetch = 0 : i64, scratch_operands = 1 : i64, tpu.core_type = #tpu.core_type<tc>, window_params = [{transform_indices = @transform_0, window_bounds = array<i64: 1, 16, 16, 32>}, {pipeline_mode = #tpu.pipeline_mode<synchronous>, transform_indices = @transform_1, window_bounds = array<i64: 3, 3, 32, 32>}, {pipeline_mode = #tpu.pipeline_mode<synchronous>, transform_indices = @transform_2, window_bounds = array<i64: 1, 32>}, {pipeline_mode = #tpu.pipeline_mode<synchronous>, transform_indices = @transform_3, window_bounds = array<i64: 3, 3, 32, 32>}, {pipeline_mode = #tpu.pipeline_mode<synchronous>, transform_indices = @transform_4, window_bounds = array<i64: 1, 32>}, {transform_indices = @transform_5, window_bounds = array<i64: 1, 16, 16, 32>}]} {
    %c0 = arith.constant 0 : index
    %c0_0 = arith.constant 0 : index
    %c0_1 = arith.constant 0 : index
    %c0_2 = arith.constant 0 : index
    %0 = vector.load %arg1[%c0, %c0_0, %c0_1, %c0_2] : memref<1x16x16x32xf32, #tpu.memory_space<vmem>>, vector<1x16x16x32xf32>
    %1 = vector.shape_cast %0 : vector<1x16x16x32xf32> to vector<16x16x32xf32>
    %cst = arith.constant 0.000000e+00 : f32
    %2 = vector.broadcast %cst : f32 to vector<25x25x32xf32>
    %c0_3 = arith.constant 0 : index
    %c0_4 = arith.constant 0 : index
    %c0_5 = arith.constant 0 : index
    %3 = vector.load %arg7[%c0_3, %c0_4, %c0_5] : memref<25x25x32xf32, #tpu.memory_space<vmem>>, vector<25x25x32xf32>
    tpu.vector_store %arg7[%c0_3, %c0_4, %c0_5], %2 {strides = array<i32>} : memref<25x25x32xf32, #tpu.memory_space<vmem>>, vector<25x25x32xf32>,
    %c8 = arith.constant 8 : index
    %c8_6 = arith.constant 8 : index
    %c0_7 = arith.constant 0 : index
    %4 = vector.load %arg7[%c8, %c8_6, %c0_7] : memref<25x25x32xf32, #tpu.memory_space<vmem>>, vector<16x16x32xf32>
    tpu.vector_store %arg7[%c8, %c8_6, %c0_7], %1 {strides = array<i32>} : memref<25x25x32xf32, #tpu.memory_space<vmem>>, vector<16x16x32xf32>,
    %c0_8 = arith.constant 0 : index
    %c0_9 = arith.constant 0 : index
    %c0_10 = arith.constant 0 : index
    %c0_11 = arith.constant 0 : index
    %5 = vector.load %arg2[%c0_8, %c0_9, %c0_10, %c0_11] : memref<3x3x32x32xbf16, #tpu.memory_space<vmem>>, vector<3x3x32x32xbf16>
    %cst_12 = arith.constant 0.000000e+00 : f32
    %6 = vector.broadcast %cst_12 : f32 to vector<256x32xf32>
    %c7 = arith.constant 7 : index
    %c7_13 = arith.constant 7 : index
    %c0_14 = arith.constant 0 : index
    %7 = vector.load %arg7[%c7, %c7_13, %c0_14] : memref<25x25x32xf32, #tpu.memory_space<vmem>>, vector<16x16x32xf32>
    %8 = vector.shape_cast %7 : vector<16x16x32xf32> to vector<256x32xf32>
    %9 = arith.truncf %8 : vector<256x32xf32> to vector<256x32xbf16>
    %10 = vector.extract_strided_slice %5 {offsets = [0, 0, 0, 0], sizes = [1, 1, 32, 32], strides = [1, 1, 1, 1]} : vector<3x3x32x32xbf16> to vector<1x1x32x32xbf16>
    %11 = vector.shape_cast %10 : vector<1x1x32x32xbf16> to vector<32x32xbf16>
    %cst_15 = arith.constant dense<0.000000e+00> : vector<256x32xf32>
    %12 = tpu.matmul %9, %11, %cst_15 {dimension_numbers = #tpu.dot_dimension_numbers<[1], [0], [0], [1], [0, 0, 1, 1], [], []>} : vector<256x32xbf16>, vector<32x32xbf16>, vector<256x32xf32> -> vector<256x32xf32>
    %13 = arith.addf %6, %12 : vector<256x32xf32>
    %c7_16 = arith.constant 7 : index
    %c8_17 = arith.constant 8 : index
    %c0_18 = arith.constant 0 : index
    %14 = vector.load %arg7[%c7_16, %c8_17, %c0_18] : memref<25x25x32xf32, #tpu.memory_space<vmem>>, vector<16x16x32xf32>
    %15 = vector.shape_cast %14 : vector<16x16x32xf32> to vector<256x32xf32>
    %16 = arith.truncf %15 : vector<256x32xf32> to vector<256x32xbf16>
    %17 = vector.extract_strided_slice %5 {offsets = [0, 1, 0, 0], sizes = [1, 1, 32, 32], strides = [1, 1, 1, 1]} : vector<3x3x32x32xbf16> to vector<1x1x32x32xbf16>
    %18 = vector.shape_cast %17 : vector<1x1x32x32xbf16> to vector<32x32xbf16>
    %cst_19 = arith.constant dense<0.000000e+00> : vector<256x32xf32>
    %19 = tpu.matmul %16, %18, %cst_19 {dimension_numbers = #tpu.dot_dimension_numbers<[1], [0], [0], [1], [0, 0, 1, 1], [], []>} : vector<256x32xbf16>, vector<32x32xbf16>, vector<256x32xf32> -> vector<256x32xf32>
    %20 = arith.addf %13, %19 : vector<256x32xf32>
    %c7_20 = arith.constant 7 : index
    %c9 = arith.constant 9 : index
    %c0_21 = arith.constant 0 : index
    %21 = vector.load %arg7[%c7_20, %c9, %c0_21] : memref<25x25x32xf32, #tpu.memory_space<vmem>>, vector<16x16x32xf32>
    %22 = vector.shape_cast %21 : vector<16x16x32xf32> to vector<256x32xf32>
    %23 = arith.truncf %22 : vector<256x32xf32> to vector<256x32xbf16>
    %24 = vector.extract_strided_slice %5 {offsets = [0, 2, 0, 0], sizes = [1, 1, 32, 32], strides = [1, 1, 1, 1]} : vector<3x3x32x32xbf16> to vector<1x1x32x32xbf16>
    %25 = vector.shape_cast %24 : vector<1x1x32x32xbf16> to vector<32x32xbf16>
    %cst_22 = arith.constant dense<0.000000e+00> : vector<256x32xf32>
    %26 = tpu.matmul %23, %25, %cst_22 {dimension_numbers = #tpu.dot_dimension_numbers<[1], [0], [0], [1], [0, 0, 1, 1], [], []>} : vector<256x32xbf16>, vector<32x32xbf16>, vector<256x32xf32> -> vector<256x32xf32>
    %27 = arith.addf %20, %26 : vector<256x32xf32>
    %c8_23 = arith.constant 8 : index
    %c7_24 = arith.constant 7 : index
    %c0_25 = arith.constant 0 : index
    %28 = vector.load %arg7[%c8_23, %c7_24, %c0_25] : memref<25x25x32xf32, #tpu.memory_space<vmem>>, vector<16x16x32xf32>
    %29 = vector.shape_cast %28 : vector<16x16x32xf32> to vector<256x32xf32>
    %30 = arith.truncf %29 : vector<256x32xf32> to vector<256x32xbf16>
    %31 = vector.extract_strided_slice %5 {offsets = [1, 0, 0, 0], sizes = [1, 1, 32, 32], strides = [1, 1, 1, 1]} : vector<3x3x32x32xbf16> to vector<1x1x32x32xbf16>
    %32 = vector.shape_cast %31 : vector<1x1x32x32xbf16> to vector<32x32xbf16>
    %cst_26 = arith.constant dense<0.000000e+00> : vector<256x32xf32>
    %33 = tpu.matmul %30, %32, %cst_26 {dimension_numbers = #tpu.dot_dimension_numbers<[1], [0], [0], [1], [0, 0, 1, 1], [], []>} : vector<256x32xbf16>, vector<32x32xbf16>, vector<256x32xf32> -> vector<256x32xf32>
    %34 = arith.addf %27, %33 : vector<256x32xf32>
    %c8_27 = arith.constant 8 : index
    %c8_28 = arith.constant 8 : index
    %c0_29 = arith.constant 0 : index
    %35 = vector.load %arg7[%c8_27, %c8_28, %c0_29] : memref<25x25x32xf32, #tpu.memory_space<vmem>>, vector<16x16x32xf32>
    %36 = vector.shape_cast %35 : vector<16x16x32xf32> to vector<256x32xf32>
    %37 = arith.truncf %36 : vector<256x32xf32> to vector<256x32xbf16>
    %38 = vector.extract_strided_slice %5 {offsets = [1, 1, 0, 0], sizes = [1, 1, 32, 32], strides = [1, 1, 1, 1]} : vector<3x3x32x32xbf16> to vector<1x1x32x32xbf16>
    %39 = vector.shape_cast %38 : vector<1x1x32x32xbf16> to vector<32x32xbf16>
    %cst_30 = arith.constant dense<0.000000e+00> : vector<256x32xf32>
    %40 = tpu.matmul %37, %39, %cst_30 {dimension_numbers = #tpu.dot_dimension_numbers<[1], [0], [0], [1], [0, 0, 1, 1], [], []>} : vector<256x32xbf16>, vector<32x32xbf16>, vector<256x32xf32> -> vector<256x32xf32>
    %41 = arith.addf %34, %40 : vector<256x32xf32>
    %c8_31 = arith.constant 8 : index
    %c9_32 = arith.constant 9 : index
    %c0_33 = arith.constant 0 : index
    %42 = vector.load %arg7[%c8_31, %c9_32, %c0_33] : memref<25x25x32xf32, #tpu.memory_space<vmem>>, vector<16x16x32xf32>
    %43 = vector.shape_cast %42 : vector<16x16x32xf32> to vector<256x32xf32>
    %44 = arith.truncf %43 : vector<256x32xf32> to vector<256x32xbf16>
    %45 = vector.extract_strided_slice %5 {offsets = [1, 2, 0, 0], sizes = [1, 1, 32, 32], strides = [1, 1, 1, 1]} : vector<3x3x32x32xbf16> to vector<1x1x32x32xbf16>
    %46 = vector.shape_cast %45 : vector<1x1x32x32xbf16> to vector<32x32xbf16>
    %cst_34 = arith.constant dense<0.000000e+00> : vector<256x32xf32>
    %47 = tpu.matmul %44, %46, %cst_34 {dimension_numbers = #tpu.dot_dimension_numbers<[1], [0], [0], [1], [0, 0, 1, 1], [], []>} : vector<256x32xbf16>, vector<32x32xbf16>, vector<256x32xf32> -> vector<256x32xf32>
    %48 = arith.addf %41, %47 : vector<256x32xf32>
    %c9_35 = arith.constant 9 : index
    %c7_36 = arith.constant 7 : index
    %c0_37 = arith.constant 0 : index
    %49 = vector.load %arg7[%c9_35, %c7_36, %c0_37] : memref<25x25x32xf32, #tpu.memory_space<vmem>>, vector<16x16x32xf32>
    %50 = vector.shape_cast %49 : vector<16x16x32xf32> to vector<256x32xf32>
    %51 = arith.truncf %50 : vector<256x32xf32> to vector<256x32xbf16>
    %52 = vector.extract_strided_slice %5 {offsets = [2, 0, 0, 0], sizes = [1, 1, 32, 32], strides = [1, 1, 1, 1]} : vector<3x3x32x32xbf16> to vector<1x1x32x32xbf16>
    %53 = vector.shape_cast %52 : vector<1x1x32x32xbf16> to vector<32x32xbf16>
    %cst_38 = arith.constant dense<0.000000e+00> : vector<256x32xf32>
    %54 = tpu.matmul %51, %53, %cst_38 {dimension_numbers = #tpu.dot_dimension_numbers<[1], [0], [0], [1], [0, 0, 1, 1], [], []>} : vector<256x32xbf16>, vector<32x32xbf16>, vector<256x32xf32> -> vector<256x32xf32>
    %55 = arith.addf %48, %54 : vector<256x32xf32>
    %c9_39 = arith.constant 9 : index
    %c8_40 = arith.constant 8 : index
    %c0_41 = arith.constant 0 : index
    %56 = vector.load %arg7[%c9_39, %c8_40, %c0_41] : memref<25x25x32xf32, #tpu.memory_space<vmem>>, vector<16x16x32xf32>
    %57 = vector.shape_cast %56 : vector<16x16x32xf32> to vector<256x32xf32>
    %58 = arith.truncf %57 : vector<256x32xf32> to vector<256x32xbf16>
    %59 = vector.extract_strided_slice %5 {offsets = [2, 1, 0, 0], sizes = [1, 1, 32, 32], strides = [1, 1, 1, 1]} : vector<3x3x32x32xbf16> to vector<1x1x32x32xbf16>
    %60 = vector.shape_cast %59 : vector<1x1x32x32xbf16> to vector<32x32xbf16>
    %cst_42 = arith.constant dense<0.000000e+00> : vector<256x32xf32>
    %61 = tpu.matmul %58, %60, %cst_42 {dimension_numbers = #tpu.dot_dimension_numbers<[1], [0], [0], [1], [0, 0, 1, 1], [], []>} : vector<256x32xbf16>, vector<32x32xbf16>, vector<256x32xf32> -> vector<256x32xf32>
    %62 = arith.addf %55, %61 : vector<256x32xf32>
    %c9_43 = arith.constant 9 : index
    %c9_44 = arith.constant 9 : index
    %c0_45 = arith.constant 0 : index
    %63 = vector.load %arg7[%c9_43, %c9_44, %c0_45] : memref<25x25x32xf32, #tpu.memory_space<vmem>>, vector<16x16x32xf32>
    %64 = vector.shape_cast %63 : vector<16x16x32xf32> to vector<256x32xf32>
    %65 = arith.truncf %64 : vector<256x32xf32> to vector<256x32xbf16>
    %66 = vector.extract_strided_slice %5 {offsets = [2, 2, 0, 0], sizes = [1, 1, 32, 32], strides = [1, 1, 1, 1]} : vector<3x3x32x32xbf16> to vector<1x1x32x32xbf16>
    %67 = vector.shape_cast %66 : vector<1x1x32x32xbf16> to vector<32x32xbf16>
    %cst_46 = arith.constant dense<0.000000e+00> : vector<256x32xf32>
    %68 = tpu.matmul %65, %67, %cst_46 {dimension_numbers = #tpu.dot_dimension_numbers<[1], [0], [0], [1], [0, 0, 1, 1], [], []>} : vector<256x32xbf16>, vector<32x32xbf16>, vector<256x32xf32> -> vector<256x32xf32>
    %69 = arith.addf %62, %68 : vector<256x32xf32>
    %c0_47 = arith.constant 0 : index
    %c0_48 = arith.constant 0 : index
    %70 = vector.load %arg3[%c0_47, %c0_48] : memref<1x32xf32, #tpu.memory_space<vmem>>, vector<1x32xf32>
    %71 = vector.broadcast %70 : vector<1x32xf32> to vector<256x32xf32>
    %72 = arith.addf %69, %71 : vector<256x32xf32>
    %cst_49 = arith.constant 0.000000e+00 : f32
    %73 = vector.broadcast %cst_49 : f32 to vector<256x32xf32>
    %74 = arith.maximumf %72, %73 : vector<256x32xf32>
    %75 = vector.shape_cast %74 : vector<256x32xf32> to vector<16x16x32xf32>
    %c8_50 = arith.constant 8 : index
    %c8_51 = arith.constant 8 : index
    %c0_52 = arith.constant 0 : index
    %76 = vector.load %arg7[%c8_50, %c8_51, %c0_52] : memref<25x25x32xf32, #tpu.memory_space<vmem>>, vector<16x16x32xf32>
    tpu.vector_store %arg7[%c8_50, %c8_51, %c0_52], %75 {strides = array<i32>} : memref<25x25x32xf32, #tpu.memory_space<vmem>>, vector<16x16x32xf32>,
    %c0_53 = arith.constant 0 : index
    %c0_54 = arith.constant 0 : index
    %c0_55 = arith.constant 0 : index
    %c0_56 = arith.constant 0 : index
    %77 = vector.load %arg4[%c0_53, %c0_54, %c0_55, %c0_56] : memref<3x3x32x32xbf16, #tpu.memory_space<vmem>>, vector<3x3x32x32xbf16>
    %cst_57 = arith.constant 0.000000e+00 : f32
    %78 = vector.broadcast %cst_57 : f32 to vector<256x32xf32>
    %c7_58 = arith.constant 7 : index
    %c7_59 = arith.constant 7 : index
    %c0_60 = arith.constant 0 : index
    %79 = vector.load %arg7[%c7_58, %c7_59, %c0_60] : memref<25x25x32xf32, #tpu.memory_space<vmem>>, vector<16x16x32xf32>
    %80 = vector.shape_cast %79 : vector<16x16x32xf32> to vector<256x32xf32>
    %81 = arith.truncf %80 : vector<256x32xf32> to vector<256x32xbf16>
    %82 = vector.extract_strided_slice %77 {offsets = [0, 0, 0, 0], sizes = [1, 1, 32, 32], strides = [1, 1, 1, 1]} : vector<3x3x32x32xbf16> to vector<1x1x32x32xbf16>
    %83 = vector.shape_cast %82 : vector<1x1x32x32xbf16> to vector<32x32xbf16>
    %cst_61 = arith.constant dense<0.000000e+00> : vector<256x32xf32>
    %84 = tpu.matmul %81, %83, %cst_61 {dimension_numbers = #tpu.dot_dimension_numbers<[1], [0], [0], [1], [0, 0, 1, 1], [], []>} : vector<256x32xbf16>, vector<32x32xbf16>, vector<256x32xf32> -> vector<256x32xf32>
    %85 = arith.addf %78, %84 : vector<256x32xf32>
    %c7_62 = arith.constant 7 : index
    %c8_63 = arith.constant 8 : index
    %c0_64 = arith.constant 0 : index
    %86 = vector.load %arg7[%c7_62, %c8_63, %c0_64] : memref<25x25x32xf32, #tpu.memory_space<vmem>>, vector<16x16x32xf32>
    %87 = vector.shape_cast %86 : vector<16x16x32xf32> to vector<256x32xf32>
    %88 = arith.truncf %87 : vector<256x32xf32> to vector<256x32xbf16>
    %89 = vector.extract_strided_slice %77 {offsets = [0, 1, 0, 0], sizes = [1, 1, 32, 32], strides = [1, 1, 1, 1]} : vector<3x3x32x32xbf16> to vector<1x1x32x32xbf16>
    %90 = vector.shape_cast %89 : vector<1x1x32x32xbf16> to vector<32x32xbf16>
    %cst_65 = arith.constant dense<0.000000e+00> : vector<256x32xf32>
    %91 = tpu.matmul %88, %90, %cst_65 {dimension_numbers = #tpu.dot_dimension_numbers<[1], [0], [0], [1], [0, 0, 1, 1], [], []>} : vector<256x32xbf16>, vector<32x32xbf16>, vector<256x32xf32> -> vector<256x32xf32>
    %92 = arith.addf %85, %91 : vector<256x32xf32>
    %c7_66 = arith.constant 7 : index
    %c9_67 = arith.constant 9 : index
    %c0_68 = arith.constant 0 : index
    %93 = vector.load %arg7[%c7_66, %c9_67, %c0_68] : memref<25x25x32xf32, #tpu.memory_space<vmem>>, vector<16x16x32xf32>
    %94 = vector.shape_cast %93 : vector<16x16x32xf32> to vector<256x32xf32>
    %95 = arith.truncf %94 : vector<256x32xf32> to vector<256x32xbf16>
    %96 = vector.extract_strided_slice %77 {offsets = [0, 2, 0, 0], sizes = [1, 1, 32, 32], strides = [1, 1, 1, 1]} : vector<3x3x32x32xbf16> to vector<1x1x32x32xbf16>
    %97 = vector.shape_cast %96 : vector<1x1x32x32xbf16> to vector<32x32xbf16>
    %cst_69 = arith.constant dense<0.000000e+00> : vector<256x32xf32>
    %98 = tpu.matmul %95, %97, %cst_69 {dimension_numbers = #tpu.dot_dimension_numbers<[1], [0], [0], [1], [0, 0, 1, 1], [], []>} : vector<256x32xbf16>, vector<32x32xbf16>, vector<256x32xf32> -> vector<256x32xf32>
    %99 = arith.addf %92, %98 : vector<256x32xf32>
    %c8_70 = arith.constant 8 : index
    %c7_71 = arith.constant 7 : index
    %c0_72 = arith.constant 0 : index
    %100 = vector.load %arg7[%c8_70, %c7_71, %c0_72] : memref<25x25x32xf32, #tpu.memory_space<vmem>>, vector<16x16x32xf32>
    %101 = vector.shape_cast %100 : vector<16x16x32xf32> to vector<256x32xf32>
    %102 = arith.truncf %101 : vector<256x32xf32> to vector<256x32xbf16>
    %103 = vector.extract_strided_slice %77 {offsets = [1, 0, 0, 0], sizes = [1, 1, 32, 32], strides = [1, 1, 1, 1]} : vector<3x3x32x32xbf16> to vector<1x1x32x32xbf16>
    %104 = vector.shape_cast %103 : vector<1x1x32x32xbf16> to vector<32x32xbf16>
    %cst_73 = arith.constant dense<0.000000e+00> : vector<256x32xf32>
    %105 = tpu.matmul %102, %104, %cst_73 {dimension_numbers = #tpu.dot_dimension_numbers<[1], [0], [0], [1], [0, 0, 1, 1], [], []>} : vector<256x32xbf16>, vector<32x32xbf16>, vector<256x32xf32> -> vector<256x32xf32>
    %106 = arith.addf %99, %105 : vector<256x32xf32>
    %c8_74 = arith.constant 8 : index
    %c8_75 = arith.constant 8 : index
    %c0_76 = arith.constant 0 : index
    %107 = vector.load %arg7[%c8_74, %c8_75, %c0_76] : memref<25x25x32xf32, #tpu.memory_space<vmem>>, vector<16x16x32xf32>
    %108 = vector.shape_cast %107 : vector<16x16x32xf32> to vector<256x32xf32>
    %109 = arith.truncf %108 : vector<256x32xf32> to vector<256x32xbf16>
    %110 = vector.extract_strided_slice %77 {offsets = [1, 1, 0, 0], sizes = [1, 1, 32, 32], strides = [1, 1, 1, 1]} : vector<3x3x32x32xbf16> to vector<1x1x32x32xbf16>
    %111 = vector.shape_cast %110 : vector<1x1x32x32xbf16> to vector<32x32xbf16>
    %cst_77 = arith.constant dense<0.000000e+00> : vector<256x32xf32>
    %112 = tpu.matmul %109, %111, %cst_77 {dimension_numbers = #tpu.dot_dimension_numbers<[1], [0], [0], [1], [0, 0, 1, 1], [], []>} : vector<256x32xbf16>, vector<32x32xbf16>, vector<256x32xf32> -> vector<256x32xf32>
    %113 = arith.addf %106, %112 : vector<256x32xf32>
    %c8_78 = arith.constant 8 : index
    %c9_79 = arith.constant 9 : index
    %c0_80 = arith.constant 0 : index
    %114 = vector.load %arg7[%c8_78, %c9_79, %c0_80] : memref<25x25x32xf32, #tpu.memory_space<vmem>>, vector<16x16x32xf32>
    %115 = vector.shape_cast %114 : vector<16x16x32xf32> to vector<256x32xf32>
    %116 = arith.truncf %115 : vector<256x32xf32> to vector<256x32xbf16>
    %117 = vector.extract_strided_slice %77 {offsets = [1, 2, 0, 0], sizes = [1, 1, 32, 32], strides = [1, 1, 1, 1]} : vector<3x3x32x32xbf16> to vector<1x1x32x32xbf16>
    %118 = vector.shape_cast %117 : vector<1x1x32x32xbf16> to vector<32x32xbf16>
    %cst_81 = arith.constant dense<0.000000e+00> : vector<256x32xf32>
    %119 = tpu.matmul %116, %118, %cst_81 {dimension_numbers = #tpu.dot_dimension_numbers<[1], [0], [0], [1], [0, 0, 1, 1], [], []>} : vector<256x32xbf16>, vector<32x32xbf16>, vector<256x32xf32> -> vector<256x32xf32>
    %120 = arith.addf %113, %119 : vector<256x32xf32>
    %c9_82 = arith.constant 9 : index
    %c7_83 = arith.constant 7 : index
    %c0_84 = arith.constant 0 : index
    %121 = vector.load %arg7[%c9_82, %c7_83, %c0_84] : memref<25x25x32xf32, #tpu.memory_space<vmem>>, vector<16x16x32xf32>
    %122 = vector.shape_cast %121 : vector<16x16x32xf32> to vector<256x32xf32>
    %123 = arith.truncf %122 : vector<256x32xf32> to vector<256x32xbf16>
    %124 = vector.extract_strided_slice %77 {offsets = [2, 0, 0, 0], sizes = [1, 1, 32, 32], strides = [1, 1, 1, 1]} : vector<3x3x32x32xbf16> to vector<1x1x32x32xbf16>
    %125 = vector.shape_cast %124 : vector<1x1x32x32xbf16> to vector<32x32xbf16>
    %cst_85 = arith.constant dense<0.000000e+00> : vector<256x32xf32>
    %126 = tpu.matmul %123, %125, %cst_85 {dimension_numbers = #tpu.dot_dimension_numbers<[1], [0], [0], [1], [0, 0, 1, 1], [], []>} : vector<256x32xbf16>, vector<32x32xbf16>, vector<256x32xf32> -> vector<256x32xf32>
    %127 = arith.addf %120, %126 : vector<256x32xf32>
    %c9_86 = arith.constant 9 : index
    %c8_87 = arith.constant 8 : index
    %c0_88 = arith.constant 0 : index
    %128 = vector.load %arg7[%c9_86, %c8_87, %c0_88] : memref<25x25x32xf32, #tpu.memory_space<vmem>>, vector<16x16x32xf32>
    %129 = vector.shape_cast %128 : vector<16x16x32xf32> to vector<256x32xf32>
    %130 = arith.truncf %129 : vector<256x32xf32> to vector<256x32xbf16>
    %131 = vector.extract_strided_slice %77 {offsets = [2, 1, 0, 0], sizes = [1, 1, 32, 32], strides = [1, 1, 1, 1]} : vector<3x3x32x32xbf16> to vector<1x1x32x32xbf16>
    %132 = vector.shape_cast %131 : vector<1x1x32x32xbf16> to vector<32x32xbf16>
    %cst_89 = arith.constant dense<0.000000e+00> : vector<256x32xf32>
    %133 = tpu.matmul %130, %132, %cst_89 {dimension_numbers = #tpu.dot_dimension_numbers<[1], [0], [0], [1], [0, 0, 1, 1], [], []>} : vector<256x32xbf16>, vector<32x32xbf16>, vector<256x32xf32> -> vector<256x32xf32>
    %134 = arith.addf %127, %133 : vector<256x32xf32>
    %c9_90 = arith.constant 9 : index
    %c9_91 = arith.constant 9 : index
    %c0_92 = arith.constant 0 : index
    %135 = vector.load %arg7[%c9_90, %c9_91, %c0_92] : memref<25x25x32xf32, #tpu.memory_space<vmem>>, vector<16x16x32xf32>
    %136 = vector.shape_cast %135 : vector<16x16x32xf32> to vector<256x32xf32>
    %137 = arith.truncf %136 : vector<256x32xf32> to vector<256x32xbf16>
    %138 = vector.extract_strided_slice %77 {offsets = [2, 2, 0, 0], sizes = [1, 1, 32, 32], strides = [1, 1, 1, 1]} : vector<3x3x32x32xbf16> to vector<1x1x32x32xbf16>
    %139 = vector.shape_cast %138 : vector<1x1x32x32xbf16> to vector<32x32xbf16>
    %cst_93 = arith.constant dense<0.000000e+00> : vector<256x32xf32>
    %140 = tpu.matmul %137, %139, %cst_93 {dimension_numbers = #tpu.dot_dimension_numbers<[1], [0], [0], [1], [0, 0, 1, 1], [], []>} : vector<256x32xbf16>, vector<32x32xbf16>, vector<256x32xf32> -> vector<256x32xf32>
    %141 = arith.addf %134, %140 : vector<256x32xf32>
    %c0_94 = arith.constant 0 : index
    %c0_95 = arith.constant 0 : index
    %142 = vector.load %arg5[%c0_94, %c0_95] : memref<1x32xf32, #tpu.memory_space<vmem>>, vector<1x32xf32>
    %143 = vector.broadcast %142 : vector<1x32xf32> to vector<256x32xf32>
    %144 = arith.addf %141, %143 : vector<256x32xf32>
    %145 = vector.shape_cast %144 : vector<256x32xf32> to vector<16x16x32xf32>
    %146 = arith.addf %145, %1 : vector<16x16x32xf32>
    %c0_96 = arith.constant 0 : index
    %c0_97 = arith.constant 0 : index
    %c0_98 = arith.constant 0 : index
    %c0_99 = arith.constant 0 : index
    %147 = vector.load %arg6[%c0_96, %c0_97, %c0_98, %c0_99] : memref<1x16x16x32xf32, #tpu.memory_space<vmem>>, vector<1x16x16x32xf32>
    %148 = vector.shape_cast %147 : vector<1x16x16x32xf32> to vector<16x16x32xf32>
    %149 = vector.shape_cast %146 : vector<16x16x32xf32> to vector<1x16x16x32xf32>
    tpu.vector_store %arg6[%c0_96, %c0_97, %c0_98, %c0_99], %149 {strides = array<i32>} : memref<1x16x16x32xf32, #tpu.memory_space<vmem>>, vector<1x16x16x32xf32>,
    return
  }
  func.func @transform_0(%arg0: i32) -> (i32, i32, i32, i32) {
    %c0_i32 = arith.constant 0 : i32
    %c0_i32_0 = arith.constant 0 : i32
    %c0_i32_1 = arith.constant 0 : i32
    %c0_i32_2 = arith.constant 0 : i32
    return %arg0, %c0_i32, %c0_i32_0, %c0_i32_1 : i32, i32, i32, i32
  }
  func.func @transform_1(%arg0: i32) -> (i32, i32, i32, i32) {
    %c0_i32 = arith.constant 0 : i32
    %c0_i32_0 = arith.constant 0 : i32
    %c0_i32_1 = arith.constant 0 : i32
    %c0_i32_2 = arith.constant 0 : i32
    %c0_i32_3 = arith.constant 0 : i32
    return %c0_i32, %c0_i32_0, %c0_i32_1, %c0_i32_2 : i32, i32, i32, i32
  }
  func.func @transform_2(%arg0: i32) -> (i32, i32) {
    %c0_i32 = arith.constant 0 : i32
    %c0_i32_0 = arith.constant 0 : i32
    %c0_i32_1 = arith.constant 0 : i32
    return %c0_i32, %c0_i32_0 : i32, i32
  }
  func.func @transform_3(%arg0: i32) -> (i32, i32, i32, i32) {
    %c0_i32 = arith.constant 0 : i32
    %c0_i32_0 = arith.constant 0 : i32
    %c0_i32_1 = arith.constant 0 : i32
    %c0_i32_2 = arith.constant 0 : i32
    %c0_i32_3 = arith.constant 0 : i32
    return %c0_i32, %c0_i32_0, %c0_i32_1, %c0_i32_2 : i32, i32, i32, i32
  }
  func.func @transform_4(%arg0: i32) -> (i32, i32) {
    %c0_i32 = arith.constant 0 : i32
    %c0_i32_0 = arith.constant 0 : i32
    %c0_i32_1 = arith.constant 0 : i32
    return %c0_i32, %c0_i32_0 : i32, i32
  }
  func.func @transform_5(%arg0: i32) -> (i32, i32, i32, i32) {
    %c0_i32 = arith.constant 0 : i32
    %c0_i32_0 = arith.constant 0 : i32
    %c0_i32_1 = arith.constant 0 : i32
    %c0_i32_2 = arith.constant 0 : i32
    return %arg0, %c0_i32, %c0_i32_0, %c0_i32_1 : i32, i32, i32, i32
  }
}

</mosaic_0001>

<llo_original>
// kernel: residual_block_forward.1
$region0: #{residual_block_forward.1}
  #allocation0 [shape = 'u32[]', space=smem, size = 0x4, offset = 0x4, fixed_abs, tag = 'smem constant byte address 0x4 - core index']
  #allocation1 [shape = 'u32[144,128]{1,0:T(1,128)}', space=vmem, size = 0x12000, scoped, tag = 'internal scratch']
  #allocation2 [shape = 'f32[25,25,32]{2,1,0:T(8,128)}', space=vmem, size = 0x64000, scoped, tag = 'scratch operand']
  %s0 = inlined_call_operand.vmem [shape: f32[2,16,16,32], index: 0, kind: input, shape index: {}]
  %s1 = inlined_call_operand.vmem [shape: bf16[3,3,32,32], index: 1, kind: input, shape index: {}]
  %s2 = inlined_call_operand.vmem [shape: f32[1,32], index: 2, kind: input, shape index: {}]
  %s3 = inlined_call_operand.vmem [shape: bf16[3,3,32,32], index: 3, kind: input, shape index: {}]
  %s4 = inlined_call_operand.vmem [shape: f32[1,32], index: 4, kind: input, shape index: {}]
  %s5 = inlined_call_operand.hbm [shape: f32[2,16,16,32], index: 5, kind: output, shape index: {}]
  %s6 = sld [smem:[#allocation0]]
  $region53: #{residual_block_forward.1} parent=0
    _
  %s8 = ssub.s32 1, %s6
  %s9 = scalar_select 0, %s8, %s6
  $region1: #{residual_block_forward.1} parent=0
    #allocation3 [shape = 'u8[262144]{0}', space=vmem, size = 0x40000, scoped, tag = 'output window, operand 0']
    #allocation4 [shape = 's32[2]{0}', space=sflag, size = 0x8, scoped, tag = 'scoped memory for residual_block_forward.1']
    %10 = vsyncpa [#allocation4], 0
    %s11 = scalar_lea.sflag [#allocation4], 1
    %12 = vsyncpa %s11, 0
    loop: start=0, step=1, limit=4
    $region2: #{residual_block_forward.1} parent=1 // loop_pre_header
      _
    $region3: #{residual_block_forward.1} parent=1 // loop_header
      %s14 = sphi 0, %s18
      %p15 = scmp.ge.s32.totalorder %s14, 4
      %s24 = sphi 0, %s26
      %s27 = sphi 0, %s24
      %s28 = sphi 0, %s27
      %s44 = sphi 0, %s28
      %s48 = sphi 0, %s48
      %s50 = sphi 0, %s48
      %s51 = sphi 0, %s50
      %s65 = sphi 0, %s51
      %s69 = sphi 0, %s69
      %s71 = sphi 0, %s69
      %s72 = sphi 0, %s71
      %s86 = sphi 0, %s72
      %s90 = sphi 0, %s90
      %s92 = sphi 0, %s90
      %s93 = sphi 0, %s92
      %s107 = sphi 0, %s93
      %s111 = sphi 0, %s111
      %s113 = sphi 0, %s111
      %s114 = sphi 0, %s113
      %s128 = sphi 0, %s114
      %s134 = sphi 0, %s136
      %s137 = sphi 0, %s134
      %s138 = sphi 0, %s137
      %s154 = sphi 0, %s138
    $region4: #{residual_block_forward.1} parent=1 // loop_header_branch
      %17 = sbr.rel (%p15) target = $region8
    $region5: #{residual_block_forward.1} parent=1 // loop_body
      %s19 = ssub.s32 %s14, 1
      %s20 = ssub.s32 %s14, 2
      %s21 = sadd.s32 %s14, 1
      %s22 = ssub.s32 %s14, %s21
      %p23 = scmp.eq.s32.totalorder %s22, 0
      %s25 = sadd.s32 %s24, 1
      %s26 = scalar_select %p23, %s24, %s25
      %p29 = pneg %p23
      %p30 = scmp.eq.s32.totalorder %s14, 1
      %p31 = por %p29, %p30
      %p32 = scmp.ne.s32.totalorder %s24, %s27
      %p33 = scmp.eq.s32.totalorder %s14, 0
      %p34 = por %p32, %p33
      %p35 = scmp.ne.s32.totalorder %s24, %s27
      %p36 = scmp.eq.s32.totalorder %s19, 1
      %p37 = por %p35, %p36
      %p38 = scmp.ne.s32.totalorder %s27, %s28
      %p39 = scmp.eq.s32.totalorder %s19, 0
      %p40 = por %p38, %p39
      %p41 = scmp.ne.s32.totalorder %s27, %s28
      %p42 = scmp.eq.s32.totalorder %s20, 1
      %p43 = por %p41, %p42
      %p45 = scmp.ne.s32.totalorder %s28, %s44
      %p46 = scmp.eq.s32.totalorder %s20, 0
      %p47 = por %p45, %p46
      %s49 = sadd.s32 %s48, 1
      %p52 = scmp.eq.s32.totalorder %s14, 1
      %p53 = scmp.ne.s32.totalorder %s48, %s50
      %p54 = scmp.eq.s32.totalorder %s14, 0
      %p55 = por %p53, %p54
      %p56 = scmp.ne.s32.totalorder %s48, %s50
      %p57 = scmp.eq.s32.totalorder %s19, 1
      %p58 = por %p56, %p57
      %p59 = scmp.ne.s32.totalorder %s50, %s51
      %p60 = scmp.eq.s32.totalorder %s19, 0
      %p61 = por %p59, %p60
      %p62 = scmp.ne.s32.totalorder %s50, %s51
      %p63 = scmp.eq.s32.totalorder %s20, 1
      %p64 = por %p62, %p63
      %p66 = scmp.ne.s32.totalorder %s51, %s65
      %p67 = scmp.eq.s32.totalorder %s20, 0
      %p68 = por %p66, %p67
      %s70 = sadd.s32 %s69, 1
      %p73 = scmp.eq.s32.totalorder %s14, 1
      %p74 = scmp.ne.s32.totalorder %s69, %s71
      %p75 = scmp.eq.s32.totalorder %s14, 0
      %p76 = por %p74, %p75
      %p77 = scmp.ne.s32.totalorder %s69, %s71
      %p78 = scmp.eq.s32.totalorder %s19, 1
      %p79 = por %p77, %p78
      %p80 = scmp.ne.s32.totalorder %s71, %s72
      %p81 = scmp.eq.s32.totalorder %s19, 0
      %p82 = por %p80, %p81
      %p83 = scmp.ne.s32.totalorder %s71, %s72
      %p84 = scmp.eq.s32.totalorder %s20, 1
      %p85 = por %p83, %p84
      %p87 = scmp.ne.s32.totalorder %s72, %s86
      %p88 = scmp.eq.s32.totalorder %s20, 0
      %p89 = por %p87, %p88
      %s91 = sadd.s32 %s90, 1
      %p94 = scmp.eq.s32.totalorder %s14, 1
      %p95 = scmp.ne.s32.totalorder %s90, %s92
      %p96 = scmp.eq.s32.totalorder %s14, 0
      %p97 = por %p95, %p96
      %p98 = scmp.ne.s32.totalorder %s90, %s92
      %p99 = scmp.eq.s32.totalorder %s19, 1
      %p100 = por %p98, %p99
      %p101 = scmp.ne.s32.totalorder %s92, %s93
      %p102 = scmp.eq.s32.totalorder %s19, 0
      %p103 = por %p101, %p102
      %p104 = scmp.ne.s32.totalorder %s92, %s93
      %p105 = scmp.eq.s32.totalorder %s20, 1
      %p106 = por %p104, %p105
      %p108 = scmp.ne.s32.totalorder %s93, %s107
      %p109 = scmp.eq.s32.totalorder %s20, 0
      %p110 = por %p108, %p109
      %s112 = sadd.s32 %s111, 1
      %p115 = scmp.eq.s32.totalorder %s14, 1
      %p116 = scmp.ne.s32.totalorder %s111, %s113
      %p117 = scmp.eq.s32.totalorder %s14, 0
      %p118 = por %p116, %p117
      %p119 = scmp.ne.s32.totalorder %s111, %s113
      %p120 = scmp.eq.s32.totalorder %s19, 1
      %p121 = por %p119, %p120
      %p122 = scmp.ne.s32.totalorder %s113, %s114
      %p123 = scmp.eq.s32.totalorder %s19, 0
      %p124 = por %p122, %p123
      %p125 = scmp.ne.s32.totalorder %s113, %s114
      %p126 = scmp.eq.s32.totalorder %s20, 1
      %p127 = por %p125, %p126
      %p129 = scmp.ne.s32.totalorder %s114, %s128
      %p130 = scmp.eq.s32.totalorder %s20, 0
      %p131 = por %p129, %p130
      %s132 = ssub.s32 %s14, %s21
      %p133 = scmp.eq.s32.totalorder %s132, 0
      %s135 = sadd.s32 %s134, 1
      %s136 = scalar_select %p133, %s134, %s135
      %p139 = pneg %p133
      %p140 = scmp.eq.s32.totalorder %s14, 1
      %p141 = por %p139, %p140
      %p142 = scmp.ne.s32.totalorder %s134, %s137
      %p143 = scmp.eq.s32.totalorder %s14, 0
      %p144 = por %p142, %p143
      %p145 = scmp.ne.s32.totalorder %s134, %s137
      %p146 = scmp.eq.s32.totalorder %s19, 1
      %p147 = por %p145, %p146
      %p148 = scmp.ne.s32.totalorder %s137, %s138
      %p149 = scmp.eq.s32.totalorder %s19, 0
      %p150 = por %p148, %p149
      %p151 = scmp.ne.s32.totalorder %s137, %s138
      %p152 = scmp.eq.s32.totalorder %s20, 1
      %p153 = por %p151, %p152
      %p155 = scmp.ne.s32.totalorder %s138, %s154
      %p156 = scmp.eq.s32.totalorder %s20, 0
      %p157 = por %p155, %p156
      %p158 = scmp.le.s32.totalorder 1, %s14
      %p159 = scmp.lt.s32.totalorder %s14, 3
      %p160 = pnand %p158, %p159
      %p161 = pneg %p160
      // Predicated region
      $region9: #{residual_block_forward.1} parent=5 // pred_check
        _
      $region10: #{residual_block_forward.1} parent=5 // pred_check_branch
        %163 = sbr.rel (%p160) target = $region12
      $region11: #{residual_block_forward.1} parent=5 // pred_region
        %s164 = ssub.s32 %s14, 1
        // Predicated region
        $region13: #{residual_block_forward.1} parent=11 // pred_check
          %p165 = pneg %p61
        $region14: #{residual_block_forward.1} parent=11 // pred_check_branch
          %167 = sbr.rel (%p165) target = $region16
        $region15: #{residual_block_forward.1} parent=11 // pred_region
          _
        $region16: #{residual_block_forward.1} parent=11 // pred_fallthru
          _
        // Predicated region
        $region17: #{residual_block_forward.1} parent=11 // pred_check
          %p168 = pneg %p82
        $region18: #{residual_block_forward.1} parent=11 // pred_check_branch
          %170 = sbr.rel (%p168) target = $region20
        $region19: #{residual_block_forward.1} parent=11 // pred_region
          _
        $region20: #{residual_block_forward.1} parent=11 // pred_fallthru
          _
        // Predicated region
        $region21: #{residual_block_forward.1} parent=11 // pred_check
          %p171 = pneg %p103
        $region22: #{residual_block_forward.1} parent=11 // pred_check_branch
          %173 = sbr.rel (%p171) target = $region24
        $region23: #{residual_block_forward.1} parent=11 // pred_region
          _
        $region24: #{residual_block_forward.1} parent=11 // pred_fallthru
          _
        // Predicated region
        $region25: #{residual_block_forward.1} parent=11 // pred_check
          %p174 = pneg %p124
        $region26: #{residual_block_forward.1} parent=11 // pred_check_branch
          %176 = sbr.rel (%p174) target = $region28
        $region27: #{residual_block_forward.1} parent=11 // pred_region
          _
        $region28: #{residual_block_forward.1} parent=11 // pred_fallthru
          _
      $region12: #{residual_block_forward.1} parent=5 // pred_fallthru
        _
      %p177 = scmp.lt.s32.totalorder %s14, 2
      // Predicated region
      $region29: #{residual_block_forward.1} parent=5 // pred_check
        %p178 = pneg %p177
      $region30: #{residual_block_forward.1} parent=5 // pred_check_branch
        %180 = sbr.rel (%p178) target = $region32
      $region31: #{residual_block_forward.1} parent=5 // pred_region
        // Predicated region
        $region33: #{residual_block_forward.1} parent=31 // pred_check
          %p181 = pneg %p34
        $region34: #{residual_block_forward.1} parent=31 // pred_check_branch
          %183 = sbr.rel (%p181) target = $region36
        $region35: #{residual_block_forward.1} parent=31 // pred_region
          %p184 = scmp.lt.s32.totalorder %s14, 1
          %s185 = scalar_select %p184, %s14, 1
          %s186 = smul.addr %s185, 32
          %s187 = smul.addr %s186, 8
          %s188 = scalar_lea.vmem %s0, %s187
        $region36: #{residual_block_forward.1} parent=31 // pred_fallthru
          _
      $region32: #{residual_block_forward.1} parent=5 // pred_fallthru
        _
      %p189 = scmp.le.s32.totalorder 1, %s14
      %p190 = scmp.lt.s32.totalorder %s14, 3
      %p191 = pnand %p189, %p190
      %p192 = pneg %p191
      // Predicated region
      $region37: #{residual_block_forward.1} parent=5 // pred_check
        _
      $region38: #{residual_block_forward.1} parent=5 // pred_check_branch
        %194 = sbr.rel (%p191) target = $region40
      $region39: #{residual_block_forward.1} parent=5 // pred_region
        %s195 = ssub.s32 %s14, 1
        %p196 = scmp.lt.s32.totalorder %s19, 1
        %s197 = scalar_select %p196, %s19, 1
        %s198 = smul.addr %s197, 32
        %s199 = smul.addr %s198, 8
        %s200 = scalar_lea.vmem %s0, %s199
        %p201 = pneg %p40
        %p202 = pneg %p37
        %p203 = pneg %p61
        %p204 = pneg %p58
        %p205 = pneg %p82
        %p206 = pneg %p79
        %p207 = pneg %p103
        %p208 = pneg %p100
        %p209 = pneg %p124
        %p210 = pneg %p121
        %p211 = pneg %p150
        %p212 = pneg %p147
        %s213 = sand.u32 %s137, 1
        %s214 = scalar_lea.sflag [#allocation4], %s213
        %s215 = sand.u32 %s137, 1
        %s216 = smul.addr %s215, 256
        %s217 = scalar_lea.vmem [#allocation3], %s216
        %p218 = scmp.lt.s32.totalorder %s19, 1
        %s219 = scalar_select %p218, %s19, 1
        %s220 = smul.addr %s219, 32
        %s221 = smul.addr %s220, 8
        %s222 = scalar_lea.vmem %s0, %s221
        %v224 = vld [vmem:[%s222] sm:$0xff]
        %v225 = vld [vmem:[%s222 + $0x8] sm:$0xff]
        %v226 = vld [vmem:[%s222 + $0x10] sm:$0xff]
        %v227 = vld [vmem:[%s222 + $0x18] sm:$0xff]
        %v228 = vld [vmem:[%s222 + $0x20] sm:$0xff]
        %v229 = vld [vmem:[%s222 + $0x28] sm:$0xff]
        %v230 = vld [vmem:[%s222 + $0x30] sm:$0xff]
        %v231 = vld [vmem:[%s222 + $0x38] sm:$0xff]
        %v232 = vld [vmem:[%s222 + $0x40] sm:$0xff]
        %v233 = vld [vmem:[%s222 + $0x48] sm:$0xff]
        %v234 = vld [vmem:[%s222 + $0x50] sm:$0xff]
        %v235 = vld [vmem:[%s222 + $0x58] sm:$0xff]
        %v236 = vld [vmem:[%s222 + $0x60] sm:$0xff]
        %v237 = vld [vmem:[%s222 + $0x68] sm:$0xff]
        %v238 = vld [vmem:[%s222 + $0x70] sm:$0xff]
        %v239 = vld [vmem:[%s222 + $0x78] sm:$0xff]
        %v240 = vld [vmem:[%s222 + $0x80] sm:$0xff]
        %v241 = vld [vmem:[%s222 + $0x88] sm:$0xff]
        %v242 = vld [vmem:[%s222 + $0x90] sm:$0xff]
        %v243 = vld [vmem:[%s222 + $0x98] sm:$0xff]
        %v244 = vld [vmem:[%s222 + $0xa0] sm:$0xff]
        %v245 = vld [vmem:[%s222 + $0xa8] sm:$0xff]
        %v246 = vld [vmem:[%s222 + $0xb0] sm:$0xff]
        %v247 = vld [vmem:[%s222 + $0xb8] sm:$0xff]
        %v248 = vld [vmem:[%s222 + $0xc0] sm:$0xff]
        %v249 = vld [vmem:[%s222 + $0xc8] sm:$0xff]
        %v250 = vld [vmem:[%s222 + $0xd0] sm:$0xff]
        %v251 = vld [vmem:[%s222 + $0xd8] sm:$0xff]
        %v252 = vld [vmem:[%s222 + $0xe0] sm:$0xff]
        %v253 = vld [vmem:[%s222 + $0xe8] sm:$0xff]
        %v254 = vld [vmem:[%s222 + $0xf0] sm:$0xff]
        %v255 = vld [vmem:[%s222 + $0xf8] sm:$0xff]
        %vm256 = vcmask 261120
        %257 = vst.msk [vmem:[#allocation2] sm:$0xff] %vm256, 0.0
        %258 = vst.msk [vmem:[#allocation2 + $0x8] sm:$0xff] %vm256, 0.0
        %259 = vst.msk [vmem:[#allocation2 + $0x10] sm:$0xff] %vm256, 0.0
        %vm260 = vcmask 253952
        %261 = vst.msk [vmem:[#allocation2 + $0x18] sm:$0x1] %vm260, 0.0
        %262 = vst.msk [vmem:[#allocation2 + $0x20] sm:$0xff] %vm256, 0.0
        %263 = vst.msk [vmem:[#allocation2 + $0x28] sm:$0xff] %vm256, 0.0
        %264 = vst.msk [vmem:[#allocation2 + $0x30] sm:$0xff] %vm256, 0.0
        %265 = vst.msk [vmem:[#allocation2 + $0x38] sm:$0x1] %vm260, 0.0
        %266 = vst.msk [vmem:[#allocation2 + $0x40] sm:$0xff] %vm256, 0.0
        %267 = vst.msk [vmem:[#allocation2 + $0x48] sm:$0xff] %vm256, 0.0
        %268 = vst.msk [vmem:[#allocation2 + $0x50] sm:$0xff] %vm256, 0.0
        %269 = vst.msk [vmem:[#allocation2 + $0x58] sm:$0x1] %vm260, 0.0
        %270 = vst.msk [vmem:[#allocation2 + $0x60] sm:$0xff] %vm256, 0.0
        %271 = vst.msk [vmem:[#allocation2 + $0x68] sm:$0xff] %vm256, 0.0
        %272 = vst.msk [vmem:[#allocation2 + $0x70] sm:$0xff] %vm256, 0.0
        %273 = vst.msk [vmem:[#allocation2 + $0x78] sm:$0x1] %vm260, 0.0
        %274 = vst.msk [vmem:[#allocation2 + $0x80] sm:$0xff] %vm256, 0.0
        %275 = vst.msk [vmem:[#allocation2 + $0x88] sm:$0xff] %vm256, 0.0
        %276 = vst.msk [vmem:[#allocation2 + $0x90] sm:$0xff] %vm256, 0.0
        %277 = vst.msk [vmem:[#allocation2 + $0x98] sm:$0x1] %vm260, 0.0
        %278 = vst.msk [vmem:[#allocation2 + $0xa0] sm:$0xff] %vm256, 0.0
        %279 = vst.msk [vmem:[#allocation2 + $0xa8] sm:$0xff] %vm256, 0.0
        %280 = vst.msk [vmem:[#allocation2 + $0xb0] sm:$0xff] %vm256, 0.0
        %281 = vst.msk [vmem:[#allocation2 + $0xb8] sm:$0x1] %vm260, 0.0
        %282 = vst.msk [vmem:[#allocation2 + $0xc0] sm:$0xff] %vm256, 0.0
        %283 = vst.msk [vmem:[#allocation2 + $0xc8] sm:$0xff] %vm256, 0.0
        %284 = vst.msk [vmem:[#allocation2 + $0xd0] sm:$0xff] %vm256, 0.0
        %285 = vst.msk [vmem:[#allocation2 + $0xd8] sm:$0x1] %vm260, 0.0
        %286 = vst.msk [vmem:[#allocation2 + $0xe0] sm:$0xff] %vm256, 0.0
        %287 = vst.msk [vmem:[#allocation2 + $0xe8] sm:$0xff] %vm256, 0.0
        %288 = vst.msk [vmem:[#allocation2 + $0xf0] sm:$0xff] %vm256, 0.0
        %289 = vst.msk [vmem:[#allocation2 + $0xf8] sm:$0x1] %vm260, 0.0
        %290 = vst.msk [vmem:[#allocation2 + $0x100] sm:$0xff] %vm256, 0.0
        %291 = vst.msk [vmem:[#allocation2 + $0x108] sm:$0xff] %vm256, 0.0
        %292 = vst.msk [vmem:[#allocation2 + $0x110] sm:$0xff] %vm256, 0.0
        %293 = vst.msk [vmem:[#allocation2 + $0x118] sm:$0x1] %vm260, 0.0
        %294 = vst.msk [vmem:[#allocation2 + $0x120] sm:$0xff] %vm256, 0.0
        %295 = vst.msk [vmem:[#allocation2 + $0x128] sm:$0xff] %vm256, 0.0
        %296 = vst.msk [vmem:[#allocation2 + $0x130] sm:$0xff] %vm256, 0.0
        %297 = vst.msk [vmem:[#allocation2 + $0x138] sm:$0x1] %vm260, 0.0
        %298 = vst.msk [vmem:[#allocation2 + $0x140] sm:$0xff] %vm256, 0.0
        %299 = vst.msk [vmem:[#allocation2 + $0x148] sm:$0xff] %vm256, 0.0
        %300 = vst.msk [vmem:[#allocation2 + $0x150] sm:$0xff] %vm256, 0.0
        %301 = vst.msk [vmem:[#allocation2 + $0x158] sm:$0x1] %vm260, 0.0
        %302 = vst.msk [vmem:[#allocation2 + $0x160] sm:$0xff] %vm256, 0.0
        %303 = vst.msk [vmem:[#allocation2 + $0x168] sm:$0xff] %vm256, 0.0
        %304 = vst.msk [vmem:[#allocation2 + $0x170] sm:$0xff] %vm256, 0.0
        %305 = vst.msk [vmem:[#allocation2 + $0x178] sm:$0x1] %vm260, 0.0
        %306 = vst.msk [vmem:[#allocation2 + $0x180] sm:$0xff] %vm256, 0.0
        %307 = vst.msk [vmem:[#allocation2 + $0x188] sm:$0xff] %vm256, 0.0
        %308 = vst.msk [vmem:[#allocation2 + $0x190] sm:$0xff] %vm256, 0.0
        %309 = vst.msk [vmem:[#allocation2 + $0x198] sm:$0x1] %vm260, 0.0
        %310 = vst.msk [vmem:[#allocation2 + $0x1a0] sm:$0xff] %vm256, 0.0
        %311 = vst.msk [vmem:[#allocation2 + $0x1a8] sm:$0xff] %vm256, 0.0
        %312 = vst.msk [vmem:[#allocation2 + $0x1b0] sm:$0xff] %vm256, 0.0
        %313 = vst.msk [vmem:[#allocation2 + $0x1b8] sm:$0x1] %vm260, 0.0
        %314 = vst.msk [vmem:[#allocation2 + $0x1c0] sm:$0xff] %vm256, 0.0
        %315 = vst.msk [vmem:[#allocation2 + $0x1c8] sm:$0xff] %vm256, 0.0
        %316 = vst.msk [vmem:[#allocation2 + $0x1d0] sm:$0xff] %vm256, 0.0
        %317 = vst.msk [vmem:[#allocation2 + $0x1d8] sm:$0x1] %vm260, 0.0
        %318 = vst.msk [vmem:[#allocation2 + $0x1e0] sm:$0xff] %vm256, 0.0
        %319 = vst.msk [vmem:[#allocation2 + $0x1e8] sm:$0xff] %vm256, 0.0
        %320 = vst.msk [vmem:[#allocation2 + $0x1f0] sm:$0xff] %vm256, 0.0
        %321 = vst.msk [vmem:[#allocation2 + $0x1f8] sm:$0x1] %vm260, 0.0
        %322 = vst.msk [vmem:[#allocation2 + $0x200] sm:$0xff] %vm256, 0.0
        %323 = vst.msk [vmem:[#allocation2 + $0x208] sm:$0xff] %vm256, 0.0
        %324 = vst.msk [vmem:[#allocation2 + $0x210] sm:$0xff] %vm256, 0.0
        %325 = vst.msk [vmem:[#allocation2 + $0x218] sm:$0x1] %vm260, 0.0
        %326 = vst.msk [vmem:[#allocation2 + $0x220] sm:$0xff] %vm256, 0.0
        %327 = vst.msk [vmem:[#allocation2 + $0x228] sm:$0xff] %vm256, 0.0
        %328 = vst.msk [vmem:[#allocation2 + $0x230] sm:$0xff] %vm256, 0.0
        %329 = vst.msk [vmem:[#allocation2 + $0x238] sm:$0x1] %vm260, 0.0
        %330 = vst.msk [vmem:[#allocation2 + $0x240] sm:$0xff] %vm256, 0.0
        %331 = vst.msk [vmem:[#allocation2 + $0x248] sm:$0xff] %vm256, 0.0
        %332 = vst.msk [vmem:[#allocation2 + $0x250] sm:$0xff] %vm256, 0.0
        %333 = vst.msk [vmem:[#allocation2 + $0x258] sm:$0x1] %vm260, 0.0
        %334 = vst.msk [vmem:[#allocation2 + $0x260] sm:$0xff] %vm256, 0.0
        %335 = vst.msk [vmem:[#allocation2 + $0x268] sm:$0xff] %vm256, 0.0
        %336 = vst.msk [vmem:[#allocation2 + $0x270] sm:$0xff] %vm256, 0.0
        %337 = vst.msk [vmem:[#allocation2 + $0x278] sm:$0x1] %vm260, 0.0
        %338 = vst.msk [vmem:[#allocation2 + $0x280] sm:$0xff] %vm256, 0.0
        %339 = vst.msk [vmem:[#allocation2 + $0x288] sm:$0xff] %vm256, 0.0
        %340 = vst.msk [vmem:[#allocation2 + $0x290] sm:$0xff] %vm256, 0.0
        %341 = vst.msk [vmem:[#allocation2 + $0x298] sm:$0x1] %vm260, 0.0
        %342 = vst.msk [vmem:[#allocation2 + $0x2a0] sm:$0xff] %vm256, 0.0
        %343 = vst.msk [vmem:[#allocation2 + $0x2a8] sm:$0xff] %vm256, 0.0
        %344 = vst.msk [vmem:[#allocation2 + $0x2b0] sm:$0xff] %vm256, 0.0
        %345 = vst.msk [vmem:[#allocation2 + $0x2b8] sm:$0x1] %vm260, 0.0
        %346 = vst.msk [vmem:[#allocation2 + $0x2c0] sm:$0xff] %vm256, 0.0
        %347 = vst.msk [vmem:[#allocation2 + $0x2c8] sm:$0xff] %vm256, 0.0
        %348 = vst.msk [vmem:[#allocation2 + $0x2d0] sm:$0xff] %vm256, 0.0
        %349 = vst.msk [vmem:[#allocation2 + $0x2d8] sm:$0x1] %vm260, 0.0
        %350 = vst.msk [vmem:[#allocation2 + $0x2e0] sm:$0xff] %vm256, 0.0
        %351 = vst.msk [vmem:[#allocation2 + $0x2e8] sm:$0xff] %vm256, 0.0
        %352 = vst.msk [vmem:[#allocation2 + $0x2f0] sm:$0xff] %vm256, 0.0
        %353 = vst.msk [vmem:[#allocation2 + $0x2f8] sm:$0x1] %vm260, 0.0
        %354 = vst.msk [vmem:[#allocation2 + $0x300] sm:$0xff] %vm256, 0.0
        %355 = vst.msk [vmem:[#allocation2 + $0x308] sm:$0xff] %vm256, 0.0
        %356 = vst.msk [vmem:[#allocation2 + $0x310] sm:$0xff] %vm256, 0.0
        %357 = vst.msk [vmem:[#allocation2 + $0x318] sm:$0x1] %vm260, 0.0
        %s358 = scalar_lea.vmem [#allocation2], 256
        %359 = vst.msk [vmem:[%s358 + $0x8] sm:$0xff] %vm256, %v224
        %360 = vst.msk [vmem:[%s358 + $0x10] sm:$0xff] %vm256, %v225
        %361 = vst.msk [vmem:[%s358 + $0x28] sm:$0xff] %vm256, %v226
        %362 = vst.msk [vmem:[%s358 + $0x30] sm:$0xff] %vm256, %v227
        %363 = vst.msk [vmem:[%s358 + $0x48] sm:$0xff] %vm256, %v228
        %364 = vst.msk [vmem:[%s358 + $0x50] sm:$0xff] %vm256, %v229
        %365 = vst.msk [vmem:[%s358 + $0x68] sm:$0xff] %vm256, %v230
        %366 = vst.msk [vmem:[%s358 + $0x70] sm:$0xff] %vm256, %v231
        %367 = vst.msk [vmem:[%s358 + $0x88] sm:$0xff] %vm256, %v232
        %368 = vst.msk [vmem:[%s358 + $0x90] sm:$0xff] %vm256, %v233
        %369 = vst.msk [vmem:[%s358 + $0xa8] sm:$0xff] %vm256, %v234
        %370 = vst.msk [vmem:[%s358 + $0xb0] sm:$0xff] %vm256, %v235
        %371 = vst.msk [vmem:[%s358 + $0xc8] sm:$0xff] %vm256, %v236
        %372 = vst.msk [vmem:[%s358 + $0xd0] sm:$0xff] %vm256, %v237
        %373 = vst.msk [vmem:[%s358 + $0xe8] sm:$0xff] %vm256, %v238
        %374 = vst.msk [vmem:[%s358 + $0xf0] sm:$0xff] %vm256, %v239
        %375 = vst.msk [vmem:[%s358 + $0x108] sm:$0xff] %vm256, %v240
        %376 = vst.msk [vmem:[%s358 + $0x110] sm:$0xff] %vm256, %v241
        %377 = vst.msk [vmem:[%s358 + $0x128] sm:$0xff] %vm256, %v242
        %378 = vst.msk [vmem:[%s358 + $0x130] sm:$0xff] %vm256, %v243
        %379 = vst.msk [vmem:[%s358 + $0x148] sm:$0xff] %vm256, %v244
        %380 = vst.msk [vmem:[%s358 + $0x150] sm:$0xff] %vm256, %v245
        %381 = vst.msk [vmem:[%s358 + $0x168] sm:$0xff] %vm256, %v246
        %382 = vst.msk [vmem:[%s358 + $0x170] sm:$0xff] %vm256, %v247
        %383 = vst.msk [vmem:[%s358 + $0x188] sm:$0xff] %vm256, %v248
        %384 = vst.msk [vmem:[%s358 + $0x190] sm:$0xff] %vm256, %v249
        %385 = vst.msk [vmem:[%s358 + $0x1a8] sm:$0xff] %vm256, %v250
        %386 = vst.msk [vmem:[%s358 + $0x1b0] sm:$0xff] %vm256, %v251
        %387 = vst.msk [vmem:[%s358 + $0x1c8] sm:$0xff] %vm256, %v252
        %388 = vst.msk [vmem:[%s358 + $0x1d0] sm:$0xff] %vm256, %v253
        %389 = vst.msk [vmem:[%s358 + $0x1e8] sm:$0xff] %vm256, %v254
        %390 = vst.msk [vmem:[%s358 + $0x1f0] sm:$0xff] %vm256, %v255
        %v391 = vld [vmem:[%s1] sm:$0xf]
        %v392 = vld [vmem:[%s1 + $0x4] sm:$0xf]
        %v393 = vld [vmem:[%s1 + $0x8] sm:$0xf]
        %v394 = vld [vmem:[%s1 + $0xc] sm:$0xf]
        %v395 = vld [vmem:[%s1 + $0x10] sm:$0xf]
        %v396 = vld [vmem:[%s1 + $0x14] sm:$0xf]
        %v397 = vld [vmem:[%s1 + $0x18] sm:$0xf]
        %v398 = vld [vmem:[%s1 + $0x1c] sm:$0xf]
        %v399 = vld [vmem:[%s1 + $0x20] sm:$0xf]
        %v400 = vld [vmem:[%s1 + $0x24] sm:$0xf]
        %v401 = vld [vmem:[%s1 + $0x28] sm:$0xf]
        %v402 = vld [vmem:[%s1 + $0x2c] sm:$0xf]
        %v403 = vld [vmem:[%s1 + $0x30] sm:$0xf]
        %v404 = vld [vmem:[%s1 + $0x34] sm:$0xf]
        %v405 = vld [vmem:[%s1 + $0x38] sm:$0xf]
        %v406 = vld [vmem:[%s1 + $0x3c] sm:$0xf]
        %v407 = vld [vmem:[%s1 + $0x40] sm:$0xf]
        %v408 = vld [vmem:[%s1 + $0x44] sm:$0xf]
        %v409 = vld [vmem:[%s1 + $0x48] sm:$0xf]
        %v410 = vld [vmem:[%s1 + $0x4c] sm:$0xf]
        %v411 = vld [vmem:[%s1 + $0x50] sm:$0xf]
        %v412 = vld [vmem:[%s1 + $0x54] sm:$0xf]
        %v413 = vld [vmem:[%s1 + $0x58] sm:$0xf]
        %v414 = vld [vmem:[%s1 + $0x5c] sm:$0xf]
        %v415 = vld [vmem:[%s1 + $0x60] sm:$0xf]
        %v416 = vld [vmem:[%s1 + $0x64] sm:$0xf]
        %v417 = vld [vmem:[%s1 + $0x68] sm:$0xf]
        %v418 = vld [vmem:[%s1 + $0x6c] sm:$0xf]
        %v419 = vld [vmem:[%s1 + $0x70] sm:$0xf]
        %v420 = vld [vmem:[%s1 + $0x74] sm:$0xf]
        %v421 = vld [vmem:[%s1 + $0x78] sm:$0xf]
        %v422 = vld [vmem:[%s1 + $0x7c] sm:$0xf]
        %v423 = vld [vmem:[%s1 + $0x80] sm:$0xf]
        %v424 = vld [vmem:[%s1 + $0x84] sm:$0xf]
        %v425 = vld [vmem:[%s1 + $0x88] sm:$0xf]
        %v426 = vld [vmem:[%s1 + $0x8c] sm:$0xf]
        %s427 = scalar_lea.vmem [#allocation2], 224
        %v428 = vld [vmem:[%s427 + $0x7] sm:$0xff]
        %v429 = vld [vmem:[%s427 + $0xf] sm:$0xff]
        %v430 = vld [vmem:[%s427 + $0x27] sm:$0xff]
        %v431 = vld [vmem:[%s427 + $0x2f] sm:$0xff]
        %v432 = vld [vmem:[%s427 + $0x47] sm:$0xff]
        %v433 = vld [vmem:[%s427 + $0x4f] sm:$0xff]
        %v434 = vld [vmem:[%s427 + $0x67] sm:$0xff]
        %v435 = vld [vmem:[%s427 + $0x6f] sm:$0xff]
        %v436 = vld [vmem:[%s427 + $0x87] sm:$0xff]
        %v437 = vld [vmem:[%s427 + $0x8f] sm:$0xff]
        %v438 = vld [vmem:[%s427 + $0xa7] sm:$0xff]
        %v439 = vld [vmem:[%s427 + $0xaf] sm:$0xff]
        %v440 = vld [vmem:[%s427 + $0xc7] sm:$0xff]
        %v441 = vld [vmem:[%s427 + $0xcf] sm:$0xff]
        %v442 = vld [vmem:[%s427 + $0xe7] sm:$0xff]
        %v443 = vld [vmem:[%s427 + $0xef] sm:$0xff]
        %v444 = vld [vmem:[%s427 + $0x107] sm:$0xff]
        %v445 = vld [vmem:[%s427 + $0x10f] sm:$0xff]
        %v446 = vld [vmem:[%s427 + $0x127] sm:$0xff]
        %v447 = vld [vmem:[%s427 + $0x12f] sm:$0xff]
        %v448 = vld [vmem:[%s427 + $0x147] sm:$0xff]
        %v449 = vld [vmem:[%s427 + $0x14f] sm:$0xff]
        %v450 = vld [vmem:[%s427 + $0x167] sm:$0xff]
        %v451 = vld [vmem:[%s427 + $0x16f] sm:$0xff]
        %v452 = vld [vmem:[%s427 + $0x187] sm:$0xff]
        %v453 = vld [vmem:[%s427 + $0x18f] sm:$0xff]
        %v454 = vld [vmem:[%s427 + $0x1a7] sm:$0xff]
        %v455 = vld [vmem:[%s427 + $0x1af] sm:$0xff]
        %v456 = vld [vmem:[%s427 + $0x1c7] sm:$0xff]
        %v457 = vld [vmem:[%s427 + $0x1cf] sm:$0xff]
        %v458 = vld [vmem:[%s427 + $0x1e7] sm:$0xff]
        %v459 = vld [vmem:[%s427 + $0x1ef] sm:$0xff]
        %v460 = vpack.c.bf16 %v429, %v428
        %v461 = vpack.c.bf16 %v431, %v430
        %v462 = vpack.c.bf16 %v433, %v432
        %v463 = vpack.c.bf16 %v435, %v434
        %v464 = vpack.c.bf16 %v437, %v436
        %v465 = vpack.c.bf16 %v439, %v438
        %v466 = vpack.c.bf16 %v441, %v440
        %v467 = vpack.c.bf16 %v443, %v442
        %v468 = vpack.c.bf16 %v445, %v444
        %v469 = vpack.c.bf16 %v447, %v446
        %v470 = vpack.c.bf16 %v449, %v448
        %v471 = vpack.c.bf16 %v451, %v450
        %v472 = vpack.c.bf16 %v453, %v452
        %v473 = vpack.c.bf16 %v455, %v454
        %v474 = vpack.c.bf16 %v457, %v456
        %v475 = vpack.c.bf16 %v459, %v458
        %v476 = vld [vmem:[%s427 + $0x8] sm:$0xff]
        %v477 = vld [vmem:[%s427 + $0x10] sm:$0xff]
        %v478 = vld [vmem:[%s427 + $0x28] sm:$0xff]
        %v479 = vld [vmem:[%s427 + $0x30] sm:$0xff]
        %v480 = vld [vmem:[%s427 + $0x48] sm:$0xff]
        %v481 = vld [vmem:[%s427 + $0x50] sm:$0xff]
        %v482 = vld [vmem:[%s427 + $0x68] sm:$0xff]
        %v483 = vld [vmem:[%s427 + $0x70] sm:$0xff]
        %v484 = vld [vmem:[%s427 + $0x88] sm:$0xff]
        %v485 = vld [vmem:[%s427 + $0x90] sm:$0xff]
        %v486 = vld [vmem:[%s427 + $0xa8] sm:$0xff]
        %v487 = vld [vmem:[%s427 + $0xb0] sm:$0xff]
        %v488 = vld [vmem:[%s427 + $0xc8] sm:$0xff]
        %v489 = vld [vmem:[%s427 + $0xd0] sm:$0xff]
        %v490 = vld [vmem:[%s427 + $0xe8] sm:$0xff]
        %v491 = vld [vmem:[%s427 + $0xf0] sm:$0xff]
        %v492 = vld [vmem:[%s427 + $0x108] sm:$0xff]
        %v493 = vld [vmem:[%s427 + $0x110] sm:$0xff]
        %v494 = vld [vmem:[%s427 + $0x128] sm:$0xff]
        %v495 = vld [vmem:[%s427 + $0x130] sm:$0xff]
        %v496 = vld [vmem:[%s427 + $0x148] sm:$0xff]
        %v497 = vld [vmem:[%s427 + $0x150] sm:$0xff]
        %v498 = vld [vmem:[%s427 + $0x168] sm:$0xff]
        %v499 = vld [vmem:[%s427 + $0x170] sm:$0xff]
        %v500 = vld [vmem:[%s427 + $0x188] sm:$0xff]
        %v501 = vld [vmem:[%s427 + $0x190] sm:$0xff]
        %v502 = vld [vmem:[%s427 + $0x1a8] sm:$0xff]
        %v503 = vld [vmem:[%s427 + $0x1b0] sm:$0xff]
        %v504 = vld [vmem:[%s427 + $0x1c8] sm:$0xff]
        %v505 = vld [vmem:[%s427 + $0x1d0] sm:$0xff]
        %v506 = vld [vmem:[%s427 + $0x1e8] sm:$0xff]
        %v507 = vld [vmem:[%s427 + $0x1f0] sm:$0xff]
        %v508 = vpack.c.bf16 %v477, %v476
        %v509 = vpack.c.bf16 %v479, %v478
        %v510 = vpack.c.bf16 %v481, %v480
        %v511 = vpack.c.bf16 %v483, %v482
        %v512 = vpack.c.bf16 %v485, %v484
        %v513 = vpack.c.bf16 %v487, %v486
        %v514 = vpack.c.bf16 %v489, %v488
        %v515 = vpack.c.bf16 %v491, %v490
        %v516 = vpack.c.bf16 %v493, %v492
        %v517 = vpack.c.bf16 %v495, %v494
        %v518 = vpack.c.bf16 %v497, %v496
        %v519 = vpack.c.bf16 %v499, %v498
        %v520 = vpack.c.bf16 %v501, %v500
        %v521 = vpack.c.bf16 %v503, %v502
        %v522 = vpack.c.bf16 %v505, %v504
        %v523 = vpack.c.bf16 %v507, %v506
        %v528 = vunpack.c.l.b16 %v395
        %v529 = vunpack.c.l.b16 %v396
        %v530 = vunpack.c.l.b16 %v397
        %v531 = vunpack.c.l.b16 %v398
        %v532 = vpack.c.b16 %v529, %v528
        %v533 = vpack.c.b16 %v531, %v530
        %v537 = vsel %vm256, %v508, 0
        %v540 = vsel %vm256, %v509, 0
        %v543 = vsel %vm256, %v510, 0
        %v546 = vsel %vm256, %v511, 0
        %v549 = vsel %vm256, %v512, 0
        %v552 = vsel %vm256, %v513, 0
        %v555 = vsel %vm256, %v514, 0
        %v558 = vsel %vm256, %v515, 0
        %v561 = vsel %vm256, %v516, 0
        %v564 = vsel %vm256, %v517, 0
        %v567 = vsel %vm256, %v518, 0
        %v570 = vsel %vm256, %v519, 0
        %v573 = vsel %vm256, %v520, 0
        %v576 = vsel %vm256, %v521, 0
        %v579 = vsel %vm256, %v522, 0
        %v582 = vsel %vm256, %v523, 0
        %584 = vmatprep.subr.bf16.mxu0 0
        %585 = vmatpush1.bf16.msra.mxu0 %v532
        %586 = vmatprep.subr.bf16.mxu0 0
        %587 = vmatpush1.bf16.msra.mxu0 %v533
        %588 = vmatprep.subr.bf16.mxu0 0
        %589 = vmatpush1.bf16.msra.mxu0 0
        %590 = vmatprep.subr.bf16.mxu0 0
        %591 = vmatpush1.bf16.msra.mxu0 0
        %592 = vmatprep.subr.bf16.mxu0 0
        %593 = vmatpush1.bf16.msra.mxu0 0
        %594 = vmatprep.subr.bf16.mxu0 0
        %595 = vmatpush1.bf16.msra.mxu0 0
        %596 = vmatprep.subr.bf16.mxu0 0
        %597 = vmatpush1.bf16.msra.mxu0 0
        %598 = vmatprep.subr.bf16.mxu0 0
        %599 = vmatpush1.bf16.msra.mxu0 0
        %600 = vmatprep.subr.bf16.mxu0 0
        %601 = vmatpush1.bf16.msra.mxu0 0
        %602 = vmatprep.subr.bf16.mxu0 0
        %603 = vmatpush1.bf16.msra.mxu0 0
        %604 = vmatprep.subr.bf16.mxu0 0
        %605 = vmatpush1.bf16.msra.mxu0 0
        %606 = vmatprep.subr.bf16.mxu0 0
        %607 = vmatpush1.bf16.msra.mxu0 0
        %608 = vmatprep.subr.bf16.mxu0 0
        %609 = vmatpush1.bf16.msra.mxu0 0
        %610 = vmatprep.subr.bf16.mxu0 0
        %611 = vmatpush1.bf16.msra.mxu0 0
        %612 = vmatprep.subr.bf16.mxu0 0
        %613 = vmatpush1.bf16.msra.mxu0 0
        %614 = vmatprep.subr.bf16.mxu0 0
        %615 = vmatpush1.bf16.msra.mxu0 0
        %616 = vmatprep.mubr.bf16.mxu0 0
        %617 = vmatmul.mubr.bf16.gmra.mrb[0].mxu0 %v537
        %v618 = vpop.f32.mrb[0].mxu0
        %v619 = vadd.f32 0.0, %v618
        %v620 = vpop.f32.mrb[0].mxu0
        %v621 = vpop.f32.mrb[0].mxu0
        %v622 = vadd.f32 0.0, %v621
        %v623 = vpop.f32.mrb[0].mxu0
        %624 = vmatprep.mubr.bf16.mxu0 0
        %625 = vmatmul.mubr.bf16.gmra.mrb[0].mxu0 %v540
        %v626 = vpop.f32.mrb[0].mxu0
        %v627 = vadd.f32 0.0, %v626
        %v628 = vpop.f32.mrb[0].mxu0
        %v629 = vpop.f32.mrb[0].mxu0
        %v630 = vadd.f32 0.0, %v629
        %v631 = vpop.f32.mrb[0].mxu0
        %632 = vmatprep.mubr.bf16.mxu0 0
        %633 = vmatmul.mubr.bf16.gmra.mrb[0].mxu0 %v543
        %v634 = vpop.f32.mrb[0].mxu0
        %v635 = vadd.f32 0.0, %v634
        %v636 = vpop.f32.mrb[0].mxu0
        %v637 = vpop.f32.mrb[0].mxu0
        %v638 = vadd.f32 0.0, %v637
        %v639 = vpop.f32.mrb[0].mxu0
        %640 = vmatprep.mubr.bf16.mxu0 0
        %641 = vmatmul.mubr.bf16.gmra.mrb[0].mxu0 %v546
        %v642 = vpop.f32.mrb[0].mxu0
        %v643 = vadd.f32 0.0, %v642
        %v644 = vpop.f32.mrb[0].mxu0
        %v645 = vpop.f32.mrb[0].mxu0
        %v646 = vadd.f32 0.0, %v645
        %v647 = vpop.f32.mrb[0].mxu0
        %648 = vmatprep.mubr.bf16.mxu0 0
        %649 = vmatmul.mubr.bf16.gmra.mrb[0].mxu0 %v549
        %v650 = vpop.f32.mrb[0].mxu0
        %v651 = vadd.f32 0.0, %v650
        %v652 = vpop.f32.mrb[0].mxu0
        %v653 = vpop.f32.mrb[0].mxu0
        %v654 = vadd.f32 0.0, %v653
        %v655 = vpop.f32.mrb[0].mxu0
        %656 = vmatprep.mubr.bf16.mxu0 0
        %657 = vmatmul.mubr.bf16.gmra.mrb[0].mxu0 %v552
        %v658 = vpop.f32.mrb[0].mxu0
        %v659 = vadd.f32 0.0, %v658
        %v660 = vpop.f32.mrb[0].mxu0
        %v661 = vpop.f32.mrb[0].mxu0
        %v662 = vadd.f32 0.0, %v661
        %v663 = vpop.f32.mrb[0].mxu0
        %664 = vmatprep.mubr.bf16.mxu0 0
        %665 = vmatmul.mubr.bf16.gmra.mrb[0].mxu0 %v555
        %v666 = vpop.f32.mrb[0].mxu0
        %v667 = vadd.f32 0.0, %v666
        %v668 = vpop.f32.mrb[0].mxu0
        %v669 = vpop.f32.mrb[0].mxu0
        %v670 = vadd.f32 0.0, %v669
        %v671 = vpop.f32.mrb[0].mxu0
        %672 = vmatprep.mubr.bf16.mxu0 0
        %673 = vmatmul.mubr.bf16.gmra.mrb[0].mxu0 %v558
        %v674 = vpop.f32.mrb[0].mxu0
        %v675 = vadd.f32 0.0, %v674
        %v676 = vpop.f32.mrb[0].mxu0
        %v677 = vpop.f32.mrb[0].mxu0
        %v678 = vadd.f32 0.0, %v677
        %v679 = vpop.f32.mrb[0].mxu0
        %680 = vmatprep.mubr.bf16.mxu0 0
        %681 = vmatmul.mubr.bf16.gmra.mrb[0].mxu0 %v561
        %v682 = vpop.f32.mrb[0].mxu0
        %v683 = vadd.f32 0.0, %v682
        %v684 = vpop.f32.mrb[0].mxu0
        %v685 = vpop.f32.mrb[0].mxu0
        %v686 = vadd.f32 0.0, %v685
        %v687 = vpop.f32.mrb[0].mxu0
        %688 = vmatprep.mubr.bf16.mxu0 0
        %689 = vmatmul.mubr.bf16.gmra.mrb[0].mxu0 %v564
        %v690 = vpop.f32.mrb[0].mxu0
        %v691 = vadd.f32 0.0, %v690
        %v692 = vpop.f32.mrb[0].mxu0
        %v693 = vpop.f32.mrb[0].mxu0
        %v694 = vadd.f32 0.0, %v693
        %v695 = vpop.f32.mrb[0].mxu0
        %696 = vmatprep.mubr.bf16.mxu0 0
        %697 = vmatmul.mubr.bf16.gmra.mrb[0].mxu0 %v567
        %v698 = vpop.f32.mrb[0].mxu0
        %v699 = vadd.f32 0.0, %v698
        %v700 = vpop.f32.mrb[0].mxu0
        %v701 = vpop.f32.mrb[0].mxu0
        %v702 = vadd.f32 0.0, %v701
        %v703 = vpop.f32.mrb[0].mxu0
        %704 = vmatprep.mubr.bf16.mxu0 0
        %705 = vmatmul.mubr.bf16.gmra.mrb[0].mxu0 %v570
        %v706 = vpop.f32.mrb[0].mxu0
        %v707 = vadd.f32 0.0, %v706
        %v708 = vpop.f32.mrb[0].mxu0
        %v709 = vpop.f32.mrb[0].mxu0
        %v710 = vadd.f32 0.0, %v709
        %v711 = vpop.f32.mrb[0].mxu0
        %712 = vmatprep.mubr.bf16.mxu0 0
        %713 = vmatmul.mubr.bf16.gmra.mrb[0].mxu0 %v573
        %v714 = vpop.f32.mrb[0].mxu0
        %v715 = vadd.f32 0.0, %v714
        %v716 = vpop.f32.mrb[0].mxu0
        %v717 = vpop.f32.mrb[0].mxu0
        %v718 = vadd.f32 0.0, %v717
        %v719 = vpop.f32.mrb[0].mxu0
        %720 = vmatprep.mubr.bf16.mxu0 0
        %721 = vmatmul.mubr.bf16.gmra.mrb[0].mxu0 %v576
        %v722 = vpop.f32.mrb[0].mxu0
        %v723 = vadd.f32 0.0, %v722
        %v724 = vpop.f32.mrb[0].mxu0
        %v725 = vpop.f32.mrb[0].mxu0
        %v726 = vadd.f32 0.0, %v725
        %v727 = vpop.f32.mrb[0].mxu0
        %728 = vmatprep.mubr.bf16.mxu0 0
        %729 = vmatmul.mubr.bf16.gmra.mrb[0].mxu0 %v579
        %v730 = vpop.f32.mrb[0].mxu0
        %v731 = vadd.f32 0.0, %v730
        %v732 = vpop.f32.mrb[0].mxu0
        %v733 = vpop.f32.mrb[0].mxu0
        %v734 = vadd.f32 0.0, %v733
        %v735 = vpop.f32.mrb[0].mxu0
        %736 = vmatprep.mubr.bf16.mxu0 0
        %737 = vmatmul.mubr.bf16.gmra.mrb[0].mxu0 %v582
        %v738 = vpop.f32.mrb[0].mxu0
        %v739 = vadd.f32 0.0, %v738
        %v740 = vpop.f32.mrb[0].mxu0
        %v741 = vpop.f32.mrb[0].mxu0
        %v742 = vadd.f32 0.0, %v741
        %v743 = vpop.f32.mrb[0].mxu0
        %744 = vdwg.mxu0
        %v749 = vunpack.c.l.b16 %v391
        %v750 = vunpack.c.l.b16 %v392
        %v751 = vunpack.c.l.b16 %v393
        %v752 = vunpack.c.l.b16 %v394
        %v753 = vpack.c.b16 %v750, %v749
        %v754 = vpack.c.b16 %v752, %v751
        %v758 = vsel %vm256, %v460, 0
        %v761 = vsel %vm256, %v461, 0
        %v764 = vsel %vm256, %v462, 0
        %v767 = vsel %vm256, %v463, 0
        %v770 = vsel %vm256, %v464, 0
        %v773 = vsel %vm256, %v465, 0
        %v776 = vsel %vm256, %v466, 0
        %v779 = vsel %vm256, %v467, 0
        %v782 = vsel %vm256, %v468, 0
        %v785 = vsel %vm256, %v469, 0
        %v788 = vsel %vm256, %v470, 0
        %v791 = vsel %vm256, %v471, 0
        %v794 = vsel %vm256, %v472, 0
        %v797 = vsel %vm256, %v473, 0
        %v800 = vsel %vm256, %v474, 0
        %v803 = vsel %vm256, %v475, 0
        %805 = vmatprep.subr.bf16.mxu0 0
        %806 = vmatpush1.bf16.msra.mxu0 %v753
        %807 = vmatprep.subr.bf16.mxu0 0
        %808 = vmatpush1.bf16.msra.mxu0 %v754
        %809 = vmatprep.subr.bf16.mxu0 0
        %810 = vmatpush1.bf16.msra.mxu0 0
        %811 = vmatprep.subr.bf16.mxu0 0
        %812 = vmatpush1.bf16.msra.mxu0 0
        %813 = vmatprep.subr.bf16.mxu0 0
        %814 = vmatpush1.bf16.msra.mxu0 0
        %815 = vmatprep.subr.bf16.mxu0 0
        %816 = vmatpush1.bf16.msra.mxu0 0
        %817 = vmatprep.subr.bf16.mxu0 0
        %818 = vmatpush1.bf16.msra.mxu0 0
        %819 = vmatprep.subr.bf16.mxu0 0
        %820 = vmatpush1.bf16.msra.mxu0 0
        %821 = vmatprep.subr.bf16.mxu0 0
        %822 = vmatpush1.bf16.msra.mxu0 0
        %823 = vmatprep.subr.bf16.mxu0 0
        %824 = vmatpush1.bf16.msra.mxu0 0
        %825 = vmatprep.subr.bf16.mxu0 0
        %826 = vmatpush1.bf16.msra.mxu0 0
        %827 = vmatprep.subr.bf16.mxu0 0
        %828 = vmatpush1.bf16.msra.mxu0 0
        %829 = vmatprep.subr.bf16.mxu0 0
        %830 = vmatpush1.bf16.msra.mxu0 0
        %831 = vmatprep.subr.bf16.mxu0 0
        %832 = vmatpush1.bf16.msra.mxu0 0
        %833 = vmatprep.subr.bf16.mxu0 0
        %834 = vmatpush1.bf16.msra.mxu0 0
        %835 = vmatprep.subr.bf16.mxu0 0
        %836 = vmatpush1.bf16.msra.mxu0 0
        %837 = vmatprep.mubr.bf16.mxu0 0
        %838 = vmatmul.mubr.bf16.gmra.mrb[0].mxu0 %v758
        %v839 = vpop.f32.mrb[0].mxu0
        %v840 = vadd.f32 %v619, %v839
        %v841 = vpop.f32.mrb[0].mxu0
        %v842 = vpop.f32.mrb[0].mxu0
        %v843 = vadd.f32 %v622, %v842
        %v844 = vpop.f32.mrb[0].mxu0
        %845 = vmatprep.mubr.bf16.mxu0 0
        %846 = vmatmul.mubr.bf16.gmra.mrb[0].mxu0 %v761
        %v847 = vpop.f32.mrb[0].mxu0
        %v848 = vadd.f32 %v627, %v847
        %v849 = vpop.f32.mrb[0].mxu0
        %v850 = vpop.f32.mrb[0].mxu0
        %v851 = vadd.f32 %v630, %v850
        %v852 = vpop.f32.mrb[0].mxu0
        %853 = vmatprep.mubr.bf16.mxu0 0
        %854 = vmatmul.mubr.bf16.gmra.mrb[0].mxu0 %v764
        %v855 = vpop.f32.mrb[0].mxu0
        %v856 = vadd.f32 %v635, %v855
        %v857 = vpop.f32.mrb[0].mxu0
        %v858 = vpop.f32.mrb[0].mxu0
        %v859 = vadd.f32 %v638, %v858
        %v860 = vpop.f32.mrb[0].mxu0
        %861 = vmatprep.mubr.bf16.mxu0 0
        %862 = vmatmul.mubr.bf16.gmra.mrb[0].mxu0 %v767
        %v863 = vpop.f32.mrb[0].mxu0
        %v864 = vadd.f32 %v643, %v863
        %v865 = vpop.f32.mrb[0].mxu0
        %v866 = vpop.f32.mrb[0].mxu0
        %v867 = vadd.f32 %v646, %v866
        %v868 = vpop.f32.mrb[0].mxu0
        %869 = vmatprep.mubr.bf16.mxu0 0
        %870 = vmatmul.mubr.bf16.gmra.mrb[0].mxu0 %v770
        %v871 = vpop.f32.mrb[0].mxu0
        %v872 = vadd.f32 %v651, %v871
        %v873 = vpop.f32.mrb[0].mxu0
        %v874 = vpop.f32.mrb[0].mxu0
        %v875 = vadd.f32 %v654, %v874
        %v876 = vpop.f32.mrb[0].mxu0
        %877 = vmatprep.mubr.bf16.mxu0 0
        %878 = vmatmul.mubr.bf16.gmra.mrb[0].mxu0 %v773
        %v879 = vpop.f32.mrb[0].mxu0
        %v880 = vadd.f32 %v659, %v879
        %v881 = vpop.f32.mrb[0].mxu0
        %v882 = vpop.f32.mrb[0].mxu0
        %v883 = vadd.f32 %v662, %v882
        %v884 = vpop.f32.mrb[0].mxu0
        %885 = vmatprep.mubr.bf16.mxu0 0
        %886 = vmatmul.mubr.bf16.gmra.mrb[0].mxu0 %v776
        %v887 = vpop.f32.mrb[0].mxu0
        %v888 = vadd.f32 %v667, %v887
        %v889 = vpop.f32.mrb[0].mxu0
        %v890 = vpop.f32.mrb[0].mxu0
        %v891 = vadd.f32 %v670, %v890
        %v892 = vpop.f32.mrb[0].mxu0
        %893 = vmatprep.mubr.bf16.mxu0 0
        %894 = vmatmul.mubr.bf16.gmra.mrb[0].mxu0 %v779
        %v895 = vpop.f32.mrb[0].mxu0
        %v896 = vadd.f32 %v675, %v895
        %v897 = vpop.f32.mrb[0].mxu0
        %v898 = vpop.f32.mrb[0].mxu0
        %v899 = vadd.f32 %v678, %v898
        %v900 = vpop.f32.mrb[0].mxu0
        %901 = vmatprep.mubr.bf16.mxu0 0
        %902 = vmatmul.mubr.bf16.gmra.mrb[0].mxu0 %v782
        %v903 = vpop.f32.mrb[0].mxu0
        %v904 = vadd.f32 %v683, %v903
        %v905 = vpop.f32.mrb[0].mxu0
        %v906 = vpop.f32.mrb[0].mxu0
        %v907 = vadd.f32 %v686, %v906
        %v908 = vpop.f32.mrb[0].mxu0
        %909 = vmatprep.mubr.bf16.mxu0 0
        %910 = vmatmul.mubr.bf16.gmra.mrb[0].mxu0 %v785
        %v911 = vpop.f32.mrb[0].mxu0
        %v912 = vadd.f32 %v691, %v911
        %v913 = vpop.f32.mrb[0].mxu0
        %v914 = vpop.f32.mrb[0].mxu0
        %v915 = vadd.f32 %v694, %v914
        %v916 = vpop.f32.mrb[0].mxu0
        %917 = vmatprep.mubr.bf16.mxu0 0
        %918 = vmatmul.mubr.bf16.gmra.mrb[0].mxu0 %v788
        %v919 = vpop.f32.mrb[0].mxu0
        %v920 = vadd.f32 %v699, %v919
        %v921 = vpop.f32.mrb[0].mxu0
        %v922 = vpop.f32.mrb[0].mxu0
        %v923 = vadd.f32 %v702, %v922
        %v924 = vpop.f32.mrb[0].mxu0
        %925 = vmatprep.mubr.bf16.mxu0 0
        %926 = vmatmul.mubr.bf16.gmra.mrb[0].mxu0 %v791
        %v927 = vpop.f32.mrb[0].mxu0
        %v928 = vadd.f32 %v707, %v927
        %v929 = vpop.f32.mrb[0].mxu0
        %v930 = vpop.f32.mrb[0].mxu0
        %v931 = vadd.f32 %v710, %v930
        %v932 = vpop.f32.mrb[0].mxu0
        %933 = vmatprep.mubr.bf16.mxu0 0
        %934 = vmatmul.mubr.bf16.gmra.mrb[0].mxu0 %v794
        %v935 = vpop.f32.mrb[0].mxu0
        %v936 = vadd.f32 %v715, %v935
        %v937 = vpop.f32.mrb[0].mxu0
        %v938 = vpop.f32.mrb[0].mxu0
        %v939 = vadd.f32 %v718, %v938
        %v940 = vpop.f32.mrb[0].mxu0
        %941 = vmatprep.mubr.bf16.mxu0 0
        %942 = vmatmul.mubr.bf16.gmra.mrb[0].mxu0 %v797
        %v943 = vpop.f32.mrb[0].mxu0
        %v944 = vadd.f32 %v723, %v943
        %v945 = vpop.f32.mrb[0].mxu0
        %v946 = vpop.f32.mrb[0].mxu0
        %v947 = vadd.f32 %v726, %v946
        %v948 = vpop.f32.mrb[0].mxu0
        %949 = vmatprep.mubr.bf16.mxu0 0
        %950 = vmatmul.mubr.bf16.gmra.mrb[0].mxu0 %v800
        %v951 = vpop.f32.mrb[0].mxu0
        %v952 = vadd.f32 %v731, %v951
        %v953 = vpop.f32.mrb[0].mxu0
        %v954 = vpop.f32.mrb[0].mxu0
        %v955 = vadd.f32 %v734, %v954
        %v956 = vpop.f32.mrb[0].mxu0
        %957 = vmatprep.mubr.bf16.mxu0 0
        %958 = vmatmul.mubr.bf16.gmra.mrb[0].mxu0 %v803
        %v959 = vpop.f32.mrb[0].mxu0
        %v960 = vadd.f32 %v739, %v959
        %v961 = vpop.f32.mrb[0].mxu0
        %v962 = vpop.f32.mrb[0].mxu0
        %v963 = vadd.f32 %v742, %v962
        %v964 = vpop.f32.mrb[0].mxu0
        %965 = vdwg.mxu0
        %v966 = vld [vmem:[%s427 + $0x9] sm:$0xff]
        %v967 = vld [vmem:[%s427 + $0x11] sm:$0xff]
        %v968 = vld [vmem:[%s427 + $0x29] sm:$0xff]
        %v969 = vld [vmem:[%s427 + $0x31] sm:$0xff]
        %v970 = vld [vmem:[%s427 + $0x49] sm:$0xff]
        %v971 = vld [vmem:[%s427 + $0x51] sm:$0xff]
        %v972 = vld [vmem:[%s427 + $0x69] sm:$0xff]
        %v973 = vld [vmem:[%s427 + $0x71] sm:$0xff]
        %v974 = vld [vmem:[%s427 + $0x89] sm:$0xff]
        %v975 = vld [vmem:[%s427 + $0x91] sm:$0xff]
        %v976 = vld [vmem:[%s427 + $0xa9] sm:$0xff]
        %v977 = vld [vmem:[%s427 + $0xb1] sm:$0xff]
        %v978 = vld [vmem:[%s427 + $0xc9] sm:$0xff]
        %v979 = vld [vmem:[%s427 + $0xd1] sm:$0xff]
        %v980 = vld [vmem:[%s427 + $0xe9] sm:$0xff]
        %v981 = vld [vmem:[%s427 + $0xf1] sm:$0xff]
        %v982 = vld [vmem:[%s427 + $0x109] sm:$0xff]
        %v983 = vld [vmem:[%s427 + $0x111] sm:$0xff]
        %v984 = vld [vmem:[%s427 + $0x129] sm:$0xff]
        %v985 = vld [vmem:[%s427 + $0x131] sm:$0xff]
        %v986 = vld [vmem:[%s427 + $0x149] sm:$0xff]
        %v987 = vld [vmem:[%s427 + $0x151] sm:$0xff]
        %v988 = vld [vmem:[%s427 + $0x169] sm:$0xff]
        %v989 = vld [vmem:[%s427 + $0x171] sm:$0xff]
        %v990 = vld [vmem:[%s427 + $0x189] sm:$0xff]
        %v991 = vld [vmem:[%s427 + $0x191] sm:$0xff]
        %v992 = vld [vmem:[%s427 + $0x1a9] sm:$0xff]
        %v993 = vld [vmem:[%s427 + $0x1b1] sm:$0xff]
        %v994 = vld [vmem:[%s427 + $0x1c9] sm:$0xff]
        %v995 = vld [vmem:[%s427 + $0x1d1] sm:$0xff]
        %v996 = vld [vmem:[%s427 + $0x1e9] sm:$0xff]
        %v997 = vld [vmem:[%s427 + $0x1f1] sm:$0xff]
        %v998 = vpack.c.bf16 %v967, %v966
        %v999 = vpack.c.bf16 %v969, %v968
        %v1000 = vpack.c.bf16 %v971, %v970
        %v1001 = vpack.c.bf16 %v973, %v972
        %v1002 = vpack.c.bf16 %v975, %v974
        %v1003 = vpack.c.bf16 %v977, %v976
        %v1004 = vpack.c.bf16 %v979, %v978
        %v1005 = vpack.c.bf16 %v981, %v980
        %v1006 = vpack.c.bf16 %v983, %v982
        %v1007 = vpack.c.bf16 %v985, %v984
        %v1008 = vpack.c.bf16 %v987, %v986
        %v1009 = vpack.c.bf16 %v989, %v988
        %v1010 = vpack.c.bf16 %v991, %v990
        %v1011 = vpack.c.bf16 %v993, %v992
        %v1012 = vpack.c.bf16 %v995, %v994
        %v1013 = vpack.c.bf16 %v997, %v996
        %v1018 = vunpack.c.l.b16 %v399
        %v1019 = vunpack.c.l.b16 %v400
        %v1020 = vunpack.c.l.b16 %v401
        %v1021 = vunpack.c.l.b16 %v402
        %v1022 = vpack.c.b16 %v1019, %v1018
        %v1023 = vpack.c.b16 %v1021, %v1020
        %v1027 = vsel %vm256, %v998, 0
        %v1030 = vsel %vm256, %v999, 0
        %v1033 = vsel %vm256, %v1000, 0
        %v1036 = vsel %vm256, %v1001, 0
        %v1039 = vsel %vm256, %v1002, 0
        %v1042 = vsel %vm256, %v1003, 0
        %v1045 = vsel %vm256, %v1004, 0
        %v1048 = vsel %vm256, %v1005, 0
        %v1051 = vsel %vm256, %v1006, 0
        %v1054 = vsel %vm256, %v1007, 0
        %v1057 = vsel %vm256, %v1008, 0
        %v1060 = vsel %vm256, %v1009, 0
        %v1063 = vsel %vm256, %v1010, 0
        %v1066 = vsel %vm256, %v1011, 0
        %v1069 = vsel %vm256, %v1012, 0
        %v1072 = vsel %vm256, %v1013, 0
        %1074 = vmatprep.subr.bf16.mxu0 0
        %1075 = vmatpush1.bf16.msra.mxu0 %v1022
        %1076 = vmatprep.subr.bf16.mxu0 0
        %1077 = vmatpush1.bf16.msra.mxu0 %v1023
        %1078 = vmatprep.subr.bf16.mxu0 0
        %1079 = vmatpush1.bf16.msra.mxu0 0
        %1080 = vmatprep.subr.bf16.mxu0 0
        %1081 = vmatpush1.bf16.msra.mxu0 0
        %1082 = vmatprep.subr.bf16.mxu0 0
        %1083 = vmatpush1.bf16.msra.mxu0 0
        %1084 = vmatprep.subr.bf16.mxu0 0
        %1085 = vmatpush1.bf16.msra.mxu0 0
        %1086 = vmatprep.subr.bf16.mxu0 0
        %1087 = vmatpush1.bf16.msra.mxu0 0
        %1088 = vmatprep.subr.bf16.mxu0 0
        %1089 = vmatpush1.bf16.msra.mxu0 0
        %1090 = vmatprep.subr.bf16.mxu0 0
        %1091 = vmatpush1.bf16.msra.mxu0 0
        %1092 = vmatprep.subr.bf16.mxu0 0
        %1093 = vmatpush1.bf16.msra.mxu0 0
        %1094 = vmatprep.subr.bf16.mxu0 0
        %1095 = vmatpush1.bf16.msra.mxu0 0
        %1096 = vmatprep.subr.bf16.mxu0 0
        %1097 = vmatpush1.bf16.msra.mxu0 0
        %1098 = vmatprep.subr.bf16.mxu0 0
        %1099 = vmatpush1.bf16.msra.mxu0 0
        %1100 = vmatprep.subr.bf16.mxu0 0
        %1101 = vmatpush1.bf16.msra.mxu0 0
        %1102 = vmatprep.subr.bf16.mxu0 0
        %1103 = vmatpush1.bf16.msra.mxu0 0
        %1104 = vmatprep.subr.bf16.mxu0 0
        %1105 = vmatpush1.bf16.msra.mxu0 0
        %1106 = vmatprep.mubr.bf16.mxu0 0
        %1107 = vmatmul.mubr.bf16.gmra.mrb[0].mxu0 %v1027
        %v1108 = vpop.f32.mrb[0].mxu0
        %v1109 = vadd.f32 0.0, %v1108
        %v1110 = vpop.f32.mrb[0].mxu0
        %v1111 = vpop.f32.mrb[0].mxu0
        %v1112 = vadd.f32 0.0, %v1111
        %v1113 = vpop.f32.mrb[0].mxu0
        %1114 = vmatprep.mubr.bf16.mxu0 0
        %1115 = vmatmul.mubr.bf16.gmra.mrb[0].mxu0 %v1030
        %v1116 = vpop.f32.mrb[0].mxu0
        %v1117 = vadd.f32 0.0, %v1116
        %v1118 = vpop.f32.mrb[0].mxu0
        %v1119 = vpop.f32.mrb[0].mxu0
        %v1120 = vadd.f32 0.0, %v1119
        %v1121 = vpop.f32.mrb[0].mxu0
        %1122 = vmatprep.mubr.bf16.mxu0 0
        %1123 = vmatmul.mubr.bf16.gmra.mrb[0].mxu0 %v1033
        %v1124 = vpop.f32.mrb[0].mxu0
        %v1125 = vadd.f32 0.0, %v1124
        %v1126 = vpop.f32.mrb[0].mxu0
        %v1127 = vpop.f32.mrb[0].mxu0
        %v1128 = vadd.f32 0.0, %v1127
        %v1129 = vpop.f32.mrb[0].mxu0
        %1130 = vmatprep.mubr.bf16.mxu0 0
        %1131 = vmatmul.mubr.bf16.gmra.mrb[0].mxu0 %v1036
        %v1132 = vpop.f32.mrb[0].mxu0
        %v1133 = vadd.f32 0.0, %v1132
        %v1134 = vpop.f32.mrb[0].mxu0
        %v1135 = vpop.f32.mrb[0].mxu0
        %v1136 = vadd.f32 0.0, %v1135
        %v1137 = vpop.f32.mrb[0].mxu0
        %1138 = vmatprep.mubr.bf16.mxu0 0
        %1139 = vmatmul.mubr.bf16.gmra.mrb[0].mxu0 %v1039
        %v1140 = vpop.f32.mrb[0].mxu0
        %v1141 = vadd.f32 0.0, %v1140
        %v1142 = vpop.f32.mrb[0].mxu0
        %v1143 = vpop.f32.mrb[0].mxu0
        %v1144 = vadd.f32 0.0, %v1143
        %v1145 = vpop.f32.mrb[0].mxu0
        %1146 = vmatprep.mubr.bf16.mxu0 0
        %1147 = vmatmul.mubr.bf16.gmra.mrb[0].mxu0 %v1042
        %v1148 = vpop.f32.mrb[0].mxu0
        %v1149 = vadd.f32 0.0, %v1148
        %v1150 = vpop.f32.mrb[0].mxu0
        %v1151 = vpop.f32.mrb[0].mxu0
        %v1152 = vadd.f32 0.0, %v1151
        %v1153 = vpop.f32.mrb[0].mxu0
        %1154 = vmatprep.mubr.bf16.mxu0 0
        %1155 = vmatmul.mubr.bf16.gmra.mrb[0].mxu0 %v1045
        %v1156 = vpop.f32.mrb[0].mxu0
        %v1157 = vadd.f32 0.0, %v1156
        %v1158 = vpop.f32.mrb[0].mxu0
        %v1159 = vpop.f32.mrb[0].mxu0
        %v1160 = vadd.f32 0.0, %v1159
        %v1161 = vpop.f32.mrb[0].mxu0
        %1162 = vmatprep.mubr.bf16.mxu0 0
        %1163 = vmatmul.mubr.bf16.gmra.mrb[0].mxu0 %v1048
        %v1164 = vpop.f32.mrb[0].mxu0
        %v1165 = vadd.f32 0.0, %v1164
        %v1166 = vpop.f32.mrb[0].mxu0
        %v1167 = vpop.f32.mrb[0].mxu0
        %v1168 = vadd.f32 0.0, %v1167
        %v1169 = vpop.f32.mrb[0].mxu0
        %1170 = vmatprep.mubr.bf16.mxu0 0
        %1171 = vmatmul.mubr.bf16.gmra.mrb[0].mxu0 %v1051
        %v1172 = vpop.f32.mrb[0].mxu0
        %v1173 = vadd.f32 0.0, %v1172
        %v1174 = vpop.f32.mrb[0].mxu0
        %v1175 = vpop.f32.mrb[0].mxu0
        %v1176 = vadd.f32 0.0, %v1175
        %v1177 = vpop.f32.mrb[0].mxu0
        %1178 = vmatprep.mubr.bf16.mxu0 0
        %1179 = vmatmul.mubr.bf16.gmra.mrb[0].mxu0 %v1054
        %v1180 = vpop.f32.mrb[0].mxu0
        %v1181 = vadd.f32 0.0, %v1180
        %v1182 = vpop.f32.mrb[0].mxu0
        %v1183 = vpop.f32.mrb[0].mxu0
        %v1184 = vadd.f32 0.0, %v1183
        %v1185 = vpop.f32.mrb[0].mxu0
        %1186 = vmatprep.mubr.bf16.mxu0 0
        %1187 = vmatmul.mubr.bf16.gmra.mrb[0].mxu0 %v1057
        %v1188 = vpop.f32.mrb[0].mxu0
        %v1189 = vadd.f32 0.0, %v1188
        %v1190 = vpop.f32.mrb[0].mxu0
        %v1191 = vpop.f32.mrb[0].mxu0
        %v1192 = vadd.f32 0.0, %v1191
        %v1193 = vpop.f32.mrb[0].mxu0
        %1194 = vmatprep.mubr.bf16.mxu0 0
        %1195 = vmatmul.mubr.bf16.gmra.mrb[0].mxu0 %v1060
        %v1196 = vpop.f32.mrb[0].mxu0
        %v1197 = vadd.f32 0.0, %v1196
        %v1198 = vpop.f32.mrb[0].mxu0
        %v1199 = vpop.f32.mrb[0].mxu0
        %v1200 = vadd.f32 0.0, %v1199
        %v1201 = vpop.f32.mrb[0].mxu0
        %1202 = vmatprep.mubr.bf16.mxu0 0
        %1203 = vmatmul.mubr.bf16.gmra.mrb[0].mxu0 %v1063
        %v1204 = vpop.f32.mrb[0].mxu0
        %v1205 = vadd.f32 0.0, %v1204
        %v1206 = vpop.f32.mrb[0].mxu0
        %v1207 = vpop.f32.mrb[0].mxu0
        %v1208 = vadd.f32 0.0, %v1207
        %v1209 = vpop.f32.mrb[0].mxu0
        %1210 = vmatprep.mubr.bf16.mxu0 0
        %1211 = vmatmul.mubr.bf16.gmra.mrb[0].mxu0 %v1066
        %v1212 = vpop.f32.mrb[0].mxu0
        %v1213 = vadd.f32 0.0, %v1212
        %v1214 = vpop.f32.mrb[0].mxu0
        %v1215 = vpop.f32.mrb[0].mxu0
        %v1216 = vadd.f32 0.0, %v1215
        %v1217 = vpop.f32.mrb[0].mxu0
        %1218 = vmatprep.mubr.bf16.mxu0 0
        %1219 = vmatmul.mubr.bf16.gmra.mrb[0].mxu0 %v1069
        %v1220 = vpop.f32.mrb[0].mxu0
        %v1221 = vadd.f32 0.0, %v1220
        %v1222 = vpop.f32.mrb[0].mxu0
        %v1223 = vpop.f32.mrb[0].mxu0
        %v1224 = vadd.f32 0.0, %v1223
        %v1225 = vpop.f32.mrb[0].mxu0
        %1226 = vmatprep.mubr.bf16.mxu0 0
        %1227 = vmatmul.mubr.bf16.gmra.mrb[0].mxu0 %v1072
        %v1228 = vpop.f32.mrb[0].mxu0
        %v1229 = vadd.f32 0.0, %v1228
        %v1230 = vpop.f32.mrb[0].mxu0
        %v1231 = vpop.f32.mrb[0].mxu0
        %v1232 = vadd.f32 0.0, %v1231
        %v1233 = vpop.f32.mrb[0].mxu0
        %1234 = vdwg.mxu0
        %v1235 = vadd.f32 %v840, %v1109
        %v1236 = vadd.f32 %v843, %v1112
        %v1237 = vadd.f32 %v848, %v1117
        %v1238 = vadd.f32 %v851, %v1120
        %v1239 = vadd.f32 %v856, %v1125
        %v1240 = vadd.f32 %v859, %v1128
        %v1241 = vadd.f32 %v864, %v1133
        %v1242 = vadd.f32 %v867, %v1136
        %v1243 = vadd.f32 %v872, %v1141
        %v1244 = vadd.f32 %v875, %v1144
        %v1245 = vadd.f32 %v880, %v1149
        %v1246 = vadd.f32 %v883, %v1152
        %v1247 = vadd.f32 %v888, %v1157
        %v1248 = vadd.f32 %v891, %v1160
        %v1249 = vadd.f32 %v896, %v1165
        %v1250 = vadd.f32 %v899, %v1168
        %v1251 = vadd.f32 %v904, %v1173
        %v1252 = vadd.f32 %v907, %v1176
        %v1253 = vadd.f32 %v912, %v1181
        %v1254 = vadd.f32 %v915, %v1184
        %v1255 = vadd.f32 %v920, %v1189
        %v1256 = vadd.f32 %v923, %v1192
        %v1257 = vadd.f32 %v928, %v1197
        %v1258 = vadd.f32 %v931, %v1200
        %v1259 = vadd.f32 %v936, %v1205
        %v1260 = vadd.f32 %v939, %v1208
        %v1261 = vadd.f32 %v944, %v1213
        %v1262 = vadd.f32 %v947, %v1216
        %v1263 = vadd.f32 %v952, %v1221
        %v1264 = vadd.f32 %v955, %v1224
        %v1265 = vadd.f32 %v960, %v1229
        %v1266 = vadd.f32 %v963, %v1232
        %v1267 = vld [vmem:[%s358 + $0x7] sm:$0xff]
        %v1268 = vld [vmem:[%s358 + $0xf] sm:$0xff]
        %v1269 = vld [vmem:[%s358 + $0x27] sm:$0xff]
        %v1270 = vld [vmem:[%s358 + $0x2f] sm:$0xff]
        %v1271 = vld [vmem:[%s358 + $0x47] sm:$0xff]
        %v1272 = vld [vmem:[%s358 + $0x4f] sm:$0xff]
        %v1273 = vld [vmem:[%s358 + $0x67] sm:$0xff]
        %v1274 = vld [vmem:[%s358 + $0x6f] sm:$0xff]
        %v1275 = vld [vmem:[%s358 + $0x87] sm:$0xff]
        %v1276 = vld [vmem:[%s358 + $0x8f] sm:$0xff]
        %v1277 = vld [vmem:[%s358 + $0xa7] sm:$0xff]
        %v1278 = vld [vmem:[%s358 + $0xaf] sm:$0xff]
        %v1279 = vld [vmem:[%s358 + $0xc7] sm:$0xff]
        %v1280 = vld [vmem:[%s358 + $0xcf] sm:$0xff]
        %v1281 = vld [vmem:[%s358 + $0xe7] sm:$0xff]
        %v1282 = vld [vmem:[%s358 + $0xef] sm:$0xff]
        %v1283 = vld [vmem:[%s358 + $0x107] sm:$0xff]
        %v1284 = vld [vmem:[%s358 + $0x10f] sm:$0xff]
        %v1285 = vld [vmem:[%s358 + $0x127] sm:$0xff]
        %v1286 = vld [vmem:[%s358 + $0x12f] sm:$0xff]
        %v1287 = vld [vmem:[%s358 + $0x147] sm:$0xff]
        %v1288 = vld [vmem:[%s358 + $0x14f] sm:$0xff]
        %v1289 = vld [vmem:[%s358 + $0x167] sm:$0xff]
        %v1290 = vld [vmem:[%s358 + $0x16f] sm:$0xff]
        %v1291 = vld [vmem:[%s358 + $0x187] sm:$0xff]
        %v1292 = vld [vmem:[%s358 + $0x18f] sm:$0xff]
        %v1293 = vld [vmem:[%s358 + $0x1a7] sm:$0xff]
        %v1294 = vld [vmem:[%s358 + $0x1af] sm:$0xff]
        %v1295 = vld [vmem:[%s358 + $0x1c7] sm:$0xff]
        %v1296 = vld [vmem:[%s358 + $0x1cf] sm:$0xff]
        %v1297 = vld [vmem:[%s358 + $0x1e7] sm:$0xff]
        %v1298 = vld [vmem:[%s358 + $0x1ef] sm:$0xff]
        %v1299 = vpack.c.bf16 %v1268, %v1267
        %v1300 = vpack.c.bf16 %v1270, %v1269
        %v1301 = vpack.c.bf16 %v1272, %v1271
        %v1302 = vpack.c.bf16 %v1274, %v1273
        %v1303 = vpack.c.bf16 %v1276, %v1275
        %v1304 = vpack.c.bf16 %v1278, %v1277
        %v1305 = vpack.c.bf16 %v1280, %v1279
        %v1306 = vpack.c.bf16 %v1282, %v1281
        %v1307 = vpack.c.bf16 %v1284, %v1283
        %v1308 = vpack.c.bf16 %v1286, %v1285
        %v1309 = vpack.c.bf16 %v1288, %v1287
        %v1310 = vpack.c.bf16 %v1290, %v1289
        %v1311 = vpack.c.bf16 %v1292, %v1291
        %v1312 = vpack.c.bf16 %v1294, %v1293
        %v1313 = vpack.c.bf16 %v1296, %v1295
        %v1314 = vpack.c.bf16 %v1298, %v1297
        %v1319 = vunpack.c.l.b16 %v403
        %v1320 = vunpack.c.l.b16 %v404
        %v1321 = vunpack.c.l.b16 %v405
        %v1322 = vunpack.c.l.b16 %v406
        %v1323 = vpack.c.b16 %v1320, %v1319
        %v1324 = vpack.c.b16 %v1322, %v1321
        %v1328 = vsel %vm256, %v1299, 0
        %v1331 = vsel %vm256, %v1300, 0
        %v1334 = vsel %vm256, %v1301, 0
        %v1337 = vsel %vm256, %v1302, 0
        %v1340 = vsel %vm256, %v1303, 0
        %v1343 = vsel %vm256, %v1304, 0
        %v1346 = vsel %vm256, %v1305, 0
        %v1349 = vsel %vm256, %v1306, 0
        %v1352 = vsel %vm256, %v1307, 0
        %v1355 = vsel %vm256, %v1308, 0
        %v1358 = vsel %vm256, %v1309, 0
        %v1361 = vsel %vm256, %v1310, 0
        %v1364 = vsel %vm256, %v1311, 0
        %v1367 = vsel %vm256, %v1312, 0
        %v1370 = vsel %vm256, %v1313, 0
        %v1373 = vsel %vm256, %v1314, 0
        %1375 = vmatprep.subr.bf16.mxu0 0
        %1376 = vmatpush1.bf16.msra.mxu0 %v1323
        %1377 = vmatprep.subr.bf16.mxu0 0
        %1378 = vmatpush1.bf16.msra.mxu0 %v1324
        %1379 = vmatprep.subr.bf16.mxu0 0
        %1380 = vmatpush1.bf16.msra.mxu0 0
        %1381 = vmatprep.subr.bf16.mxu0 0
        %1382 = vmatpush1.bf16.msra.mxu0 0
        %1383 = vmatprep.subr.bf16.mxu0 0
        %1384 = vmatpush1.bf16.msra.mxu0 0
        %1385 = vmatprep.subr.bf16.mxu0 0
        %1386 = vmatpush1.bf16.msra.mxu0 0
        %1387 = vmatprep.subr.bf16.mxu0 0
        %1388 = vmatpush1.bf16.msra.mxu0 0
        %1389 = vmatprep.subr.bf16.mxu0 0
        %1390 = vmatpush1.bf16.msra.mxu0 0
        %1391 = vmatprep.subr.bf16.mxu0 0
        %1392 = vmatpush1.bf16.msra.mxu0 0
        %1393 = vmatprep.subr.bf16.mxu0 0
        %1394 = vmatpush1.bf16.msra.mxu0 0
        %1395 = vmatprep.subr.bf16.mxu0 0
        %1396 = vmatpush1.bf16.msra.mxu0 0
        %1397 = vmatprep.subr.bf16.mxu0 0
        %1398 = vmatpush1.bf16.msra.mxu0 0
        %1399 = vmatprep.subr.bf16.mxu0 0
        %1400 = vmatpush1.bf16.msra.mxu0 0
        %1401 = vmatprep.subr.bf16.mxu0 0
        %1402 = vmatpush1.bf16.msra.mxu0 0
        %1403 = vmatprep.subr.bf16.mxu0 0
        %1404 = vmatpush1.bf16.msra.mxu0 0
        %1405 = vmatprep.subr.bf16.mxu0 0
        %1406 = vmatpush1.bf16.msra.mxu0 0
        %1407 = vmatprep.mubr.bf16.mxu0 0
        %1408 = vmatmul.mubr.bf16.gmra.mrb[0].mxu0 %v1328
        %v1409 = vpop.f32.mrb[0].mxu0
        %v1410 = vadd.f32 0.0, %v1409
        %v1411 = vpop.f32.mrb[0].mxu0
        %v1412 = vpop.f32.mrb[0].mxu0
        %v1413 = vadd.f32 0.0, %v1412
        %v1414 = vpop.f32.mrb[0].mxu0
        %1415 = vmatprep.mubr.bf16.mxu0 0
        %1416 = vmatmul.mubr.bf16.gmra.mrb[0].mxu0 %v1331
        %v1417 = vpop.f32.mrb[0].mxu0
        %v1418 = vadd.f32 0.0, %v1417
        %v1419 = vpop.f32.mrb[0].mxu0
        %v1420 = vpop.f32.mrb[0].mxu0
        %v1421 = vadd.f32 0.0, %v1420
        %v1422 = vpop.f32.mrb[0].mxu0
        %1423 = vmatprep.mubr.bf16.mxu0 0
        %1424 = vmatmul.mubr.bf16.gmra.mrb[0].mxu0 %v1334
        %v1425 = vpop.f32.mrb[0].mxu0
        %v1426 = vadd.f32 0.0, %v1425
        %v1427 = vpop.f32.mrb[0].mxu0
        %v1428 = vpop.f32.mrb[0].mxu0
        %v1429 = vadd.f32 0.0, %v1428
        %v1430 = vpop.f32.mrb[0].mxu0
        %1431 = vmatprep.mubr.bf16.mxu0 0
        %1432 = vmatmul.mubr.bf16.gmra.mrb[0].mxu0 %v1337
        %v1433 = vpop.f32.mrb[0].mxu0
        %v1434 = vadd.f32 0.0, %v1433
        %v1435 = vpop.f32.mrb[0].mxu0
        %v1436 = vpop.f32.mrb[0].mxu0
        %v1437 = vadd.f32 0.0, %v1436
        %v1438 = vpop.f32.mrb[0].mxu0
        %1439 = vmatprep.mubr.bf16.mxu0 0
        %1440 = vmatmul.mubr.bf16.gmra.mrb[0].mxu0 %v1340
        %v1441 = vpop.f32.mrb[0].mxu0
        %v1442 = vadd.f32 0.0, %v1441
        %v1443 = vpop.f32.mrb[0].mxu0
        %v1444 = vpop.f32.mrb[0].mxu0
        %v1445 = vadd.f32 0.0, %v1444
        %v1446 = vpop.f32.mrb[0].mxu0
        %1447 = vmatprep.mubr.bf16.mxu0 0
        %1448 = vmatmul.mubr.bf16.gmra.mrb[0].mxu0 %v1343
        %v1449 = vpop.f32.mrb[0].mxu0
        %v1450 = vadd.f32 0.0, %v1449
        %v1451 = vpop.f32.mrb[0].mxu0
        %v1452 = vpop.f32.mrb[0].mxu0
        %v1453 = vadd.f32 0.0, %v1452
        %v1454 = vpop.f32.mrb[0].mxu0
        %1455 = vmatprep.mubr.bf16.mxu0 0
        %1456 = vmatmul.mubr.bf16.gmra.mrb[0].mxu0 %v1346
        %v1457 = vpop.f32.mrb[0].mxu0
        %v1458 = vadd.f32 0.0, %v1457
        %v1459 = vpop.f32.mrb[0].mxu0
        %v1460 = vpop.f32.mrb[0].mxu0
        %v1461 = vadd.f32 0.0, %v1460
        %v1462 = vpop.f32.mrb[0].mxu0
        %1463 = vmatprep.mubr.bf16.mxu0 0
        %1464 = vmatmul.mubr.bf16.gmra.mrb[0].mxu0 %v1349
        %v1465 = vpop.f32.mrb[0].mxu0
        %v1466 = vadd.f32 0.0, %v1465
        %v1467 = vpop.f32.mrb[0].mxu0
        %v1468 = vpop.f32.mrb[0].mxu0
        %v1469 = vadd.f32 0.0, %v1468
        %v1470 = vpop.f32.mrb[0].mxu0
        %1471 = vmatprep.mubr.bf16.mxu0 0
        %1472 = vmatmul.mubr.bf16.gmra.mrb[0].mxu0 %v1352
        %v1473 = vpop.f32.mrb[0].mxu0
        %v1474 = vadd.f32 0.0, %v1473
        %v1475 = vpop.f32.mrb[0].mxu0
        %v1476 = vpop.f32.mrb[0].mxu0
        %v1477 = vadd.f32 0.0, %v1476
        %v1478 = vpop.f32.mrb[0].mxu0
        %1479 = vmatprep.mubr.bf16.mxu0 0
        %1480 = vmatmul.mubr.bf16.gmra.mrb[0].mxu0 %v1355
        %v1481 = vpop.f32.mrb[0].mxu0
        %v1482 = vadd.f32 0.0, %v1481
        %v1483 = vpop.f32.mrb[0].mxu0
        %v1484 = vpop.f32.mrb[0].mxu0
        %v1485 = vadd.f32 0.0, %v1484
        %v1486 = vpop.f32.mrb[0].mxu0
        %1487 = vmatprep.mubr.bf16.mxu0 0
        %1488 = vmatmul.mubr.bf16.gmra.mrb[0].mxu0 %v1358
        %v1489 = vpop.f32.mrb[0].mxu0
        %v1490 = vadd.f32 0.0, %v1489
        %v1491 = vpop.f32.mrb[0].mxu0
        %v1492 = vpop.f32.mrb[0].mxu0
        %v1493 = vadd.f32 0.0, %v1492
        %v1494 = vpop.f32.mrb[0].mxu0
        %1495 = vmatprep.mubr.bf16.mxu0 0
        %1496 = vmatmul.mubr.bf16.gmra.mrb[0].mxu0 %v1361
        %v1497 = vpop.f32.mrb[0].mxu0
        %v1498 = vadd.f32 0.0, %v1497
        %v1499 = vpop.f32.mrb[0].mxu0
        %v1500 = vpop.f32.mrb[0].mxu0
        %v1501 = vadd.f32 0.0, %v1500
        %v1502 = vpop.f32.mrb[0].mxu0
        %1503 = vmatprep.mubr.bf16.mxu0 0
        %1504 = vmatmul.mubr.bf16.gmra.mrb[0].mxu0 %v1364
        %v1505 = vpop.f32.mrb[0].mxu0
        %v1506 = vadd.f32 0.0, %v1505
        %v1507 = vpop.f32.mrb[0].mxu0
        %v1508 = vpop.f32.mrb[0].mxu0
        %v1509 = vadd.f32 0.0, %v1508
        %v1510 = vpop.f32.mrb[0].mxu0
        %1511 = vmatprep.mubr.bf16.mxu0 0
        %1512 = vmatmul.mubr.bf16.gmra.mrb[0].mxu0 %v1367
        %v1513 = vpop.f32.mrb[0].mxu0
        %v1514 = vadd.f32 0.0, %v1513
        %v1515 = vpop.f32.mrb[0].mxu0
        %v1516 = vpop.f32.mrb[0].mxu0
        %v1517 = vadd.f32 0.0, %v1516
        %v1518 = vpop.f32.mrb[0].mxu0
        %1519 = vmatprep.mubr.bf16.mxu0 0
        %1520 = vmatmul.mubr.bf16.gmra.mrb[0].mxu0 %v1370
        %v1521 = vpop.f32.mrb[0].mxu0
        %v1522 = vadd.f32 0.0, %v1521
        %v1523 = vpop.f32.mrb[0].mxu0
        %v1524 = vpop.f32.mrb[0].mxu0
        %v1525 = vadd.f32 0.0, %v1524
        %v1526 = vpop.f32.mrb[0].mxu0
        %1527 = vmatprep.mubr.bf16.mxu0 0
        %1528 = vmatmul.mubr.bf16.gmra.mrb[0].mxu0 %v1373
        %v1529 = vpop.f32.mrb[0].mxu0
        %v1530 = vadd.f32 0.0, %v1529
        %v1531 = vpop.f32.mrb[0].mxu0
        %v1532 = vpop.f32.mrb[0].mxu0
        %v1533 = vadd.f32 0.0, %v1532
        %v1534 = vpop.f32.mrb[0].mxu0
        %1535 = vdwg.mxu0
        %v1536 = vadd.f32 %v1235, %v1410
        %v1537 = vadd.f32 %v1236, %v1413
        %v1538 = vadd.f32 %v1237, %v1418
        %v1539 = vadd.f32 %v1238, %v1421
        %v1540 = vadd.f32 %v1239, %v1426
        %v1541 = vadd.f32 %v1240, %v1429
        %v1542 = vadd.f32 %v1241, %v1434
        %v1543 = vadd.f32 %v1242, %v1437
        %v1544 = vadd.f32 %v1243, %v1442
        %v1545 = vadd.f32 %v1244, %v1445
        %v1546 = vadd.f32 %v1245, %v1450
        %v1547 = vadd.f32 %v1246, %v1453
        %v1548 = vadd.f32 %v1247, %v1458
        %v1549 = vadd.f32 %v1248, %v1461
        %v1550 = vadd.f32 %v1249, %v1466
        %v1551 = vadd.f32 %v1250, %v1469
        %v1552 = vadd.f32 %v1251, %v1474
        %v1553 = vadd.f32 %v1252, %v1477
        %v1554 = vadd.f32 %v1253, %v1482
        %v1555 = vadd.f32 %v1254, %v1485
        %v1556 = vadd.f32 %v1255, %v1490
        %v1557 = vadd.f32 %v1256, %v1493
        %v1558 = vadd.f32 %v1257, %v1498
        %v1559 = vadd.f32 %v1258, %v1501
        %v1560 = vadd.f32 %v1259, %v1506
        %v1561 = vadd.f32 %v1260, %v1509
        %v1562 = vadd.f32 %v1261, %v1514
        %v1563 = vadd.f32 %v1262, %v1517
        %v1564 = vadd.f32 %v1263, %v1522
        %v1565 = vadd.f32 %v1264, %v1525
        %v1566 = vadd.f32 %v1265, %v1530
        %v1567 = vadd.f32 %v1266, %v1533
        %v1568 = vld [vmem:[%s358 + $0x8] sm:$0xff]
        %v1569 = vld [vmem:[%s358 + $0x10] sm:$0xff]
        %v1570 = vld [vmem:[%s358 + $0x28] sm:$0xff]
        %v1571 = vld [vmem:[%s358 + $0x30] sm:$0xff]
        %v1572 = vld [vmem:[%s358 + $0x48] sm:$0xff]
        %v1573 = vld [vmem:[%s358 + $0x50] sm:$0xff]
        %v1574 = vld [vmem:[%s358 + $0x68] sm:$0xff]
        %v1575 = vld [vmem:[%s358 + $0x70] sm:$0xff]
        %v1576 = vld [vmem:[%s358 + $0x88] sm:$0xff]
        %v1577 = vld [vmem:[%s358 + $0x90] sm:$0xff]
        %v1578 = vld [vmem:[%s358 + $0xa8] sm:$0xff]
        %v1579 = vld [vmem:[%s358 + $0xb0] sm:$0xff]
        %v1580 = vld [vmem:[%s358 + $0xc8] sm:$0xff]
        %v1581 = vld [vmem:[%s358 + $0xd0] sm:$0xff]
        %v1582 = vld [vmem:[%s358 + $0xe8] sm:$0xff]
        %v1583 = vld [vmem:[%s358 + $0xf0] sm:$0xff]
        %v1584 = vld [vmem:[%s358 + $0x108] sm:$0xff]
        %v1585 = vld [vmem:[%s358 + $0x110] sm:$0xff]
        %v1586 = vld [vmem:[%s358 + $0x128] sm:$0xff]
        %v1587 = vld [vmem:[%s358 + $0x130] sm:$0xff]
        %v1588 = vld [vmem:[%s358 + $0x148] sm:$0xff]
        %v1589 = vld [vmem:[%s358 + $0x150] sm:$0xff]
        %v1590 = vld [vmem:[%s358 + $0x168] sm:$0xff]
        %v1591 = vld [vmem:[%s358 + $0x170] sm:$0xff]
        %v1592 = vld [vmem:[%s358 + $0x188] sm:$0xff]
        %v1593 = vld [vmem:[%s358 + $0x190] sm:$0xff]
        %v1594 = vld [vmem:[%s358 + $0x1a8] sm:$0xff]
        %v1595 = vld [vmem:[%s358 + $0x1b0] sm:$0xff]
        %v1596 = vld [vmem:[%s358 + $0x1c8] sm:$0xff]
        %v1597 = vld [vmem:[%s358 + $0x1d0] sm:$0xff]
        %v1598 = vld [vmem:[%s358 + $0x1e8] sm:$0xff]
        %v1599 = vld [vmem:[%s358 + $0x1f0] sm:$0xff]
        %v1600 = vpack.c.bf16 %v1569, %v1568
        %v1601 = vpack.c.bf16 %v1571, %v1570
        %v1602 = vpack.c.bf16 %v1573, %v1572
        %v1603 = vpack.c.bf16 %v1575, %v1574
        %v1604 = vpack.c.bf16 %v1577, %v1576
        %v1605 = vpack.c.bf16 %v1579, %v1578
        %v1606 = vpack.c.bf16 %v1581, %v1580
        %v1607 = vpack.c.bf16 %v1583, %v1582
        %v1608 = vpack.c.bf16 %v1585, %v1584
        %v1609 = vpack.c.bf16 %v1587, %v1586
        %v1610 = vpack.c.bf16 %v1589, %v1588
        %v1611 = vpack.c.bf16 %v1591, %v1590
        %v1612 = vpack.c.bf16 %v1593, %v1592
        %v1613 = vpack.c.bf16 %v1595, %v1594
        %v1614 = vpack.c.bf16 %v1597, %v1596
        %v1615 = vpack.c.bf16 %v1599, %v1598
        %v1620 = vunpack.c.l.b16 %v407
        %v1621 = vunpack.c.l.b16 %v408
        %v1622 = vunpack.c.l.b16 %v409
        %v1623 = vunpack.c.l.b16 %v410
        %v1624 = vpack.c.b16 %v1621, %v1620
        %v1625 = vpack.c.b16 %v1623, %v1622
        %v1629 = vsel %vm256, %v1600, 0
        %v1632 = vsel %vm256, %v1601, 0
        %v1635 = vsel %vm256, %v1602, 0
        %v1638 = vsel %vm256, %v1603, 0
        %v1641 = vsel %vm256, %v1604, 0
        %v1644 = vsel %vm256, %v1605, 0
        %v1647 = vsel %vm256, %v1606, 0
        %v1650 = vsel %vm256, %v1607, 0
        %v1653 = vsel %vm256, %v1608, 0
        %v1656 = vsel %vm256, %v1609, 0
        %v1659 = vsel %vm256, %v1610, 0
        %v1662 = vsel %vm256, %v1611, 0
        %v1665 = vsel %vm256, %v1612, 0
        %v1668 = vsel %vm256, %v1613, 0
        %v1671 = vsel %vm256, %v1614, 0
        %v1674 = vsel %vm256, %v1615, 0
        %1676 = vmatprep.subr.bf16.mxu0 0
        %1677 = vmatpush1.bf16.msra.mxu0 %v1624
        %1678 = vmatprep.subr.bf16.mxu0 0
        %1679 = vmatpush1.bf16.msra.mxu0 %v1625
        %1680 = vmatprep.subr.bf16.mxu0 0
        %1681 = vmatpush1.bf16.msra.mxu0 0
        %1682 = vmatprep.subr.bf16.mxu0 0
        %1683 = vmatpush1.bf16.msra.mxu0 0
        %1684 = vmatprep.subr.bf16.mxu0 0
        %1685 = vmatpush1.bf16.msra.mxu0 0
        %1686 = vmatprep.subr.bf16.mxu0 0
        %1687 = vmatpush1.bf16.msra.mxu0 0
        %1688 = vmatprep.subr.bf16.mxu0 0
        %1689 = vmatpush1.bf16.msra.mxu0 0
        %1690 = vmatprep.subr.bf16.mxu0 0
        %1691 = vmatpush1.bf16.msra.mxu0 0
        %1692 = vmatprep.subr.bf16.mxu0 0
        %1693 = vmatpush1.bf16.msra.mxu0 0
        %1694 = vmatprep.subr.bf16.mxu0 0
        %1695 = vmatpush1.bf16.msra.mxu0 0
        %1696 = vmatprep.subr.bf16.mxu0 0
        %1697 = vmatpush1.bf16.msra.mxu0 0
        %1698 = vmatprep.subr.bf16.mxu0 0
        %1699 = vmatpush1.bf16.msra.mxu0 0
        %1700 = vmatprep.subr.bf16.mxu0 0
        %1701 = vmatpush1.bf16.msra.mxu0 0
        %1702 = vmatprep.subr.bf16.mxu0 0
        %1703 = vmatpush1.bf16.msra.mxu0 0
        %1704 = vmatprep.subr.bf16.mxu0 0
        %1705 = vmatpush1.bf16.msra.mxu0 0
        %1706 = vmatprep.subr.bf16.mxu0 0
        %1707 = vmatpush1.bf16.msra.mxu0 0
        %1708 = vmatprep.mubr.bf16.mxu0 0
        %1709 = vmatmul.mubr.bf16.gmra.mrb[0].mxu0 %v1629
        %v1710 = vpop.f32.mrb[0].mxu0
        %v1711 = vadd.f32 0.0, %v1710
        %v1712 = vpop.f32.mrb[0].mxu0
        %v1713 = vpop.f32.mrb[0].mxu0
        %v1714 = vadd.f32 0.0, %v1713
        %v1715 = vpop.f32.mrb[0].mxu0
        %1716 = vmatprep.mubr.bf16.mxu0 0
        %1717 = vmatmul.mubr.bf16.gmra.mrb[0].mxu0 %v1632
        %v1718 = vpop.f32.mrb[0].mxu0
        %v1719 = vadd.f32 0.0, %v1718
        %v1720 = vpop.f32.mrb[0].mxu0
        %v1721 = vpop.f32.mrb[0].mxu0
        %v1722 = vadd.f32 0.0, %v1721
        %v1723 = vpop.f32.mrb[0].mxu0
        %1724 = vmatprep.mubr.bf16.mxu0 0
        %1725 = vmatmul.mubr.bf16.gmra.mrb[0].mxu0 %v1635
        %v1726 = vpop.f32.mrb[0].mxu0
        %v1727 = vadd.f32 0.0, %v1726
        %v1728 = vpop.f32.mrb[0].mxu0
        %v1729 = vpop.f32.mrb[0].mxu0
        %v1730 = vadd.f32 0.0, %v1729
        %v1731 = vpop.f32.mrb[0].mxu0
        %1732 = vmatprep.mubr.bf16.mxu0 0
        %1733 = vmatmul.mubr.bf16.gmra.mrb[0].mxu0 %v1638
        %v1734 = vpop.f32.mrb[0].mxu0
        %v1735 = vadd.f32 0.0, %v1734
        %v1736 = vpop.f32.mrb[0].mxu0
        %v1737 = vpop.f32.mrb[0].mxu0
        %v1738 = vadd.f32 0.0, %v1737
        %v1739 = vpop.f32.mrb[0].mxu0
        %1740 = vmatprep.mubr.bf16.mxu0 0
        %1741 = vmatmul.mubr.bf16.gmra.mrb[0].mxu0 %v1641
        %v1742 = vpop.f32.mrb[0].mxu0
        %v1743 = vadd.f32 0.0, %v1742
        %v1744 = vpop.f32.mrb[0].mxu0
        %v1745 = vpop.f32.mrb[0].mxu0
        %v1746 = vadd.f32 0.0, %v1745
        %v1747 = vpop.f32.mrb[0].mxu0
        %1748 = vmatprep.mubr.bf16.mxu0 0
        %1749 = vmatmul.mubr.bf16.gmra.mrb[0].mxu0 %v1644
        %v1750 = vpop.f32.mrb[0].mxu0
        %v1751 = vadd.f32 0.0, %v1750
        %v1752 = vpop.f32.mrb[0].mxu0
        %v1753 = vpop.f32.mrb[0].mxu0
        %v1754 = vadd.f32 0.0, %v1753
        %v1755 = vpop.f32.mrb[0].mxu0
        %1756 = vmatprep.mubr.bf16.mxu0 0
        %1757 = vmatmul.mubr.bf16.gmra.mrb[0].mxu0 %v1647
        %v1758 = vpop.f32.mrb[0].mxu0
        %v1759 = vadd.f32 0.0, %v1758
        %v1760 = vpop.f32.mrb[0].mxu0
        %v1761 = vpop.f32.mrb[0].mxu0
        %v1762 = vadd.f32 0.0, %v1761
        %v1763 = vpop.f32.mrb[0].mxu0
        %1764 = vmatprep.mubr.bf16.mxu0 0
        %1765 = vmatmul.mubr.bf16.gmra.mrb[0].mxu0 %v1650
        %v1766 = vpop.f32.mrb[0].mxu0
        %v1767 = vadd.f32 0.0, %v1766
        %v1768 = vpop.f32.mrb[0].mxu0
        %v1769 = vpop.f32.mrb[0].mxu0
        %v1770 = vadd.f32 0.0, %v1769
        %v1771 = vpop.f32.mrb[0].mxu0
        %1772 = vmatprep.mubr.bf16.mxu0 0
        %1773 = vmatmul.mubr.bf16.gmra.mrb[0].mxu0 %v1653
        %v1774 = vpop.f32.mrb[0].mxu0
        %v1775 = vadd.f32 0.0, %v1774
        %v1776 = vpop.f32.mrb[0].mxu0
        %v1777 = vpop.f32.mrb[0].mxu0
        %v1778 = vadd.f32 0.0, %v1777
        %v1779 = vpop.f32.mrb[0].mxu0
        %1780 = vmatprep.mubr.bf16.mxu0 0
        %1781 = vmatmul.mubr.bf16.gmra.mrb[0].mxu0 %v1656
        %v1782 = vpop.f32.mrb[0].mxu0
        %v1783 = vadd.f32 0.0, %v1782
        %v1784 = vpop.f32.mrb[0].mxu0
        %v1785 = vpop.f32.mrb[0].mxu0
        %v1786 = vadd.f32 0.0, %v1785
        %v1787 = vpop.f32.mrb[0].mxu0
        %1788 = vmatprep.mubr.bf16.mxu0 0
        %1789 = vmatmul.mubr.bf16.gmra.mrb[0].mxu0 %v1659
        %v1790 = vpop.f32.mrb[0].mxu0
        %v1791 = vadd.f32 0.0, %v1790
        %v1792 = vpop.f32.mrb[0].mxu0
        %v1793 = vpop.f32.mrb[0].mxu0
        %v1794 = vadd.f32 0.0, %v1793
        %v1795 = vpop.f32.mrb[0].mxu0
        %1796 = vmatprep.mubr.bf16.mxu0 0
        %1797 = vmatmul.mubr.bf16.gmra.mrb[0].mxu0 %v1662
        %v1798 = vpop.f32.mrb[0].mxu0
        %v1799 = vadd.f32 0.0, %v1798
        %v1800 = vpop.f32.mrb[0].mxu0
        %v1801 = vpop.f32.mrb[0].mxu0
        %v1802 = vadd.f32 0.0, %v1801
        %v1803 = vpop.f32.mrb[0].mxu0
        %1804 = vmatprep.mubr.bf16.mxu0 0
        %1805 = vmatmul.mubr.bf16.gmra.mrb[0].mxu0 %v1665
        %v1806 = vpop.f32.mrb[0].mxu0
        %v1807 = vadd.f32 0.0, %v1806
        %v1808 = vpop.f32.mrb[0].mxu0
        %v1809 = vpop.f32.mrb[0].mxu0
        %v1810 = vadd.f32 0.0, %v1809
        %v1811 = vpop.f32.mrb[0].mxu0
        %1812 = vmatprep.mubr.bf16.mxu0 0
        %1813 = vmatmul.mubr.bf16.gmra.mrb[0].mxu0 %v1668
        %v1814 = vpop.f32.mrb[0].mxu0
        %v1815 = vadd.f32 0.0, %v1814
        %v1816 = vpop.f32.mrb[0].mxu0
        %v1817 = vpop.f32.mrb[0].mxu0
        %v1818 = vadd.f32 0.0, %v1817
        %v1819 = vpop.f32.mrb[0].mxu0
        %1820 = vmatprep.mubr.bf16.mxu0 0
        %1821 = vmatmul.mubr.bf16.gmra.mrb[0].mxu0 %v1671
        %v1822 = vpop.f32.mrb[0].mxu0
        %v1823 = vadd.f32 0.0, %v1822
        %v1824 = vpop.f32.mrb[0].mxu0
        %v1825 = vpop.f32.mrb[0].mxu0
        %v1826 = vadd.f32 0.0, %v1825
        %v1827 = vpop.f32.mrb[0].mxu0
        %1828 = vmatprep.mubr.bf16.mxu0 0
        %1829 = vmatmul.mubr.bf16.gmra.mrb[0].mxu0 %v1674
        %v1830 = vpop.f32.mrb[0].mxu0
        %v1831 = vadd.f32 0.0, %v1830
        %v1832 = vpop.f32.mrb[0].mxu0
        %v1833 = vpop.f32.mrb[0].mxu0
        %v1834 = vadd.f32 0.0, %v1833
        %v1835 = vpop.f32.mrb[0].mxu0
        %1836 = vdwg.mxu0
        %v1837 = vadd.f32 %v1536, %v1711
        %v1838 = vadd.f32 %v1537, %v1714
        %v1839 = vadd.f32 %v1538, %v1719
        %v1840 = vadd.f32 %v1539, %v1722
        %v1841 = vadd.f32 %v1540, %v1727
        %v1842 = vadd.f32 %v1541, %v1730
        %v1843 = vadd.f32 %v1542, %v1735
        %v1844 = vadd.f32 %v1543, %v1738
        %v1845 = vadd.f32 %v1544, %v1743
        %v1846 = vadd.f32 %v1545, %v1746
        %v1847 = vadd.f32 %v1546, %v1751
        %v1848 = vadd.f32 %v1547, %v1754
        %v1849 = vadd.f32 %v1548, %v1759
        %v1850 = vadd.f32 %v1549, %v1762
        %v1851 = vadd.f32 %v1550, %v1767
        %v1852 = vadd.f32 %v1551, %v1770
        %v1853 = vadd.f32 %v1552, %v1775
        %v1854 = vadd.f32 %v1553, %v1778
        %v1855 = vadd.f32 %v1554, %v1783
        %v1856 = vadd.f32 %v1555, %v1786
        %v1857 = vadd.f32 %v1556, %v1791
        %v1858 = vadd.f32 %v1557, %v1794
        %v1859 = vadd.f32 %v1558, %v1799
        %v1860 = vadd.f32 %v1559, %v1802
        %v1861 = vadd.f32 %v1560, %v1807
        %v1862 = vadd.f32 %v1561, %v1810
        %v1863 = vadd.f32 %v1562, %v1815
        %v1864 = vadd.f32 %v1563, %v1818
        %v1865 = vadd.f32 %v1564, %v1823
        %v1866 = vadd.f32 %v1565, %v1826
        %v1867 = vadd.f32 %v1566, %v1831
        %v1868 = vadd.f32 %v1567, %v1834
        %v1869 = vld [vmem:[%s358 + $0x9] sm:$0xff]
        %v1870 = vld [vmem:[%s358 + $0x11] sm:$0xff]
        %v1871 = vld [vmem:[%s358 + $0x29] sm:$0xff]
        %v1872 = vld [vmem:[%s358 + $0x31] sm:$0xff]
        %v1873 = vld [vmem:[%s358 + $0x49] sm:$0xff]
        %v1874 = vld [vmem:[%s358 + $0x51] sm:$0xff]
        %v1875 = vld [vmem:[%s358 + $0x69] sm:$0xff]
        %v1876 = vld [vmem:[%s358 + $0x71] sm:$0xff]
        %v1877 = vld [vmem:[%s358 + $0x89] sm:$0xff]
        %v1878 = vld [vmem:[%s358 + $0x91] sm:$0xff]
        %v1879 = vld [vmem:[%s358 + $0xa9] sm:$0xff]
        %v1880 = vld [vmem:[%s358 + $0xb1] sm:$0xff]
        %v1881 = vld [vmem:[%s358 + $0xc9] sm:$0xff]
        %v1882 = vld [vmem:[%s358 + $0xd1] sm:$0xff]
        %v1883 = vld [vmem:[%s358 + $0xe9] sm:$0xff]
        %v1884 = vld [vmem:[%s358 + $0xf1] sm:$0xff]
        %v1885 = vld [vmem:[%s358 + $0x109] sm:$0xff]
        %v1886 = vld [vmem:[%s358 + $0x111] sm:$0xff]
        %v1887 = vld [vmem:[%s358 + $0x129] sm:$0xff]
        %v1888 = vld [vmem:[%s358 + $0x131] sm:$0xff]
        %v1889 = vld [vmem:[%s358 + $0x149] sm:$0xff]
        %v1890 = vld [vmem:[%s358 + $0x151] sm:$0xff]
        %v1891 = vld [vmem:[%s358 + $0x169] sm:$0xff]
        %v1892 = vld [vmem:[%s358 + $0x171] sm:$0xff]
        %v1893 = vld [vmem:[%s358 + $0x189] sm:$0xff]
        %v1894 = vld [vmem:[%s358 + $0x191] sm:$0xff]
        %v1895 = vld [vmem:[%s358 + $0x1a9] sm:$0xff]
        %v1896 = vld [vmem:[%s358 + $0x1b1] sm:$0xff]
        %v1897 = vld [vmem:[%s358 + $0x1c9] sm:$0xff]
        %v1898 = vld [vmem:[%s358 + $0x1d1] sm:$0xff]
        %v1899 = vld [vmem:[%s358 + $0x1e9] sm:$0xff]
        %v1900 = vld [vmem:[%s358 + $0x1f1] sm:$0xff]
        %v1901 = vpack.c.bf16 %v1870, %v1869
        %v1902 = vpack.c.bf16 %v1872, %v1871
        %v1903 = vpack.c.bf16 %v1874, %v1873
        %v1904 = vpack.c.bf16 %v1876, %v1875
        %v1905 = vpack.c.bf16 %v1878, %v1877
        %v1906 = vpack.c.bf16 %v1880, %v1879
        %v1907 = vpack.c.bf16 %v1882, %v1881
        %v1908 = vpack.c.bf16 %v1884, %v1883
        %v1909 = vpack.c.bf16 %v1886, %v1885
        %v1910 = vpack.c.bf16 %v1888, %v1887
        %v1911 = vpack.c.bf16 %v1890, %v1889
        %v1912 = vpack.c.bf16 %v1892, %v1891
        %v1913 = vpack.c.bf16 %v1894, %v1893
        %v1914 = vpack.c.bf16 %v1896, %v1895
        %v1915 = vpack.c.bf16 %v1898, %v1897
        %v1916 = vpack.c.bf16 %v1900, %v1899
        %v1921 = vunpack.c.l.b16 %v411
        %v1922 = vunpack.c.l.b16 %v412
        %v1923 = vunpack.c.l.b16 %v413
        %v1924 = vunpack.c.l.b16 %v414
        %v1925 = vpack.c.b16 %v1922, %v1921
        %v1926 = vpack.c.b16 %v1924, %v1923
        %v1930 = vsel %vm256, %v1901, 0
        %v1933 = vsel %vm256, %v1902, 0
        %v1936 = vsel %vm256, %v1903, 0
        %v1939 = vsel %vm256, %v1904, 0
        %v1942 = vsel %vm256, %v1905, 0
        %v1945 = vsel %vm256, %v1906, 0
        %v1948 = vsel %vm256, %v1907, 0
        %v1951 = vsel %vm256, %v1908, 0
        %v1954 = vsel %vm256, %v1909, 0
        %v1957 = vsel %vm256, %v1910, 0
        %v1960 = vsel %vm256, %v1911, 0
        %v1963 = vsel %vm256, %v1912, 0
        %v1966 = vsel %vm256, %v1913, 0
        %v1969 = vsel %vm256, %v1914, 0
        %v1972 = vsel %vm256, %v1915, 0
        %v1975 = vsel %vm256, %v1916, 0
        %1977 = vmatprep.subr.bf16.mxu0 0
        %1978 = vmatpush1.bf16.msra.mxu0 %v1925
        %1979 = vmatprep.subr.bf16.mxu0 0
        %1980 = vmatpush1.bf16.msra.mxu0 %v1926
        %1981 = vmatprep.subr.bf16.mxu0 0
        %1982 = vmatpush1.bf16.msra.mxu0 0
        %1983 = vmatprep.subr.bf16.mxu0 0
        %1984 = vmatpush1.bf16.msra.mxu0 0
        %1985 = vmatprep.subr.bf16.mxu0 0
        %1986 = vmatpush1.bf16.msra.mxu0 0
        %1987 = vmatprep.subr.bf16.mxu0 0
        %1988 = vmatpush1.bf16.msra.mxu0 0
        %1989 = vmatprep.subr.bf16.mxu0 0
        %1990 = vmatpush1.bf16.msra.mxu0 0
        %1991 = vmatprep.subr.bf16.mxu0 0
        %1992 = vmatpush1.bf16.msra.mxu0 0
        %1993 = vmatprep.subr.bf16.mxu0 0
        %1994 = vmatpush1.bf16.msra.mxu0 0
        %1995 = vmatprep.subr.bf16.mxu0 0
        %1996 = vmatpush1.bf16.msra.mxu0 0
        %1997 = vmatprep.subr.bf16.mxu0 0
        %1998 = vmatpush1.bf16.msra.mxu0 0
        %1999 = vmatprep.subr.bf16.mxu0 0
        %2000 = vmatpush1.bf16.msra.mxu0 0
        %2001 = vmatprep.subr.bf16.mxu0 0
        %2002 = vmatpush1.bf16.msra.mxu0 0
        %2003 = vmatprep.subr.bf16.mxu0 0
        %2004 = vmatpush1.bf16.msra.mxu0 0
        %2005 = vmatprep.subr.bf16.mxu0 0
        %2006 = vmatpush1.bf16.msra.mxu0 0
        %2007 = vmatprep.subr.bf16.mxu0 0
        %2008 = vmatpush1.bf16.msra.mxu0 0
        %2009 = vmatprep.mubr.bf16.mxu0 0
        %2010 = vmatmul.mubr.bf16.gmra.mrb[0].mxu0 %v1930
        %v2011 = vpop.f32.mrb[0].mxu0
        %v2012 = vadd.f32 0.0, %v2011
        %v2013 = vpop.f32.mrb[0].mxu0
        %v2014 = vpop.f32.mrb[0].mxu0
        %v2015 = vadd.f32 0.0, %v2014
        %v2016 = vpop.f32.mrb[0].mxu0
        %2017 = vmatprep.mubr.bf16.mxu0 0
        %2018 = vmatmul.mubr.bf16.gmra.mrb[0].mxu0 %v1933
        %v2019 = vpop.f32.mrb[0].mxu0
        %v2020 = vadd.f32 0.0, %v2019
        %v2021 = vpop.f32.mrb[0].mxu0
        %v2022 = vpop.f32.mrb[0].mxu0
        %v2023 = vadd.f32 0.0, %v2022
        %v2024 = vpop.f32.mrb[0].mxu0
        %2025 = vmatprep.mubr.bf16.mxu0 0
        %2026 = vmatmul.mubr.bf16.gmra.mrb[0].mxu0 %v1936
        %v2027 = vpop.f32.mrb[0].mxu0
        %v2028 = vadd.f32 0.0, %v2027
        %v2029 = vpop.f32.mrb[0].mxu0
        %v2030 = vpop.f32.mrb[0].mxu0
        %v2031 = vadd.f32 0.0, %v2030
        %v2032 = vpop.f32.mrb[0].mxu0
        %2033 = vmatprep.mubr.bf16.mxu0 0
        %2034 = vmatmul.mubr.bf16.gmra.mrb[0].mxu0 %v1939
        %v2035 = vpop.f32.mrb[0].mxu0
        %v2036 = vadd.f32 0.0, %v2035
        %v2037 = vpop.f32.mrb[0].mxu0
        %v2038 = vpop.f32.mrb[0].mxu0
        %v2039 = vadd.f32 0.0, %v2038
        %v2040 = vpop.f32.mrb[0].mxu0
        %2041 = vmatprep.mubr.bf16.mxu0 0
        %2042 = vmatmul.mubr.bf16.gmra.mrb[0].mxu0 %v1942
        %v2043 = vpop.f32.mrb[0].mxu0
        %v2044 = vadd.f32 0.0, %v2043
        %v2045 = vpop.f32.mrb[0].mxu0
        %v2046 = vpop.f32.mrb[0].mxu0
        %v2047 = vadd.f32 0.0, %v2046
        %v2048 = vpop.f32.mrb[0].mxu0
        %2049 = vmatprep.mubr.bf16.mxu0 0
        %2050 = vmatmul.mubr.bf16.gmra.mrb[0].mxu0 %v1945
        %v2051 = vpop.f32.mrb[0].mxu0
        %v2052 = vadd.f32 0.0, %v2051
        %v2053 = vpop.f32.mrb[0].mxu0
        %v2054 = vpop.f32.mrb[0].mxu0
        %v2055 = vadd.f32 0.0, %v2054
        %v2056 = vpop.f32.mrb[0].mxu0
        %2057 = vmatprep.mubr.bf16.mxu0 0
        %2058 = vmatmul.mubr.bf16.gmra.mrb[0].mxu0 %v1948
        %v2059 = vpop.f32.mrb[0].mxu0
        %v2060 = vadd.f32 0.0, %v2059
        %v2061 = vpop.f32.mrb[0].mxu0
        %v2062 = vpop.f32.mrb[0].mxu0
        %v2063 = vadd.f32 0.0, %v2062
        %v2064 = vpop.f32.mrb[0].mxu0
        %2065 = vmatprep.mubr.bf16.mxu0 0
        %2066 = vmatmul.mubr.bf16.gmra.mrb[0].mxu0 %v1951
        %v2067 = vpop.f32.mrb[0].mxu0
        %v2068 = vadd.f32 0.0, %v2067
        %v2069 = vpop.f32.mrb[0].mxu0
        %v2070 = vpop.f32.mrb[0].mxu0
        %v2071 = vadd.f32 0.0, %v2070
        %v2072 = vpop.f32.mrb[0].mxu0
        %2073 = vmatprep.mubr.bf16.mxu0 0
        %2074 = vmatmul.mubr.bf16.gmra.mrb[0].mxu0 %v1954
        %v2075 = vpop.f32.mrb[0].mxu0
        %v2076 = vadd.f32 0.0, %v2075
        %v2077 = vpop.f32.mrb[0].mxu0
        %v2078 = vpop.f32.mrb[0].mxu0
        %v2079 = vadd.f32 0.0, %v2078
        %v2080 = vpop.f32.mrb[0].mxu0
        %2081 = vmatprep.mubr.bf16.mxu0 0
        %2082 = vmatmul.mubr.bf16.gmra.mrb[0].mxu0 %v1957
        %v2083 = vpop.f32.mrb[0].mxu0
        %v2084 = vadd.f32 0.0, %v2083
        %v2085 = vpop.f32.mrb[0].mxu0
        %v2086 = vpop.f32.mrb[0].mxu0
        %v2087 = vadd.f32 0.0, %v2086
        %v2088 = vpop.f32.mrb[0].mxu0
        %2089 = vmatprep.mubr.bf16.mxu0 0
        %2090 = vmatmul.mubr.bf16.gmra.mrb[0].mxu0 %v1960
        %v2091 = vpop.f32.mrb[0].mxu0
        %v2092 = vadd.f32 0.0, %v2091
        %v2093 = vpop.f32.mrb[0].mxu0
        %v2094 = vpop.f32.mrb[0].mxu0
        %v2095 = vadd.f32 0.0, %v2094
        %v2096 = vpop.f32.mrb[0].mxu0
        %2097 = vmatprep.mubr.bf16.mxu0 0
        %2098 = vmatmul.mubr.bf16.gmra.mrb[0].mxu0 %v1963
        %v2099 = vpop.f32.mrb[0].mxu0
        %v2100 = vadd.f32 0.0, %v2099
        %v2101 = vpop.f32.mrb[0].mxu0
        %v2102 = vpop.f32.mrb[0].mxu0
        %v2103 = vadd.f32 0.0, %v2102
        %v2104 = vpop.f32.mrb[0].mxu0
        %2105 = vmatprep.mubr.bf16.mxu0 0
        %2106 = vmatmul.mubr.bf16.gmra.mrb[0].mxu0 %v1966
        %v2107 = vpop.f32.mrb[0].mxu0
        %v2108 = vadd.f32 0.0, %v2107
        %v2109 = vpop.f32.mrb[0].mxu0
        %v2110 = vpop.f32.mrb[0].mxu0
        %v2111 = vadd.f32 0.0, %v2110
        %v2112 = vpop.f32.mrb[0].mxu0
        %2113 = vmatprep.mubr.bf16.mxu0 0
        %2114 = vmatmul.mubr.bf16.gmra.mrb[0].mxu0 %v1969
        %v2115 = vpop.f32.mrb[0].mxu0
        %v2116 = vadd.f32 0.0, %v2115
        %v2117 = vpop.f32.mrb[0].mxu0
        %v2118 = vpop.f32.mrb[0].mxu0
        %v2119 = vadd.f32 0.0, %v2118
        %v2120 = vpop.f32.mrb[0].mxu0
        %2121 = vmatprep.mubr.bf16.mxu0 0
        %2122 = vmatmul.mubr.bf16.gmra.mrb[0].mxu0 %v1972
        %v2123 = vpop.f32.mrb[0].mxu0
        %v2124 = vadd.f32 0.0, %v2123
        %v2125 = vpop.f32.mrb[0].mxu0
        %v2126 = vpop.f32.mrb[0].mxu0
        %v2127 = vadd.f32 0.0, %v2126
        %v2128 = vpop.f32.mrb[0].mxu0
        %2129 = vmatprep.mubr.bf16.mxu0 0
        %2130 = vmatmul.mubr.bf16.gmra.mrb[0].mxu0 %v1975
        %v2131 = vpop.f32.mrb[0].mxu0
        %v2132 = vadd.f32 0.0, %v2131
        %v2133 = vpop.f32.mrb[0].mxu0
        %v2134 = vpop.f32.mrb[0].mxu0
        %v2135 = vadd.f32 0.0, %v2134
        %v2136 = vpop.f32.mrb[0].mxu0
        %2137 = vdwg.mxu0
        %v2138 = vadd.f32 %v1837, %v2012
        %v2139 = vadd.f32 %v1838, %v2015
        %v2140 = vadd.f32 %v1839, %v2020
        %v2141 = vadd.f32 %v1840, %v2023
        %v2142 = vadd.f32 %v1841, %v2028
        %v2143 = vadd.f32 %v1842, %v2031
        %v2144 = vadd.f32 %v1843, %v2036
        %v2145 = vadd.f32 %v1844, %v2039
        %v2146 = vadd.f32 %v1845, %v2044
        %v2147 = vadd.f32 %v1846, %v2047
        %v2148 = vadd.f32 %v1847, %v2052
        %v2149 = vadd.f32 %v1848, %v2055
        %v2150 = vadd.f32 %v1849, %v2060
        %v2151 = vadd.f32 %v1850, %v2063
        %v2152 = vadd.f32 %v1851, %v2068
        %v2153 = vadd.f32 %v1852, %v2071
        %v2154 = vadd.f32 %v1853, %v2076
        %v2155 = vadd.f32 %v1854, %v2079
        %v2156 = vadd.f32 %v1855, %v2084
        %v2157 = vadd.f32 %v1856, %v2087
        %v2158 = vadd.f32 %v1857, %v2092
        %v2159 = vadd.f32 %v1858, %v2095
        %v2160 = vadd.f32 %v1859, %v2100
        %v2161 = vadd.f32 %v1860, %v2103
        %v2162 = vadd.f32 %v1861, %v2108
        %v2163 = vadd.f32 %v1862, %v2111
        %v2164 = vadd.f32 %v1863, %v2116
        %v2165 = vadd.f32 %v1864, %v2119
        %v2166 = vadd.f32 %v1865, %v2124
        %v2167 = vadd.f32 %v1866, %v2127
        %v2168 = vadd.f32 %v1867, %v2132
        %v2169 = vadd.f32 %v1868, %v2135
        %s2170 = scalar_lea.vmem [#allocation2], 288
        %v2171 = vld [vmem:[%s2170 + $0x7] sm:$0xff]
        %v2172 = vld [vmem:[%s2170 + $0xf] sm:$0xff]
        %v2173 = vld [vmem:[%s2170 + $0x27] sm:$0xff]
        %v2174 = vld [vmem:[%s2170 + $0x2f] sm:$0xff]
        %v2175 = vld [vmem:[%s2170 + $0x47] sm:$0xff]
        %v2176 = vld [vmem:[%s2170 + $0x4f] sm:$0xff]
        %v2177 = vld [vmem:[%s2170 + $0x67] sm:$0xff]
        %v2178 = vld [vmem:[%s2170 + $0x6f] sm:$0xff]
        %v2179 = vld [vmem:[%s2170 + $0x87] sm:$0xff]
        %v2180 = vld [vmem:[%s2170 + $0x8f] sm:$0xff]
        %v2181 = vld [vmem:[%s2170 + $0xa7] sm:$0xff]
        %v2182 = vld [vmem:[%s2170 + $0xaf] sm:$0xff]
        %v2183 = vld [vmem:[%s2170 + $0xc7] sm:$0xff]
        %v2184 = vld [vmem:[%s2170 + $0xcf] sm:$0xff]
        %v2185 = vld [vmem:[%s2170 + $0xe7] sm:$0xff]
        %v2186 = vld [vmem:[%s2170 + $0xef] sm:$0xff]
        %v2187 = vld [vmem:[%s2170 + $0x107] sm:$0xff]
        %v2188 = vld [vmem:[%s2170 + $0x10f] sm:$0xff]
        %v2189 = vld [vmem:[%s2170 + $0x127] sm:$0xff]
        %v2190 = vld [vmem:[%s2170 + $0x12f] sm:$0xff]
        %v2191 = vld [vmem:[%s2170 + $0x147] sm:$0xff]
        %v2192 = vld [vmem:[%s2170 + $0x14f] sm:$0xff]
        %v2193 = vld [vmem:[%s2170 + $0x167] sm:$0xff]
        %v2194 = vld [vmem:[%s2170 + $0x16f] sm:$0xff]
        %v2195 = vld [vmem:[%s2170 + $0x187] sm:$0xff]
        %v2196 = vld [vmem:[%s2170 + $0x18f] sm:$0xff]
        %v2197 = vld [vmem:[%s2170 + $0x1a7] sm:$0xff]
        %v2198 = vld [vmem:[%s2170 + $0x1af] sm:$0xff]
        %v2199 = vld [vmem:[%s2170 + $0x1c7] sm:$0xff]
        %v2200 = vld [vmem:[%s2170 + $0x1cf] sm:$0xff]
        %v2201 = vld [vmem:[%s2170 + $0x1e7] sm:$0xff]
        %v2202 = vld [vmem:[%s2170 + $0x1ef] sm:$0xff]
        %v2203 = vpack.c.bf16 %v2172, %v2171
        %v2204 = vpack.c.bf16 %v2174, %v2173
        %v2205 = vpack.c.bf16 %v2176, %v2175
        %v2206 = vpack.c.bf16 %v2178, %v2177
        %v2207 = vpack.c.bf16 %v2180, %v2179
        %v2208 = vpack.c.bf16 %v2182, %v2181
        %v2209 = vpack.c.bf16 %v2184, %v2183
        %v2210 = vpack.c.bf16 %v2186, %v2185
        %v2211 = vpack.c.bf16 %v2188, %v2187
        %v2212 = vpack.c.bf16 %v2190, %v2189
        %v2213 = vpack.c.bf16 %v2192, %v2191
        %v2214 = vpack.c.bf16 %v2194, %v2193
        %v2215 = vpack.c.bf16 %v2196, %v2195
        %v2216 = vpack.c.bf16 %v2198, %v2197
        %v2217 = vpack.c.bf16 %v2200, %v2199
        %v2218 = vpack.c.bf16 %v2202, %v2201
        %v2223 = vunpack.c.l.b16 %v415
        %v2224 = vunpack.c.l.b16 %v416
        %v2225 = vunpack.c.l.b16 %v417
        %v2226 = vunpack.c.l.b16 %v418
        %v2227 = vpack.c.b16 %v2224, %v2223
        %v2228 = vpack.c.b16 %v2226, %v2225
        %v2232 = vsel %vm256, %v2203, 0
        %v2235 = vsel %vm256, %v2204, 0
        %v2238 = vsel %vm256, %v2205, 0
        %v2241 = vsel %vm256, %v2206, 0
        %v2244 = vsel %vm256, %v2207, 0
        %v2247 = vsel %vm256, %v2208, 0
        %v2250 = vsel %vm256, %v2209, 0
        %v2253 = vsel %vm256, %v2210, 0
        %v2256 = vsel %vm256, %v2211, 0
        %v2259 = vsel %vm256, %v2212, 0
        %v2262 = vsel %vm256, %v2213, 0
        %v2265 = vsel %vm256, %v2214, 0
        %v2268 = vsel %vm256, %v2215, 0
        %v2271 = vsel %vm256, %v2216, 0
        %v2274 = vsel %vm256, %v2217, 0
        %v2277 = vsel %vm256, %v2218, 0
        %2279 = vmatprep.subr.bf16.mxu0 0
        %2280 = vmatpush1.bf16.msra.mxu0 %v2227
        %2281 = vmatprep.subr.bf16.mxu0 0
        %2282 = vmatpush1.bf16.msra.mxu0 %v2228
        %2283 = vmatprep.subr.bf16.mxu0 0
        %2284 = vmatpush1.bf16.msra.mxu0 0
        %2285 = vmatprep.subr.bf16.mxu0 0
        %2286 = vmatpush1.bf16.msra.mxu0 0
        %2287 = vmatprep.subr.bf16.mxu0 0
        %2288 = vmatpush1.bf16.msra.mxu0 0
        %2289 = vmatprep.subr.bf16.mxu0 0
        %2290 = vmatpush1.bf16.msra.mxu0 0
        %2291 = vmatprep.subr.bf16.mxu0 0
        %2292 = vmatpush1.bf16.msra.mxu0 0
        %2293 = vmatprep.subr.bf16.mxu0 0
        %2294 = vmatpush1.bf16.msra.mxu0 0
        %2295 = vmatprep.subr.bf16.mxu0 0
        %2296 = vmatpush1.bf16.msra.mxu0 0
        %2297 = vmatprep.subr.bf16.mxu0 0
        %2298 = vmatpush1.bf16.msra.mxu0 0
        %2299 = vmatprep.subr.bf16.mxu0 0
        %2300 = vmatpush1.bf16.msra.mxu0 0
        %2301 = vmatprep.subr.bf16.mxu0 0
        %2302 = vmatpush1.bf16.msra.mxu0 0
        %2303 = vmatprep.subr.bf16.mxu0 0
        %2304 = vmatpush1.bf16.msra.mxu0 0
        %2305 = vmatprep.subr.bf16.mxu0 0
        %2306 = vmatpush1.bf16.msra.mxu0 0
        %2307 = vmatprep.subr.bf16.mxu0 0
        %2308 = vmatpush1.bf16.msra.mxu0 0
        %2309 = vmatprep.subr.bf16.mxu0 0
        %2310 = vmatpush1.bf16.msra.mxu0 0
        %2311 = vmatprep.mubr.bf16.mxu0 0
        %2312 = vmatmul.mubr.bf16.gmra.mrb[0].mxu0 %v2232
        %v2313 = vpop.f32.mrb[0].mxu0
        %v2314 = vadd.f32 0.0, %v2313
        %v2315 = vpop.f32.mrb[0].mxu0
        %v2316 = vpop.f32.mrb[0].mxu0
        %v2317 = vadd.f32 0.0, %v2316
        %v2318 = vpop.f32.mrb[0].mxu0
        %2319 = vmatprep.mubr.bf16.mxu0 0
        %2320 = vmatmul.mubr.bf16.gmra.mrb[0].mxu0 %v2235
        %v2321 = vpop.f32.mrb[0].mxu0
        %v2322 = vadd.f32 0.0, %v2321
        %v2323 = vpop.f32.mrb[0].mxu0
        %v2324 = vpop.f32.mrb[0].mxu0
        %v2325 = vadd.f32 0.0, %v2324
        %v2326 = vpop.f32.mrb[0].mxu0
        %2327 = vmatprep.mubr.bf16.mxu0 0
        %2328 = vmatmul.mubr.bf16.gmra.mrb[0].mxu0 %v2238
        %v2329 = vpop.f32.mrb[0].mxu0
        %v2330 = vadd.f32 0.0, %v2329
        %v2331 = vpop.f32.mrb[0].mxu0
        %v2332 = vpop.f32.mrb[0].mxu0
        %v2333 = vadd.f32 0.0, %v2332
        %v2334 = vpop.f32.mrb[0].mxu0
        %2335 = vmatprep.mubr.bf16.mxu0 0
        %2336 = vmatmul.mubr.bf16.gmra.mrb[0].mxu0 %v2241
        %v2337 = vpop.f32.mrb[0].mxu0
        %v2338 = vadd.f32 0.0, %v2337
        %v2339 = vpop.f32.mrb[0].mxu0
        %v2340 = vpop.f32.mrb[0].mxu0
        %v2341 = vadd.f32 0.0, %v2340
        %v2342 = vpop.f32.mrb[0].mxu0
        %2343 = vmatprep.mubr.bf16.mxu0 0
        %2344 = vmatmul.mubr.bf16.gmra.mrb[0].mxu0 %v2244
        %v2345 = vpop.f32.mrb[0].mxu0
        %v2346 = vadd.f32 0.0, %v2345
        %v2347 = vpop.f32.mrb[0].mxu0
        %v2348 = vpop.f32.mrb[0].mxu0
        %v2349 = vadd.f32 0.0, %v2348
        %v2350 = vpop.f32.mrb[0].mxu0
        %2351 = vmatprep.mubr.bf16.mxu0 0
        %2352 = vmatmul.mubr.bf16.gmra.mrb[0].mxu0 %v2247
        %v2353 = vpop.f32.mrb[0].mxu0
        %v2354 = vadd.f32 0.0, %v2353
        %v2355 = vpop.f32.mrb[0].mxu0
        %v2356 = vpop.f32.mrb[0].mxu0
        %v2357 = vadd.f32 0.0, %v2356
        %v2358 = vpop.f32.mrb[0].mxu0
        %2359 = vmatprep.mubr.bf16.mxu0 0
        %2360 = vmatmul.mubr.bf16.gmra.mrb[0].mxu0 %v2250
        %v2361 = vpop.f32.mrb[0].mxu0
        %v2362 = vadd.f32 0.0, %v2361
        %v2363 = vpop.f32.mrb[0].mxu0
        %v2364 = vpop.f32.mrb[0].mxu0
        %v2365 = vadd.f32 0.0, %v2364
        %v2366 = vpop.f32.mrb[0].mxu0
        %2367 = vmatprep.mubr.bf16.mxu0 0
        %2368 = vmatmul.mubr.bf16.gmra.mrb[0].mxu0 %v2253
        %v2369 = vpop.f32.mrb[0].mxu0
        %v2370 = vadd.f32 0.0, %v2369
        %v2371 = vpop.f32.mrb[0].mxu0
        %v2372 = vpop.f32.mrb[0].mxu0
        %v2373 = vadd.f32 0.0, %v2372
        %v2374 = vpop.f32.mrb[0].mxu0
        %2375 = vmatprep.mubr.bf16.mxu0 0
        %2376 = vmatmul.mubr.bf16.gmra.mrb[0].mxu0 %v2256
        %v2377 = vpop.f32.mrb[0].mxu0
        %v2378 = vadd.f32 0.0, %v2377
        %v2379 = vpop.f32.mrb[0].mxu0
        %v2380 = vpop.f32.mrb[0].mxu0
        %v2381 = vadd.f32 0.0, %v2380
        %v2382 = vpop.f32.mrb[0].mxu0
        %2383 = vmatprep.mubr.bf16.mxu0 0
        %2384 = vmatmul.mubr.bf16.gmra.mrb[0].mxu0 %v2259
        %v2385 = vpop.f32.mrb[0].mxu0
        %v2386 = vadd.f32 0.0, %v2385
        %v2387 = vpop.f32.mrb[0].mxu0
        %v2388 = vpop.f32.mrb[0].mxu0
        %v2389 = vadd.f32 0.0, %v2388
        %v2390 = vpop.f32.mrb[0].mxu0
        %2391 = vmatprep.mubr.bf16.mxu0 0
        %2392 = vmatmul.mubr.bf16.gmra.mrb[0].mxu0 %v2262
        %v2393 = vpop.f32.mrb[0].mxu0
        %v2394 = vadd.f32 0.0, %v2393
        %v2395 = vpop.f32.mrb[0].mxu0
        %v2396 = vpop.f32.mrb[0].mxu0
        %v2397 = vadd.f32 0.0, %v2396
        %v2398 = vpop.f32.mrb[0].mxu0
        %2399 = vmatprep.mubr.bf16.mxu0 0
        %2400 = vmatmul.mubr.bf16.gmra.mrb[0].mxu0 %v2265
        %v2401 = vpop.f32.mrb[0].mxu0
        %v2402 = vadd.f32 0.0, %v2401
        %v2403 = vpop.f32.mrb[0].mxu0
        %v2404 = vpop.f32.mrb[0].mxu0
        %v2405 = vadd.f32 0.0, %v2404
        %v2406 = vpop.f32.mrb[0].mxu0
        %2407 = vmatprep.mubr.bf16.mxu0 0
        %2408 = vmatmul.mubr.bf16.gmra.mrb[0].mxu0 %v2268
        %v2409 = vpop.f32.mrb[0].mxu0
        %v2410 = vadd.f32 0.0, %v2409
        %v2411 = vpop.f32.mrb[0].mxu0
        %v2412 = vpop.f32.mrb[0].mxu0
        %v2413 = vadd.f32 0.0, %v2412
        %v2414 = vpop.f32.mrb[0].mxu0
        %2415 = vmatprep.mubr.bf16.mxu0 0
        %2416 = vmatmul.mubr.bf16.gmra.mrb[0].mxu0 %v2271
        %v2417 = vpop.f32.mrb[0].mxu0
        %v2418 = vadd.f32 0.0, %v2417
        %v2419 = vpop.f32.mrb[0].mxu0
        %v2420 = vpop.f32.mrb[0].mxu0
        %v2421 = vadd.f32 0.0, %v2420
        %v2422 = vpop.f32.mrb[0].mxu0
        %2423 = vmatprep.mubr.bf16.mxu0 0
        %2424 = vmatmul.mubr.bf16.gmra.mrb[0].mxu0 %v2274
        %v2425 = vpop.f32.mrb[0].mxu0
        %v2426 = vadd.f32 0.0, %v2425
        %v2427 = vpop.f32.mrb[0].mxu0
        %v2428 = vpop.f32.mrb[0].mxu0
        %v2429 = vadd.f32 0.0, %v2428
        %v2430 = vpop.f32.mrb[0].mxu0
        %2431 = vmatprep.mubr.bf16.mxu0 0
        %2432 = vmatmul.mubr.bf16.gmra.mrb[0].mxu0 %v2277
        %v2433 = vpop.f32.mrb[0].mxu0
        %v2434 = vadd.f32 0.0, %v2433
        %v2435 = vpop.f32.mrb[0].mxu0
        %v2436 = vpop.f32.mrb[0].mxu0
        %v2437 = vadd.f32 0.0, %v2436
        %v2438 = vpop.f32.mrb[0].mxu0
        %2439 = vdwg.mxu0
        %v2440 = vadd.f32 %v2138, %v2314
        %v2441 = vadd.f32 %v2139, %v2317
        %v2442 = vadd.f32 %v2140, %v2322
        %v2443 = vadd.f32 %v2141, %v2325
        %v2444 = vadd.f32 %v2142, %v2330
        %v2445 = vadd.f32 %v2143, %v2333
        %v2446 = vadd.f32 %v2144, %v2338
        %v2447 = vadd.f32 %v2145, %v2341
        %v2448 = vadd.f32 %v2146, %v2346
        %v2449 = vadd.f32 %v2147, %v2349
        %v2450 = vadd.f32 %v2148, %v2354
        %v2451 = vadd.f32 %v2149, %v2357
        %v2452 = vadd.f32 %v2150, %v2362
        %v2453 = vadd.f32 %v2151, %v2365
        %v2454 = vadd.f32 %v2152, %v2370
        %v2455 = vadd.f32 %v2153, %v2373
        %v2456 = vadd.f32 %v2154, %v2378
        %v2457 = vadd.f32 %v2155, %v2381
        %v2458 = vadd.f32 %v2156, %v2386
        %v2459 = vadd.f32 %v2157, %v2389
        %v2460 = vadd.f32 %v2158, %v2394
        %v2461 = vadd.f32 %v2159, %v2397
        %v2462 = vadd.f32 %v2160, %v2402
        %v2463 = vadd.f32 %v2161, %v2405
        %v2464 = vadd.f32 %v2162, %v2410
        %v2465 = vadd.f32 %v2163, %v2413
        %v2466 = vadd.f32 %v2164, %v2418
        %v2467 = vadd.f32 %v2165, %v2421
        %v2468 = vadd.f32 %v2166, %v2426
        %v2469 = vadd.f32 %v2167, %v2429
        %v2470 = vadd.f32 %v2168, %v2434
        %v2471 = vadd.f32 %v2169, %v2437
        %v2472 = vld [vmem:[%s2170 + $0x8] sm:$0xff]
        %v2473 = vld [vmem:[%s2170 + $0x10] sm:$0xff]
        %v2474 = vld [vmem:[%s2170 + $0x28] sm:$0xff]
        %v2475 = vld [vmem:[%s2170 + $0x30] sm:$0xff]
        %v2476 = vld [vmem:[%s2170 + $0x48] sm:$0xff]
        %v2477 = vld [vmem:[%s2170 + $0x50] sm:$0xff]
        %v2478 = vld [vmem:[%s2170 + $0x68] sm:$0xff]
        %v2479 = vld [vmem:[%s2170 + $0x70] sm:$0xff]
        %v2480 = vld [vmem:[%s2170 + $0x88] sm:$0xff]
        %v2481 = vld [vmem:[%s2170 + $0x90] sm:$0xff]
        %v2482 = vld [vmem:[%s2170 + $0xa8] sm:$0xff]
        %v2483 = vld [vmem:[%s2170 + $0xb0] sm:$0xff]
        %v2484 = vld [vmem:[%s2170 + $0xc8] sm:$0xff]
        %v2485 = vld [vmem:[%s2170 + $0xd0] sm:$0xff]
        %v2486 = vld [vmem:[%s2170 + $0xe8] sm:$0xff]
        %v2487 = vld [vmem:[%s2170 + $0xf0] sm:$0xff]
        %v2488 = vld [vmem:[%s2170 + $0x108] sm:$0xff]
        %v2489 = vld [vmem:[%s2170 + $0x110] sm:$0xff]
        %v2490 = vld [vmem:[%s2170 + $0x128] sm:$0xff]
        %v2491 = vld [vmem:[%s2170 + $0x130] sm:$0xff]
        %v2492 = vld [vmem:[%s2170 + $0x148] sm:$0xff]
        %v2493 = vld [vmem:[%s2170 + $0x150] sm:$0xff]
        %v2494 = vld [vmem:[%s2170 + $0x168] sm:$0xff]
        %v2495 = vld [vmem:[%s2170 + $0x170] sm:$0xff]
        %v2496 = vld [vmem:[%s2170 + $0x188] sm:$0xff]
        %v2497 = vld [vmem:[%s2170 + $0x190] sm:$0xff]
        %v2498 = vld [vmem:[%s2170 + $0x1a8] sm:$0xff]
        %v2499 = vld [vmem:[%s2170 + $0x1b0] sm:$0xff]
        %v2500 = vld [vmem:[%s2170 + $0x1c8] sm:$0xff]
        %v2501 = vld [vmem:[%s2170 + $0x1d0] sm:$0xff]
        %v2502 = vld [vmem:[%s2170 + $0x1e8] sm:$0xff]
        %v2503 = vld [vmem:[%s2170 + $0x1f0] sm:$0xff]
        %v2504 = vpack.c.bf16 %v2473, %v2472
        %v2505 = vpack.c.bf16 %v2475, %v2474
        %v2506 = vpack.c.bf16 %v2477, %v2476
        %v2507 = vpack.c.bf16 %v2479, %v2478
        %v2508 = vpack.c.bf16 %v2481, %v2480
        %v2509 = vpack.c.bf16 %v2483, %v2482
        %v2510 = vpack.c.bf16 %v2485, %v2484
        %v2511 = vpack.c.bf16 %v2487, %v2486
        %v2512 = vpack.c.bf16 %v2489, %v2488
        %v2513 = vpack.c.bf16 %v2491, %v2490
        %v2514 = vpack.c.bf16 %v2493, %v2492
        %v2515 = vpack.c.bf16 %v2495, %v2494
        %v2516 = vpack.c.bf16 %v2497, %v2496
        %v2517 = vpack.c.bf16 %v2499, %v2498
        %v2518 = vpack.c.bf16 %v2501, %v2500
        %v2519 = vpack.c.bf16 %v2503, %v2502
        %v2524 = vunpack.c.l.b16 %v419
        %v2525 = vunpack.c.l.b16 %v420
        %v2526 = vunpack.c.l.b16 %v421
        %v2527 = vunpack.c.l.b16 %v422
        %v2528 = vpack.c.b16 %v2525, %v2524
        %v2529 = vpack.c.b16 %v2527, %v2526
        %v2533 = vsel %vm256, %v2504, 0
        %v2536 = vsel %vm256, %v2505, 0
        %v2539 = vsel %vm256, %v2506, 0
        %v2542 = vsel %vm256, %v2507, 0
        %v2545 = vsel %vm256, %v2508, 0
        %v2548 = vsel %vm256, %v2509, 0
        %v2551 = vsel %vm256, %v2510, 0
        %v2554 = vsel %vm256, %v2511, 0
        %v2557 = vsel %vm256, %v2512, 0
        %v2560 = vsel %vm256, %v2513, 0
        %v2563 = vsel %vm256, %v2514, 0
        %v2566 = vsel %vm256, %v2515, 0
        %v2569 = vsel %vm256, %v2516, 0
        %v2572 = vsel %vm256, %v2517, 0
        %v2575 = vsel %vm256, %v2518, 0
        %v2578 = vsel %vm256, %v2519, 0
        %2580 = vmatprep.subr.bf16.mxu0 0
        %2581 = vmatpush1.bf16.msra.mxu0 %v2528
        %2582 = vmatprep.subr.bf16.mxu0 0
        %2583 = vmatpush1.bf16.msra.mxu0 %v2529
        %2584 = vmatprep.subr.bf16.mxu0 0
        %2585 = vmatpush1.bf16.msra.mxu0 0
        %2586 = vmatprep.subr.bf16.mxu0 0
        %2587 = vmatpush1.bf16.msra.mxu0 0
        %2588 = vmatprep.subr.bf16.mxu0 0
        %2589 = vmatpush1.bf16.msra.mxu0 0
        %2590 = vmatprep.subr.bf16.mxu0 0
        %2591 = vmatpush1.bf16.msra.mxu0 0
        %2592 = vmatprep.subr.bf16.mxu0 0
        %2593 = vmatpush1.bf16.msra.mxu0 0
        %2594 = vmatprep.subr.bf16.mxu0 0
        %2595 = vmatpush1.bf16.msra.mxu0 0
        %2596 = vmatprep.subr.bf16.mxu0 0
        %2597 = vmatpush1.bf16.msra.mxu0 0
        %2598 = vmatprep.subr.bf16.mxu0 0
        %2599 = vmatpush1.bf16.msra.mxu0 0
        %2600 = vmatprep.subr.bf16.mxu0 0
        %2601 = vmatpush1.bf16.msra.mxu0 0
        %2602 = vmatprep.subr.bf16.mxu0 0
        %2603 = vmatpush1.bf16.msra.mxu0 0
        %2604 = vmatprep.subr.bf16.mxu0 0
        %2605 = vmatpush1.bf16.msra.mxu0 0
        %2606 = vmatprep.subr.bf16.mxu0 0
        %2607 = vmatpush1.bf16.msra.mxu0 0
        %2608 = vmatprep.subr.bf16.mxu0 0
        %2609 = vmatpush1.bf16.msra.mxu0 0
        %2610 = vmatprep.subr.bf16.mxu0 0
        %2611 = vmatpush1.bf16.msra.mxu0 0
        %2612 = vmatprep.mubr.bf16.mxu0 0
        %2613 = vmatmul.mubr.bf16.gmra.mrb[0].mxu0 %v2533
        %v2614 = vpop.f32.mrb[0].mxu0
        %v2615 = vadd.f32 0.0, %v2614
        %v2616 = vpop.f32.mrb[0].mxu0
        %v2617 = vpop.f32.mrb[0].mxu0
        %v2618 = vadd.f32 0.0, %v2617
        %v2619 = vpop.f32.mrb[0].mxu0
        %2620 = vmatprep.mubr.bf16.mxu0 0
        %2621 = vmatmul.mubr.bf16.gmra.mrb[0].mxu0 %v2536
        %v2622 = vpop.f32.mrb[0].mxu0
        %v2623 = vadd.f32 0.0, %v2622
        %v2624 = vpop.f32.mrb[0].mxu0
        %v2625 = vpop.f32.mrb[0].mxu0
        %v2626 = vadd.f32 0.0, %v2625
        %v2627 = vpop.f32.mrb[0].mxu0
        %2628 = vmatprep.mubr.bf16.mxu0 0
        %2629 = vmatmul.mubr.bf16.gmra.mrb[0].mxu0 %v2539
        %v2630 = vpop.f32.mrb[0].mxu0
        %v2631 = vadd.f32 0.0, %v2630
        %v2632 = vpop.f32.mrb[0].mxu0
        %v2633 = vpop.f32.mrb[0].mxu0
        %v2634 = vadd.f32 0.0, %v2633
        %v2635 = vpop.f32.mrb[0].mxu0
        %2636 = vmatprep.mubr.bf16.mxu0 0
        %2637 = vmatmul.mubr.bf16.gmra.mrb[0].mxu0 %v2542
        %v2638 = vpop.f32.mrb[0].mxu0
        %v2639 = vadd.f32 0.0, %v2638
        %v2640 = vpop.f32.mrb[0].mxu0
        %v2641 = vpop.f32.mrb[0].mxu0
        %v2642 = vadd.f32 0.0, %v2641
        %v2643 = vpop.f32.mrb[0].mxu0
        %2644 = vmatprep.mubr.bf16.mxu0 0
        %2645 = vmatmul.mubr.bf16.gmra.mrb[0].mxu0 %v2545
        %v2646 = vpop.f32.mrb[0].mxu0
        %v2647 = vadd.f32 0.0, %v2646
        %v2648 = vpop.f32.mrb[0].mxu0
        %v2649 = vpop.f32.mrb[0].mxu0
        %v2650 = vadd.f32 0.0, %v2649
        %v2651 = vpop.f32.mrb[0].mxu0
        %2652 = vmatprep.mubr.bf16.mxu0 0
        %2653 = vmatmul.mubr.bf16.gmra.mrb[0].mxu0 %v2548
        %v2654 = vpop.f32.mrb[0].mxu0
        %v2655 = vadd.f32 0.0, %v2654
        %v2656 = vpop.f32.mrb[0].mxu0
        %v2657 = vpop.f32.mrb[0].mxu0
        %v2658 = vadd.f32 0.0, %v2657
        %v2659 = vpop.f32.mrb[0].mxu0
        %2660 = vmatprep.mubr.bf16.mxu0 0
        %2661 = vmatmul.mubr.bf16.gmra.mrb[0].mxu0 %v2551
        %v2662 = vpop.f32.mrb[0].mxu0
        %v2663 = vadd.f32 0.0, %v2662
        %v2664 = vpop.f32.mrb[0].mxu0
        %v2665 = vpop.f32.mrb[0].mxu0
        %v2666 = vadd.f32 0.0, %v2665
        %v2667 = vpop.f32.mrb[0].mxu0
        %2668 = vmatprep.mubr.bf16.mxu0 0
        %2669 = vmatmul.mubr.bf16.gmra.mrb[0].mxu0 %v2554
        %v2670 = vpop.f32.mrb[0].mxu0
        %v2671 = vadd.f32 0.0, %v2670
        %v2672 = vpop.f32.mrb[0].mxu0
        %v2673 = vpop.f32.mrb[0].mxu0
        %v2674 = vadd.f32 0.0, %v2673
        %v2675 = vpop.f32.mrb[0].mxu0
        %2676 = vmatprep.mubr.bf16.mxu0 0
        %2677 = vmatmul.mubr.bf16.gmra.mrb[0].mxu0 %v2557
        %v2678 = vpop.f32.mrb[0].mxu0
        %v2679 = vadd.f32 0.0, %v2678
        %v2680 = vpop.f32.mrb[0].mxu0
        %v2681 = vpop.f32.mrb[0].mxu0
        %v2682 = vadd.f32 0.0, %v2681
        %v2683 = vpop.f32.mrb[0].mxu0
        %2684 = vmatprep.mubr.bf16.mxu0 0
        %2685 = vmatmul.mubr.bf16.gmra.mrb[0].mxu0 %v2560
        %v2686 = vpop.f32.mrb[0].mxu0
        %v2687 = vadd.f32 0.0, %v2686
        %v2688 = vpop.f32.mrb[0].mxu0
        %v2689 = vpop.f32.mrb[0].mxu0
        %v2690 = vadd.f32 0.0, %v2689
        %v2691 = vpop.f32.mrb[0].mxu0
        %2692 = vmatprep.mubr.bf16.mxu0 0
        %2693 = vmatmul.mubr.bf16.gmra.mrb[0].mxu0 %v2563
        %v2694 = vpop.f32.mrb[0].mxu0
        %v2695 = vadd.f32 0.0, %v2694
        %v2696 = vpop.f32.mrb[0].mxu0
        %v2697 = vpop.f32.mrb[0].mxu0
        %v2698 = vadd.f32 0.0, %v2697
        %v2699 = vpop.f32.mrb[0].mxu0
        %2700 = vmatprep.mubr.bf16.mxu0 0
        %2701 = vmatmul.mubr.bf16.gmra.mrb[0].mxu0 %v2566
        %v2702 = vpop.f32.mrb[0].mxu0
        %v2703 = vadd.f32 0.0, %v2702
        %v2704 = vpop.f32.mrb[0].mxu0
        %v2705 = vpop.f32.mrb[0].mxu0
        %v2706 = vadd.f32 0.0, %v2705
        %v2707 = vpop.f32.mrb[0].mxu0
        %2708 = vmatprep.mubr.bf16.mxu0 0
        %2709 = vmatmul.mubr.bf16.gmra.mrb[0].mxu0 %v2569
        %v2710 = vpop.f32.mrb[0].mxu0
        %v2711 = vadd.f32 0.0, %v2710
        %v2712 = vpop.f32.mrb[0].mxu0
        %v2713 = vpop.f32.mrb[0].mxu0
        %v2714 = vadd.f32 0.0, %v2713
        %v2715 = vpop.f32.mrb[0].mxu0
        %2716 = vmatprep.mubr.bf16.mxu0 0
        %2717 = vmatmul.mubr.bf16.gmra.mrb[0].mxu0 %v2572
        %v2718 = vpop.f32.mrb[0].mxu0
        %v2719 = vadd.f32 0.0, %v2718
        %v2720 = vpop.f32.mrb[0].mxu0
        %v2721 = vpop.f32.mrb[0].mxu0
        %v2722 = vadd.f32 0.0, %v2721
        %v2723 = vpop.f32.mrb[0].mxu0
        %2724 = vmatprep.mubr.bf16.mxu0 0
        %2725 = vmatmul.mubr.bf16.gmra.mrb[0].mxu0 %v2575
        %v2726 = vpop.f32.mrb[0].mxu0
        %v2727 = vadd.f32 0.0, %v2726
        %v2728 = vpop.f32.mrb[0].mxu0
        %v2729 = vpop.f32.mrb[0].mxu0
        %v2730 = vadd.f32 0.0, %v2729
        %v2731 = vpop.f32.mrb[0].mxu0
        %2732 = vmatprep.mubr.bf16.mxu0 0
        %2733 = vmatmul.mubr.bf16.gmra.mrb[0].mxu0 %v2578
        %v2734 = vpop.f32.mrb[0].mxu0
        %v2735 = vadd.f32 0.0, %v2734
        %v2736 = vpop.f32.mrb[0].mxu0
        %v2737 = vpop.f32.mrb[0].mxu0
        %v2738 = vadd.f32 0.0, %v2737
        %v2739 = vpop.f32.mrb[0].mxu0
        %2740 = vdwg.mxu0
        %v2741 = vadd.f32 %v2440, %v2615
        %v2742 = vadd.f32 %v2441, %v2618
        %v2743 = vadd.f32 %v2442, %v2623
        %v2744 = vadd.f32 %v2443, %v2626
        %v2745 = vadd.f32 %v2444, %v2631
        %v2746 = vadd.f32 %v2445, %v2634
        %v2747 = vadd.f32 %v2446, %v2639
        %v2748 = vadd.f32 %v2447, %v2642
        %v2749 = vadd.f32 %v2448, %v2647
        %v2750 = vadd.f32 %v2449, %v2650
        %v2751 = vadd.f32 %v2450, %v2655
        %v2752 = vadd.f32 %v2451, %v2658
        %v2753 = vadd.f32 %v2452, %v2663
        %v2754 = vadd.f32 %v2453, %v2666
        %v2755 = vadd.f32 %v2454, %v2671
        %v2756 = vadd.f32 %v2455, %v2674
        %v2757 = vadd.f32 %v2456, %v2679
        %v2758 = vadd.f32 %v2457, %v2682
        %v2759 = vadd.f32 %v2458, %v2687
        %v2760 = vadd.f32 %v2459, %v2690
        %v2761 = vadd.f32 %v2460, %v2695
        %v2762 = vadd.f32 %v2461, %v2698
        %v2763 = vadd.f32 %v2462, %v2703
        %v2764 = vadd.f32 %v2463, %v2706
        %v2765 = vadd.f32 %v2464, %v2711
        %v2766 = vadd.f32 %v2465, %v2714
        %v2767 = vadd.f32 %v2466, %v2719
        %v2768 = vadd.f32 %v2467, %v2722
        %v2769 = vadd.f32 %v2468, %v2727
        %v2770 = vadd.f32 %v2469, %v2730
        %v2771 = vadd.f32 %v2470, %v2735
        %v2772 = vadd.f32 %v2471, %v2738
        %v2773 = vld [vmem:[%s2170 + $0x9] sm:$0xff]
        %v2774 = vld [vmem:[%s2170 + $0x11] sm:$0xff]
        %v2775 = vld [vmem:[%s2170 + $0x29] sm:$0xff]
        %v2776 = vld [vmem:[%s2170 + $0x31] sm:$0xff]
        %v2777 = vld [vmem:[%s2170 + $0x49] sm:$0xff]
        %v2778 = vld [vmem:[%s2170 + $0x51] sm:$0xff]
        %v2779 = vld [vmem:[%s2170 + $0x69] sm:$0xff]
        %v2780 = vld [vmem:[%s2170 + $0x71] sm:$0xff]
        %v2781 = vld [vmem:[%s2170 + $0x89] sm:$0xff]
        %v2782 = vld [vmem:[%s2170 + $0x91] sm:$0xff]
        %v2783 = vld [vmem:[%s2170 + $0xa9] sm:$0xff]
        %v2784 = vld [vmem:[%s2170 + $0xb1] sm:$0xff]
        %v2785 = vld [vmem:[%s2170 + $0xc9] sm:$0xff]
        %v2786 = vld [vmem:[%s2170 + $0xd1] sm:$0xff]
        %v2787 = vld [vmem:[%s2170 + $0xe9] sm:$0xff]
        %v2788 = vld [vmem:[%s2170 + $0xf1] sm:$0xff]
        %v2789 = vld [vmem:[%s2170 + $0x109] sm:$0xff]
        %v2790 = vld [vmem:[%s2170 + $0x111] sm:$0xff]
        %v2791 = vld [vmem:[%s2170 + $0x129] sm:$0xff]
        %v2792 = vld [vmem:[%s2170 + $0x131] sm:$0xff]
        %v2793 = vld [vmem:[%s2170 + $0x149] sm:$0xff]
        %v2794 = vld [vmem:[%s2170 + $0x151] sm:$0xff]
        %v2795 = vld [vmem:[%s2170 + $0x169] sm:$0xff]
        %v2796 = vld [vmem:[%s2170 + $0x171] sm:$0xff]
        %v2797 = vld [vmem:[%s2170 + $0x189] sm:$0xff]
        %v2798 = vld [vmem:[%s2170 + $0x191] sm:$0xff]
        %v2799 = vld [vmem:[%s2170 + $0x1a9] sm:$0xff]
        %v2800 = vld [vmem:[%s2170 + $0x1b1] sm:$0xff]
        %v2801 = vld [vmem:[%s2170 + $0x1c9] sm:$0xff]
        %v2802 = vld [vmem:[%s2170 + $0x1d1] sm:$0xff]
        %v2803 = vld [vmem:[%s2170 + $0x1e9] sm:$0xff]
        %v2804 = vld [vmem:[%s2170 + $0x1f1] sm:$0xff]
        %v2805 = vpack.c.bf16 %v2774, %v2773
        %v2806 = vpack.c.bf16 %v2776, %v2775
        %v2807 = vpack.c.bf16 %v2778, %v2777
        %v2808 = vpack.c.bf16 %v2780, %v2779
        %v2809 = vpack.c.bf16 %v2782, %v2781
        %v2810 = vpack.c.bf16 %v2784, %v2783
        %v2811 = vpack.c.bf16 %v2786, %v2785
        %v2812 = vpack.c.bf16 %v2788, %v2787
        %v2813 = vpack.c.bf16 %v2790, %v2789
        %v2814 = vpack.c.bf16 %v2792, %v2791
        %v2815 = vpack.c.bf16 %v2794, %v2793
        %v2816 = vpack.c.bf16 %v2796, %v2795
        %v2817 = vpack.c.bf16 %v2798, %v2797
        %v2818 = vpack.c.bf16 %v2800, %v2799
        %v2819 = vpack.c.bf16 %v2802, %v2801
        %v2820 = vpack.c.bf16 %v2804, %v2803
        %v2825 = vunpack.c.l.b16 %v423
        %v2826 = vunpack.c.l.b16 %v424
        %v2827 = vunpack.c.l.b16 %v425
        %v2828 = vunpack.c.l.b16 %v426
        %v2829 = vpack.c.b16 %v2826, %v2825
        %v2830 = vpack.c.b16 %v2828, %v2827
        %v2834 = vsel %vm256, %v2805, 0
        %v2837 = vsel %vm256, %v2806, 0
        %v2840 = vsel %vm256, %v2807, 0
        %v2843 = vsel %vm256, %v2808, 0
        %v2846 = vsel %vm256, %v2809, 0
        %v2849 = vsel %vm256, %v2810, 0
        %v2852 = vsel %vm256, %v2811, 0
        %v2855 = vsel %vm256, %v2812, 0
        %v2858 = vsel %vm256, %v2813, 0
        %v2861 = vsel %vm256, %v2814, 0
        %v2864 = vsel %vm256, %v2815, 0
        %v2867 = vsel %vm256, %v2816, 0
        %v2870 = vsel %vm256, %v2817, 0
        %v2873 = vsel %vm256, %v2818, 0
        %v2876 = vsel %vm256, %v2819, 0
        %v2879 = vsel %vm256, %v2820, 0
        %2881 = vmatprep.subr.bf16.mxu0 0
        %2882 = vmatpush1.bf16.msra.mxu0 %v2829
        %2883 = vmatprep.subr.bf16.mxu0 0
        %2884 = vmatpush1.bf16.msra.mxu0 %v2830
        %2885 = vmatprep.subr.bf16.mxu0 0
        %2886 = vmatpush1.bf16.msra.mxu0 0
        %2887 = vmatprep.subr.bf16.mxu0 0
        %2888 = vmatpush1.bf16.msra.mxu0 0
        %2889 = vmatprep.subr.bf16.mxu0 0
        %2890 = vmatpush1.bf16.msra.mxu0 0
        %2891 = vmatprep.subr.bf16.mxu0 0
        %2892 = vmatpush1.bf16.msra.mxu0 0
        %2893 = vmatprep.subr.bf16.mxu0 0
        %2894 = vmatpush1.bf16.msra.mxu0 0
        %2895 = vmatprep.subr.bf16.mxu0 0
        %2896 = vmatpush1.bf16.msra.mxu0 0
        %2897 = vmatprep.subr.bf16.mxu0 0
        %2898 = vmatpush1.bf16.msra.mxu0 0
        %2899 = vmatprep.subr.bf16.mxu0 0
        %2900 = vmatpush1.bf16.msra.mxu0 0
        %2901 = vmatprep.subr.bf16.mxu0 0
        %2902 = vmatpush1.bf16.msra.mxu0 0
        %2903 = vmatprep.subr.bf16.mxu0 0
        %2904 = vmatpush1.bf16.msra.mxu0 0
        %2905 = vmatprep.subr.bf16.mxu0 0
        %2906 = vmatpush1.bf16.msra.mxu0 0
        %2907 = vmatprep.subr.bf16.mxu0 0
        %2908 = vmatpush1.bf16.msra.mxu0 0
        %2909 = vmatprep.subr.bf16.mxu0 0
        %2910 = vmatpush1.bf16.msra.mxu0 0
        %2911 = vmatprep.subr.bf16.mxu0 0
        %2912 = vmatpush1.bf16.msra.mxu0 0
        %2913 = vmatprep.mubr.bf16.mxu0 0
        %2914 = vmatmul.mubr.bf16.gmra.mrb[0].mxu0 %v2834
        %v2915 = vpop.f32.mrb[0].mxu0
        %v2916 = vadd.f32 0.0, %v2915
        %v2917 = vpop.f32.mrb[0].mxu0
        %v2918 = vpop.f32.mrb[0].mxu0
        %v2919 = vadd.f32 0.0, %v2918
        %v2920 = vpop.f32.mrb[0].mxu0
        %2921 = vmatprep.mubr.bf16.mxu0 0
        %2922 = vmatmul.mubr.bf16.gmra.mrb[0].mxu0 %v2837
        %v2923 = vpop.f32.mrb[0].mxu0
        %v2924 = vadd.f32 0.0, %v2923
        %v2925 = vpop.f32.mrb[0].mxu0
        %v2926 = vpop.f32.mrb[0].mxu0
        %v2927 = vadd.f32 0.0, %v2926
        %v2928 = vpop.f32.mrb[0].mxu0
        %2929 = vmatprep.mubr.bf16.mxu0 0
        %2930 = vmatmul.mubr.bf16.gmra.mrb[0].mxu0 %v2840
        %v2931 = vpop.f32.mrb[0].mxu0
        %v2932 = vadd.f32 0.0, %v2931
        %v2933 = vpop.f32.mrb[0].mxu0
        %v2934 = vpop.f32.mrb[0].mxu0
        %v2935 = vadd.f32 0.0, %v2934
        %v2936 = vpop.f32.mrb[0].mxu0
        %2937 = vmatprep.mubr.bf16.mxu0 0
        %2938 = vmatmul.mubr.bf16.gmra.mrb[0].mxu0 %v2843
        %v2939 = vpop.f32.mrb[0].mxu0
        %v2940 = vadd.f32 0.0, %v2939
        %v2941 = vpop.f32.mrb[0].mxu0
        %v2942 = vpop.f32.mrb[0].mxu0
        %v2943 = vadd.f32 0.0, %v2942
        %v2944 = vpop.f32.mrb[0].mxu0
        %2945 = vmatprep.mubr.bf16.mxu0 0
        %2946 = vmatmul.mubr.bf16.gmra.mrb[0].mxu0 %v2846
        %v2947 = vpop.f32.mrb[0].mxu0
        %v2948 = vadd.f32 0.0, %v2947
        %v2949 = vpop.f32.mrb[0].mxu0
        %v2950 = vpop.f32.mrb[0].mxu0
        %v2951 = vadd.f32 0.0, %v2950
        %v2952 = vpop.f32.mrb[0].mxu0
        %2953 = vmatprep.mubr.bf16.mxu0 0
        %2954 = vmatmul.mubr.bf16.gmra.mrb[0].mxu0 %v2849
        %v2955 = vpop.f32.mrb[0].mxu0
        %v2956 = vadd.f32 0.0, %v2955
        %v2957 = vpop.f32.mrb[0].mxu0
        %v2958 = vpop.f32.mrb[0].mxu0
        %v2959 = vadd.f32 0.0, %v2958
        %v2960 = vpop.f32.mrb[0].mxu0
        %2961 = vmatprep.mubr.bf16.mxu0 0
        %2962 = vmatmul.mubr.bf16.gmra.mrb[0].mxu0 %v2852
        %v2963 = vpop.f32.mrb[0].mxu0
        %v2964 = vadd.f32 0.0, %v2963
        %v2965 = vpop.f32.mrb[0].mxu0
        %v2966 = vpop.f32.mrb[0].mxu0
        %v2967 = vadd.f32 0.0, %v2966
        %v2968 = vpop.f32.mrb[0].mxu0
        %2969 = vmatprep.mubr.bf16.mxu0 0
        %2970 = vmatmul.mubr.bf16.gmra.mrb[0].mxu0 %v2855
        %v2971 = vpop.f32.mrb[0].mxu0
        %v2972 = vadd.f32 0.0, %v2971
        %v2973 = vpop.f32.mrb[0].mxu0
        %v2974 = vpop.f32.mrb[0].mxu0
        %v2975 = vadd.f32 0.0, %v2974
        %v2976 = vpop.f32.mrb[0].mxu0
        %2977 = vmatprep.mubr.bf16.mxu0 0
        %2978 = vmatmul.mubr.bf16.gmra.mrb[0].mxu0 %v2858
        %v2979 = vpop.f32.mrb[0].mxu0
        %v2980 = vadd.f32 0.0, %v2979
        %v2981 = vpop.f32.mrb[0].mxu0
        %v2982 = vpop.f32.mrb[0].mxu0
        %v2983 = vadd.f32 0.0, %v2982
        %v2984 = vpop.f32.mrb[0].mxu0
        %2985 = vmatprep.mubr.bf16.mxu0 0
        %2986 = vmatmul.mubr.bf16.gmra.mrb[0].mxu0 %v2861
        %v2987 = vpop.f32.mrb[0].mxu0
        %v2988 = vadd.f32 0.0, %v2987
        %v2989 = vpop.f32.mrb[0].mxu0
        %v2990 = vpop.f32.mrb[0].mxu0
        %v2991 = vadd.f32 0.0, %v2990
        %v2992 = vpop.f32.mrb[0].mxu0
        %2993 = vmatprep.mubr.bf16.mxu0 0
        %2994 = vmatmul.mubr.bf16.gmra.mrb[0].mxu0 %v2864
        %v2995 = vpop.f32.mrb[0].mxu0
        %v2996 = vadd.f32 0.0, %v2995
        %v2997 = vpop.f32.mrb[0].mxu0
        %v2998 = vpop.f32.mrb[0].mxu0
        %v2999 = vadd.f32 0.0, %v2998
        %v3000 = vpop.f32.mrb[0].mxu0
        %3001 = vmatprep.mubr.bf16.mxu0 0
        %3002 = vmatmul.mubr.bf16.gmra.mrb[0].mxu0 %v2867
        %v3003 = vpop.f32.mrb[0].mxu0
        %v3004 = vadd.f32 0.0, %v3003
        %v3005 = vpop.f32.mrb[0].mxu0
        %v3006 = vpop.f32.mrb[0].mxu0
        %v3007 = vadd.f32 0.0, %v3006
        %v3008 = vpop.f32.mrb[0].mxu0
        %3009 = vmatprep.mubr.bf16.mxu0 0
        %3010 = vmatmul.mubr.bf16.gmra.mrb[0].mxu0 %v2870
        %v3011 = vpop.f32.mrb[0].mxu0
        %v3012 = vadd.f32 0.0, %v3011
        %v3013 = vpop.f32.mrb[0].mxu0
        %v3014 = vpop.f32.mrb[0].mxu0
        %v3015 = vadd.f32 0.0, %v3014
        %v3016 = vpop.f32.mrb[0].mxu0
        %3017 = vmatprep.mubr.bf16.mxu0 0
        %3018 = vmatmul.mubr.bf16.gmra.mrb[0].mxu0 %v2873
        %v3019 = vpop.f32.mrb[0].mxu0
        %v3020 = vadd.f32 0.0, %v3019
        %v3021 = vpop.f32.mrb[0].mxu0
        %v3022 = vpop.f32.mrb[0].mxu0
        %v3023 = vadd.f32 0.0, %v3022
        %v3024 = vpop.f32.mrb[0].mxu0
        %3025 = vmatprep.mubr.bf16.mxu0 0
        %3026 = vmatmul.mubr.bf16.gmra.mrb[0].mxu0 %v2876
        %v3027 = vpop.f32.mrb[0].mxu0
        %v3028 = vadd.f32 0.0, %v3027
        %v3029 = vpop.f32.mrb[0].mxu0
        %v3030 = vpop.f32.mrb[0].mxu0
        %v3031 = vadd.f32 0.0, %v3030
        %v3032 = vpop.f32.mrb[0].mxu0
        %3033 = vmatprep.mubr.bf16.mxu0 0
        %3034 = vmatmul.mubr.bf16.gmra.mrb[0].mxu0 %v2879
        %v3035 = vpop.f32.mrb[0].mxu0
        %v3036 = vadd.f32 0.0, %v3035
        %v3037 = vpop.f32.mrb[0].mxu0
        %v3038 = vpop.f32.mrb[0].mxu0
        %v3039 = vadd.f32 0.0, %v3038
        %v3040 = vpop.f32.mrb[0].mxu0
        %3041 = vdwg.mxu0
        %v3042 = vadd.f32 %v2741, %v2916
        %v3043 = vadd.f32 %v2742, %v2919
        %v3044 = vadd.f32 %v2743, %v2924
        %v3045 = vadd.f32 %v2744, %v2927
        %v3046 = vadd.f32 %v2745, %v2932
        %v3047 = vadd.f32 %v2746, %v2935
        %v3048 = vadd.f32 %v2747, %v2940
        %v3049 = vadd.f32 %v2748, %v2943
        %v3050 = vadd.f32 %v2749, %v2948
        %v3051 = vadd.f32 %v2750, %v2951
        %v3052 = vadd.f32 %v2751, %v2956
        %v3053 = vadd.f32 %v2752, %v2959
        %v3054 = vadd.f32 %v2753, %v2964
        %v3055 = vadd.f32 %v2754, %v2967
        %v3056 = vadd.f32 %v2755, %v2972
        %v3057 = vadd.f32 %v2756, %v2975
        %v3058 = vadd.f32 %v2757, %v2980
        %v3059 = vadd.f32 %v2758, %v2983
        %v3060 = vadd.f32 %v2759, %v2988
        %v3061 = vadd.f32 %v2760, %v2991
        %v3062 = vadd.f32 %v2761, %v2996
        %v3063 = vadd.f32 %v2762, %v2999
        %v3064 = vadd.f32 %v2763, %v3004
        %v3065 = vadd.f32 %v2764, %v3007
        %v3066 = vadd.f32 %v2765, %v3012
        %v3067 = vadd.f32 %v2766, %v3015
        %v3068 = vadd.f32 %v2767, %v3020
        %v3069 = vadd.f32 %v2768, %v3023
        %v3070 = vadd.f32 %v2769, %v3028
        %v3071 = vadd.f32 %v2770, %v3031
        %v3072 = vadd.f32 %v2771, %v3036
        %v3073 = vadd.f32 %v2772, %v3039
        %v3074 = vld [vmem:[%s2] sm:$0x1]
        %v3076 = vlaneseq
        %v3077 = vshrl.u32 %v3076, 7
        %v3078 = vsub.s32 0, %v3077
        %v3079 = vrot.slane %v3074, %v3078
        %v3081 = vadd.f32 %v3042, %v3079
        %v3082 = vadd.f32 %v3043, %v3079
        %v3083 = vadd.f32 %v3044, %v3079
        %v3084 = vadd.f32 %v3045, %v3079
        %v3085 = vadd.f32 %v3046, %v3079
        %v3086 = vadd.f32 %v3047, %v3079
        %v3087 = vadd.f32 %v3048, %v3079
        %v3088 = vadd.f32 %v3049, %v3079
        %v3089 = vadd.f32 %v3050, %v3079
        %v3090 = vadd.f32 %v3051, %v3079
        %v3091 = vadd.f32 %v3052, %v3079
        %v3092 = vadd.f32 %v3053, %v3079
        %v3093 = vadd.f32 %v3054, %v3079
        %v3094 = vadd.f32 %v3055, %v3079
        %v3095 = vadd.f32 %v3056, %v3079
        %v3096 = vadd.f32 %v3057, %v3079
        %v3097 = vadd.f32 %v3058, %v3079
        %v3098 = vadd.f32 %v3059, %v3079
        %v3099 = vadd.f32 %v3060, %v3079
        %v3100 = vadd.f32 %v3061, %v3079
        %v3101 = vadd.f32 %v3062, %v3079
        %v3102 = vadd.f32 %v3063, %v3079
        %v3103 = vadd.f32 %v3064, %v3079
        %v3104 = vadd.f32 %v3065, %v3079
        %v3105 = vadd.f32 %v3066, %v3079
        %v3106 = vadd.f32 %v3067, %v3079
        %v3107 = vadd.f32 %v3068, %v3079
        %v3108 = vadd.f32 %v3069, %v3079
        %v3109 = vadd.f32 %v3070, %v3079
        %v3110 = vadd.f32 %v3071, %v3079
        %v3111 = vadd.f32 %v3072, %v3079
        %v3112 = vadd.f32 %v3073, %v3079
        %v3113 = vmax.f32 %v3081, 0.0
        %v3114 = vmax.f32 %v3082, 0.0
        %v3115 = vmax.f32 %v3083, 0.0
        %v3116 = vmax.f32 %v3084, 0.0
        %v3117 = vmax.f32 %v3085, 0.0
        %v3118 = vmax.f32 %v3086, 0.0
        %v3119 = vmax.f32 %v3087, 0.0
        %v3120 = vmax.f32 %v3088, 0.0
        %v3121 = vmax.f32 %v3089, 0.0
        %v3122 = vmax.f32 %v3090, 0.0
        %v3123 = vmax.f32 %v3091, 0.0
        %v3124 = vmax.f32 %v3092, 0.0
        %v3125 = vmax.f32 %v3093, 0.0
        %v3126 = vmax.f32 %v3094, 0.0
        %v3127 = vmax.f32 %v3095, 0.0
        %v3128 = vmax.f32 %v3096, 0.0
        %v3129 = vmax.f32 %v3097, 0.0
        %v3130 = vmax.f32 %v3098, 0.0
        %v3131 = vmax.f32 %v3099, 0.0
        %v3132 = vmax.f32 %v3100, 0.0
        %v3133 = vmax.f32 %v3101, 0.0
        %v3134 = vmax.f32 %v3102, 0.0
        %v3135 = vmax.f32 %v3103, 0.0
        %v3136 = vmax.f32 %v3104, 0.0
        %v3137 = vmax.f32 %v3105, 0.0
        %v3138 = vmax.f32 %v3106, 0.0
        %v3139 = vmax.f32 %v3107, 0.0
        %v3140 = vmax.f32 %v3108, 0.0
        %v3141 = vmax.f32 %v3109, 0.0
        %v3142 = vmax.f32 %v3110, 0.0
        %v3143 = vmax.f32 %v3111, 0.0
        %v3144 = vmax.f32 %v3112, 0.0
        %3145 = vst.msk [vmem:[%s358 + $0x8] sm:$0xff] %vm256, %v3113
        %3146 = vst.msk [vmem:[%s358 + $0x10] sm:$0xff] %vm256, %v3114
        %3147 = vst.msk [vmem:[%s358 + $0x28] sm:$0xff] %vm256, %v3115
        %3148 = vst.msk [vmem:[%s358 + $0x30] sm:$0xff] %vm256, %v3116
        %3149 = vst.msk [vmem:[%s358 + $0x48] sm:$0xff] %vm256, %v3117
        %3150 = vst.msk [vmem:[%s358 + $0x50] sm:$0xff] %vm256, %v3118
        %3151 = vst.msk [vmem:[%s358 + $0x68] sm:$0xff] %vm256, %v3119
        %3152 = vst.msk [vmem:[%s358 + $0x70] sm:$0xff] %vm256, %v3120
        %3153 = vst.msk [vmem:[%s358 + $0x88] sm:$0xff] %vm256, %v3121
        %3154 = vst.msk [vmem:[%s358 + $0x90] sm:$0xff] %vm256, %v3122
        %3155 = vst.msk [vmem:[%s358 + $0xa8] sm:$0xff] %vm256, %v3123
        %3156 = vst.msk [vmem:[%s358 + $0xb0] sm:$0xff] %vm256, %v3124
        %3157 = vst.msk [vmem:[%s358 + $0xc8] sm:$0xff] %vm256, %v3125
        %3158 = vst.msk [vmem:[%s358 + $0xd0] sm:$0xff] %vm256, %v3126
        %3159 = vst.msk [vmem:[%s358 + $0xe8] sm:$0xff] %vm256, %v3127
        %3160 = vst.msk [vmem:[%s358 + $0xf0] sm:$0xff] %vm256, %v3128
        %3161 = vst.msk [vmem:[%s358 + $0x108] sm:$0xff] %vm256, %v3129
        %3162 = vst.msk [vmem:[%s358 + $0x110] sm:$0xff] %vm256, %v3130
        %3163 = vst.msk [vmem:[%s358 + $0x128] sm:$0xff] %vm256, %v3131
        %3164 = vst.msk [vmem:[%s358 + $0x130] sm:$0xff] %vm256, %v3132
        %3165 = vst.msk [vmem:[%s358 + $0x148] sm:$0xff] %vm256, %v3133
        %3166 = vst.msk [vmem:[%s358 + $0x150] sm:$0xff] %vm256, %v3134
        %3167 = vst.msk [vmem:[%s358 + $0x168] sm:$0xff] %vm256, %v3135
        %3168 = vst.msk [vmem:[%s358 + $0x170] sm:$0xff] %vm256, %v3136
        %3169 = vst.msk [vmem:[%s358 + $0x188] sm:$0xff] %vm256, %v3137
        %3170 = vst.msk [vmem:[%s358 + $0x190] sm:$0xff] %vm256, %v3138
        %3171 = vst.msk [vmem:[%s358 + $0x1a8] sm:$0xff] %vm256, %v3139
        %3172 = vst.msk [vmem:[%s358 + $0x1b0] sm:$0xff] %vm256, %v3140
        %3173 = vst.msk [vmem:[%s358 + $0x1c8] sm:$0xff] %vm256, %v3141
        %3174 = vst.msk [vmem:[%s358 + $0x1d0] sm:$0xff] %vm256, %v3142
        %3175 = vst.msk [vmem:[%s358 + $0x1e8] sm:$0xff] %vm256, %v3143
        %3176 = vst.msk [vmem:[%s358 + $0x1f0] sm:$0xff] %vm256, %v3144
        %v3177 = vld [vmem:[%s3] sm:$0xf]
        %v3178 = vld [vmem:[%s3 + $0x4] sm:$0xf]
        %v3179 = vld [vmem:[%s3 + $0x8] sm:$0xf]
        %v3180 = vld [vmem:[%s3 + $0xc] sm:$0xf]
        %v3181 = vld [vmem:[%s3 + $0x10] sm:$0xf]
        %v3182 = vld [vmem:[%s3 + $0x14] sm:$0xf]
        %v3183 = vld [vmem:[%s3 + $0x18] sm:$0xf]
        %v3184 = vld [vmem:[%s3 + $0x1c] sm:$0xf]
        %v3185 = vld [vmem:[%s3 + $0x20] sm:$0xf]
        %v3186 = vld [vmem:[%s3 + $0x24] sm:$0xf]
        %v3187 = vld [vmem:[%s3 + $0x28] sm:$0xf]
        %v3188 = vld [vmem:[%s3 + $0x2c] sm:$0xf]
        %v3189 = vld [vmem:[%s3 + $0x30] sm:$0xf]
        %v3190 = vld [vmem:[%s3 + $0x34] sm:$0xf]
        %v3191 = vld [vmem:[%s3 + $0x38] sm:$0xf]
        %v3192 = vld [vmem:[%s3 + $0x3c] sm:$0xf]
        %v3193 = vld [vmem:[%s3 + $0x40] sm:$0xf]
        %v3194 = vld [vmem:[%s3 + $0x44] sm:$0xf]
        %v3195 = vld [vmem:[%s3 + $0x48] sm:$0xf]
        %v3196 = vld [vmem:[%s3 + $0x4c] sm:$0xf]
        %v3197 = vld [vmem:[%s3 + $0x50] sm:$0xf]
        %v3198 = vld [vmem:[%s3 + $0x54] sm:$0xf]
        %v3199 = vld [vmem:[%s3 + $0x58] sm:$0xf]
        %v3200 = vld [vmem:[%s3 + $0x5c] sm:$0xf]
        %v3201 = vld [vmem:[%s3 + $0x60] sm:$0xf]
        %v3202 = vld [vmem:[%s3 + $0x64] sm:$0xf]
        %v3203 = vld [vmem:[%s3 + $0x68] sm:$0xf]
        %v3204 = vld [vmem:[%s3 + $0x6c] sm:$0xf]
        %v3205 = vld [vmem:[%s3 + $0x70] sm:$0xf]
        %v3206 = vld [vmem:[%s3 + $0x74] sm:$0xf]
        %v3207 = vld [vmem:[%s3 + $0x78] sm:$0xf]
        %v3208 = vld [vmem:[%s3 + $0x7c] sm:$0xf]
        %v3209 = vld [vmem:[%s3 + $0x80] sm:$0xf]
        %v3210 = vld [vmem:[%s3 + $0x84] sm:$0xf]
        %v3211 = vld [vmem:[%s3 + $0x88] sm:$0xf]
        %v3212 = vld [vmem:[%s3 + $0x8c] sm:$0xf]
        %v3213 = vld [vmem:[%s427 + $0x7] sm:$0xff]
        %v3214 = vld [vmem:[%s427 + $0xf] sm:$0xff]
        %v3215 = vld [vmem:[%s427 + $0x27] sm:$0xff]
        %v3216 = vld [vmem:[%s427 + $0x2f] sm:$0xff]
        %v3217 = vld [vmem:[%s427 + $0x47] sm:$0xff]
        %v3218 = vld [vmem:[%s427 + $0x4f] sm:$0xff]
        %v3219 = vld [vmem:[%s427 + $0x67] sm:$0xff]
        %v3220 = vld [vmem:[%s427 + $0x6f] sm:$0xff]
        %v3221 = vld [vmem:[%s427 + $0x87] sm:$0xff]
        %v3222 = vld [vmem:[%s427 + $0x8f] sm:$0xff]
        %v3223 = vld [vmem:[%s427 + $0xa7] sm:$0xff]
        %v3224 = vld [vmem:[%s427 + $0xaf] sm:$0xff]
        %v3225 = vld [vmem:[%s427 + $0xc7] sm:$0xff]
        %v3226 = vld [vmem:[%s427 + $0xcf] sm:$0xff]
        %v3227 = vld [vmem:[%s427 + $0xe7] sm:$0xff]
        %v3228 = vld [vmem:[%s427 + $0xef] sm:$0xff]
        %v3229 = vld [vmem:[%s427 + $0x107] sm:$0xff]
        %v3230 = vld [vmem:[%s427 + $0x10f] sm:$0xff]
        %v3231 = vld [vmem:[%s427 + $0x127] sm:$0xff]
        %v3232 = vld [vmem:[%s427 + $0x12f] sm:$0xff]
        %v3233 = vld [vmem:[%s427 + $0x147] sm:$0xff]
        %v3234 = vld [vmem:[%s427 + $0x14f] sm:$0xff]
        %v3235 = vld [vmem:[%s427 + $0x167] sm:$0xff]
        %v3236 = vld [vmem:[%s427 + $0x16f] sm:$0xff]
        %v3237 = vld [vmem:[%s427 + $0x187] sm:$0xff]
        %v3238 = vld [vmem:[%s427 + $0x18f] sm:$0xff]
        %v3239 = vld [vmem:[%s427 + $0x1a7] sm:$0xff]
        %v3240 = vld [vmem:[%s427 + $0x1af] sm:$0xff]
        %v3241 = vld [vmem:[%s427 + $0x1c7] sm:$0xff]
        %v3242 = vld [vmem:[%s427 + $0x1cf] sm:$0xff]
        %v3243 = vld [vmem:[%s427 + $0x1e7] sm:$0xff]
        %v3244 = vld [vmem:[%s427 + $0x1ef] sm:$0xff]
        %v3245 = vpack.c.bf16 %v3214, %v3213
        %v3246 = vpack.c.bf16 %v3216, %v3215
        %v3247 = vpack.c.bf16 %v3218, %v3217
        %v3248 = vpack.c.bf16 %v3220, %v3219
        %v3249 = vpack.c.bf16 %v3222, %v3221
        %v3250 = vpack.c.bf16 %v3224, %v3223
        %v3251 = vpack.c.bf16 %v3226, %v3225
        %v3252 = vpack.c.bf16 %v3228, %v3227
        %v3253 = vpack.c.bf16 %v3230, %v3229
        %v3254 = vpack.c.bf16 %v3232, %v3231
        %v3255 = vpack.c.bf16 %v3234, %v3233
        %v3256 = vpack.c.bf16 %v3236, %v3235
        %v3257 = vpack.c.bf16 %v3238, %v3237
        %v3258 = vpack.c.bf16 %v3240, %v3239
        %v3259 = vpack.c.bf16 %v3242, %v3241
        %v3260 = vpack.c.bf16 %v3244, %v3243
        %v3261 = vld [vmem:[%s427 + $0x8] sm:$0xff]
        %v3262 = vld [vmem:[%s427 + $0x10] sm:$0xff]
        %v3263 = vld [vmem:[%s427 + $0x28] sm:$0xff]
        %v3264 = vld [vmem:[%s427 + $0x30] sm:$0xff]
        %v3265 = vld [vmem:[%s427 + $0x48] sm:$0xff]
        %v3266 = vld [vmem:[%s427 + $0x50] sm:$0xff]
        %v3267 = vld [vmem:[%s427 + $0x68] sm:$0xff]
        %v3268 = vld [vmem:[%s427 + $0x70] sm:$0xff]
        %v3269 = vld [vmem:[%s427 + $0x88] sm:$0xff]
        %v3270 = vld [vmem:[%s427 + $0x90] sm:$0xff]
        %v3271 = vld [vmem:[%s427 + $0xa8] sm:$0xff]
        %v3272 = vld [vmem:[%s427 + $0xb0] sm:$0xff]
        %v3273 = vld [vmem:[%s427 + $0xc8] sm:$0xff]
        %v3274 = vld [vmem:[%s427 + $0xd0] sm:$0xff]
        %v3275 = vld [vmem:[%s427 + $0xe8] sm:$0xff]
        %v3276 = vld [vmem:[%s427 + $0xf0] sm:$0xff]
        %v3277 = vld [vmem:[%s427 + $0x108] sm:$0xff]
        %v3278 = vld [vmem:[%s427 + $0x110] sm:$0xff]
        %v3279 = vld [vmem:[%s427 + $0x128] sm:$0xff]
        %v3280 = vld [vmem:[%s427 + $0x130] sm:$0xff]
        %v3281 = vld [vmem:[%s427 + $0x148] sm:$0xff]
        %v3282 = vld [vmem:[%s427 + $0x150] sm:$0xff]
        %v3283 = vld [vmem:[%s427 + $0x168] sm:$0xff]
        %v3284 = vld [vmem:[%s427 + $0x170] sm:$0xff]
        %v3285 = vld [vmem:[%s427 + $0x188] sm:$0xff]
        %v3286 = vld [vmem:[%s427 + $0x190] sm:$0xff]
        %v3287 = vld [vmem:[%s427 + $0x1a8] sm:$0xff]
        %v3288 = vld [vmem:[%s427 + $0x1b0] sm:$0xff]
        %v3289 = vld [vmem:[%s427 + $0x1c8] sm:$0xff]
        %v3290 = vld [vmem:[%s427 + $0x1d0] sm:$0xff]
        %v3291 = vld [vmem:[%s427 + $0x1e8] sm:$0xff]
        %v3292 = vld [vmem:[%s427 + $0x1f0] sm:$0xff]
        %v3293 = vpack.c.bf16 %v3262, %v3261
        %v3294 = vpack.c.bf16 %v3264, %v3263
        %v3295 = vpack.c.bf16 %v3266, %v3265
        %v3296 = vpack.c.bf16 %v3268, %v3267
        %v3297 = vpack.c.bf16 %v3270, %v3269
        %v3298 = vpack.c.bf16 %v3272, %v3271
        %v3299 = vpack.c.bf16 %v3274, %v3273
        %v3300 = vpack.c.bf16 %v3276, %v3275
        %v3301 = vpack.c.bf16 %v3278, %v3277
        %v3302 = vpack.c.bf16 %v3280, %v3279
        %v3303 = vpack.c.bf16 %v3282, %v3281
        %v3304 = vpack.c.bf16 %v3284, %v3283
        %v3305 = vpack.c.bf16 %v3286, %v3285
        %v3306 = vpack.c.bf16 %v3288, %v3287
        %v3307 = vpack.c.bf16 %v3290, %v3289
        %v3308 = vpack.c.bf16 %v3292, %v3291
        %v3313 = vunpack.c.l.b16 %v3181
        %v3314 = vunpack.c.l.b16 %v3182
        %v3315 = vunpack.c.l.b16 %v3183
        %v3316 = vunpack.c.l.b16 %v3184
        %v3317 = vpack.c.b16 %v3314, %v3313
        %v3318 = vpack.c.b16 %v3316, %v3315
        %v3322 = vsel %vm256, %v3293, 0
        %v3325 = vsel %vm256, %v3294, 0
        %v3328 = vsel %vm256, %v3295, 0
        %v3331 = vsel %vm256, %v3296, 0
        %v3334 = vsel %vm256, %v3297, 0
        %v3337 = vsel %vm256, %v3298, 0
        %v3340 = vsel %vm256, %v3299, 0
        %v3343 = vsel %vm256, %v3300, 0
        %v3346 = vsel %vm256, %v3301, 0
        %v3349 = vsel %vm256, %v3302, 0
        %v3352 = vsel %vm256, %v3303, 0
        %v3355 = vsel %vm256, %v3304, 0
        %v3358 = vsel %vm256, %v3305, 0
        %v3361 = vsel %vm256, %v3306, 0
        %v3364 = vsel %vm256, %v3307, 0
        %v3367 = vsel %vm256, %v3308, 0
        %3369 = vmatprep.subr.bf16.mxu0 0
        %3370 = vmatpush1.bf16.msra.mxu0 %v3317
        %3371 = vmatprep.subr.bf16.mxu0 0
        %3372 = vmatpush1.bf16.msra.mxu0 %v3318
        %3373 = vmatprep.subr.bf16.mxu0 0
        %3374 = vmatpush1.bf16.msra.mxu0 0
        %3375 = vmatprep.subr.bf16.mxu0 0
        %3376 = vmatpush1.bf16.msra.mxu0 0
        %3377 = vmatprep.subr.bf16.mxu0 0
        %3378 = vmatpush1.bf16.msra.mxu0 0
        %3379 = vmatprep.subr.bf16.mxu0 0
        %3380 = vmatpush1.bf16.msra.mxu0 0
        %3381 = vmatprep.subr.bf16.mxu0 0
        %3382 = vmatpush1.bf16.msra.mxu0 0
        %3383 = vmatprep.subr.bf16.mxu0 0
        %3384 = vmatpush1.bf16.msra.mxu0 0
        %3385 = vmatprep.subr.bf16.mxu0 0
        %3386 = vmatpush1.bf16.msra.mxu0 0
        %3387 = vmatprep.subr.bf16.mxu0 0
        %3388 = vmatpush1.bf16.msra.mxu0 0
        %3389 = vmatprep.subr.bf16.mxu0 0
        %3390 = vmatpush1.bf16.msra.mxu0 0
        %3391 = vmatprep.subr.bf16.mxu0 0
        %3392 = vmatpush1.bf16.msra.mxu0 0
        %3393 = vmatprep.subr.bf16.mxu0 0
        %3394 = vmatpush1.bf16.msra.mxu0 0
        %3395 = vmatprep.subr.bf16.mxu0 0
        %3396 = vmatpush1.bf16.msra.mxu0 0
        %3397 = vmatprep.subr.bf16.mxu0 0
        %3398 = vmatpush1.bf16.msra.mxu0 0
        %3399 = vmatprep.subr.bf16.mxu0 0
        %3400 = vmatpush1.bf16.msra.mxu0 0
        %3401 = vmatprep.mubr.bf16.mxu0 0
        %3402 = vmatmul.mubr.bf16.gmra.mrb[0].mxu0 %v3322
        %v3403 = vpop.f32.mrb[0].mxu0
        %v3404 = vadd.f32 0.0, %v3403
        %v3405 = vpop.f32.mrb[0].mxu0
        %v3406 = vpop.f32.mrb[0].mxu0
        %v3407 = vadd.f32 0.0, %v3406
        %v3408 = vpop.f32.mrb[0].mxu0
        %3409 = vmatprep.mubr.bf16.mxu0 0
        %3410 = vmatmul.mubr.bf16.gmra.mrb[0].mxu0 %v3325
        %v3411 = vpop.f32.mrb[0].mxu0
        %v3412 = vadd.f32 0.0, %v3411
        %v3413 = vpop.f32.mrb[0].mxu0
        %v3414 = vpop.f32.mrb[0].mxu0
        %v3415 = vadd.f32 0.0, %v3414
        %v3416 = vpop.f32.mrb[0].mxu0
        %3417 = vmatprep.mubr.bf16.mxu0 0
        %3418 = vmatmul.mubr.bf16.gmra.mrb[0].mxu0 %v3328
        %v3419 = vpop.f32.mrb[0].mxu0
        %v3420 = vadd.f32 0.0, %v3419
        %v3421 = vpop.f32.mrb[0].mxu0
        %v3422 = vpop.f32.mrb[0].mxu0
        %v3423 = vadd.f32 0.0, %v3422
        %v3424 = vpop.f32.mrb[0].mxu0
        %3425 = vmatprep.mubr.bf16.mxu0 0
        %3426 = vmatmul.mubr.bf16.gmra.mrb[0].mxu0 %v3331
        %v3427 = vpop.f32.mrb[0].mxu0
        %v3428 = vadd.f32 0.0, %v3427
        %v3429 = vpop.f32.mrb[0].mxu0
        %v3430 = vpop.f32.mrb[0].mxu0
        %v3431 = vadd.f32 0.0, %v3430
        %v3432 = vpop.f32.mrb[0].mxu0
        %3433 = vmatprep.mubr.bf16.mxu0 0
        %3434 = vmatmul.mubr.bf16.gmra.mrb[0].mxu0 %v3334
        %v3435 = vpop.f32.mrb[0].mxu0
        %v3436 = vadd.f32 0.0, %v3435
        %v3437 = vpop.f32.mrb[0].mxu0
        %v3438 = vpop.f32.mrb[0].mxu0
        %v3439 = vadd.f32 0.0, %v3438
        %v3440 = vpop.f32.mrb[0].mxu0
        %3441 = vmatprep.mubr.bf16.mxu0 0
        %3442 = vmatmul.mubr.bf16.gmra.mrb[0].mxu0 %v3337
        %v3443 = vpop.f32.mrb[0].mxu0
        %v3444 = vadd.f32 0.0, %v3443
        %v3445 = vpop.f32.mrb[0].mxu0
        %v3446 = vpop.f32.mrb[0].mxu0
        %v3447 = vadd.f32 0.0, %v3446
        %v3448 = vpop.f32.mrb[0].mxu0
        %3449 = vmatprep.mubr.bf16.mxu0 0
        %3450 = vmatmul.mubr.bf16.gmra.mrb[0].mxu0 %v3340
        %v3451 = vpop.f32.mrb[0].mxu0
        %v3452 = vadd.f32 0.0, %v3451
        %v3453 = vpop.f32.mrb[0].mxu0
        %v3454 = vpop.f32.mrb[0].mxu0
        %v3455 = vadd.f32 0.0, %v3454
        %v3456 = vpop.f32.mrb[0].mxu0
        %3457 = vmatprep.mubr.bf16.mxu0 0
        %3458 = vmatmul.mubr.bf16.gmra.mrb[0].mxu0 %v3343
        %v3459 = vpop.f32.mrb[0].mxu0
        %v3460 = vadd.f32 0.0, %v3459
        %v3461 = vpop.f32.mrb[0].mxu0
        %v3462 = vpop.f32.mrb[0].mxu0
        %v3463 = vadd.f32 0.0, %v3462
        %v3464 = vpop.f32.mrb[0].mxu0
        %3465 = vmatprep.mubr.bf16.mxu0 0
        %3466 = vmatmul.mubr.bf16.gmra.mrb[0].mxu0 %v3346
        %v3467 = vpop.f32.mrb[0].mxu0
        %v3468 = vadd.f32 0.0, %v3467
        %v3469 = vpop.f32.mrb[0].mxu0
        %v3470 = vpop.f32.mrb[0].mxu0
        %v3471 = vadd.f32 0.0, %v3470
        %v3472 = vpop.f32.mrb[0].mxu0
        %3473 = vmatprep.mubr.bf16.mxu0 0
        %3474 = vmatmul.mubr.bf16.gmra.mrb[0].mxu0 %v3349
        %v3475 = vpop.f32.mrb[0].mxu0
        %v3476 = vadd.f32 0.0, %v3475
        %v3477 = vpop.f32.mrb[0].mxu0
        %v3478 = vpop.f32.mrb[0].mxu0
        %v3479 = vadd.f32 0.0, %v3478
        %v3480 = vpop.f32.mrb[0].mxu0
        %3481 = vmatprep.mubr.bf16.mxu0 0
        %3482 = vmatmul.mubr.bf16.gmra.mrb[0].mxu0 %v3352
        %v3483 = vpop.f32.mrb[0].mxu0
        %v3484 = vadd.f32 0.0, %v3483
        %v3485 = vpop.f32.mrb[0].mxu0
        %v3486 = vpop.f32.mrb[0].mxu0
        %v3487 = vadd.f32 0.0, %v3486
        %v3488 = vpop.f32.mrb[0].mxu0
        %3489 = vmatprep.mubr.bf16.mxu0 0
        %3490 = vmatmul.mubr.bf16.gmra.mrb[0].mxu0 %v3355
        %v3491 = vpop.f32.mrb[0].mxu0
        %v3492 = vadd.f32 0.0, %v3491
        %v3493 = vpop.f32.mrb[0].mxu0
        %v3494 = vpop.f32.mrb[0].mxu0
        %v3495 = vadd.f32 0.0, %v3494
        %v3496 = vpop.f32.mrb[0].mxu0
        %3497 = vmatprep.mubr.bf16.mxu0 0
        %3498 = vmatmul.mubr.bf16.gmra.mrb[0].mxu0 %v3358
        %v3499 = vpop.f32.mrb[0].mxu0
        %v3500 = vadd.f32 0.0, %v3499
        %v3501 = vpop.f32.mrb[0].mxu0
        %v3502 = vpop.f32.mrb[0].mxu0
        %v3503 = vadd.f32 0.0, %v3502
        %v3504 = vpop.f32.mrb[0].mxu0
        %3505 = vmatprep.mubr.bf16.mxu0 0
        %3506 = vmatmul.mubr.bf16.gmra.mrb[0].mxu0 %v3361
        %v3507 = vpop.f32.mrb[0].mxu0
        %v3508 = vadd.f32 0.0, %v3507
        %v3509 = vpop.f32.mrb[0].mxu0
        %v3510 = vpop.f32.mrb[0].mxu0
        %v3511 = vadd.f32 0.0, %v3510
        %v3512 = vpop.f32.mrb[0].mxu0
        %3513 = vmatprep.mubr.bf16.mxu0 0
        %3514 = vmatmul.mubr.bf16.gmra.mrb[0].mxu0 %v3364
        %v3515 = vpop.f32.mrb[0].mxu0
        %v3516 = vadd.f32 0.0, %v3515
        %v3517 = vpop.f32.mrb[0].mxu0
        %v3518 = vpop.f32.mrb[0].mxu0
        %v3519 = vadd.f32 0.0, %v3518
        %v3520 = vpop.f32.mrb[0].mxu0
        %3521 = vmatprep.mubr.bf16.mxu0 0
        %3522 = vmatmul.mubr.bf16.gmra.mrb[0].mxu0 %v3367
        %v3523 = vpop.f32.mrb[0].mxu0
        %v3524 = vadd.f32 0.0, %v3523
        %v3525 = vpop.f32.mrb[0].mxu0
        %v3526 = vpop.f32.mrb[0].mxu0
        %v3527 = vadd.f32 0.0, %v3526
        %v3528 = vpop.f32.mrb[0].mxu0
        %3529 = vdwg.mxu0
        %v3534 = vunpack.c.l.b16 %v3177
        %v3535 = vunpack.c.l.b16 %v3178
        %v3536 = vunpack.c.l.b16 %v3179
        %v3537 = vunpack.c.l.b16 %v3180
        %v3538 = vpack.c.b16 %v3535, %v3534
        %v3539 = vpack.c.b16 %v3537, %v3536
        %v3543 = vsel %vm256, %v3245, 0
        %v3546 = vsel %vm256, %v3246, 0
        %v3549 = vsel %vm256, %v3247, 0
        %v3552 = vsel %vm256, %v3248, 0
        %v3555 = vsel %vm256, %v3249, 0
        %v3558 = vsel %vm256, %v3250, 0
        %v3561 = vsel %vm256, %v3251, 0
        %v3564 = vsel %vm256, %v3252, 0
        %v3567 = vsel %vm256, %v3253, 0
        %v3570 = vsel %vm256, %v3254, 0
        %v3573 = vsel %vm256, %v3255, 0
        %v3576 = vsel %vm256, %v3256, 0
        %v3579 = vsel %vm256, %v3257, 0
        %v3582 = vsel %vm256, %v3258, 0
        %v3585 = vsel %vm256, %v3259, 0
        %v3588 = vsel %vm256, %v3260, 0
        %3590 = vmatprep.subr.bf16.mxu0 0
        %3591 = vmatpush1.bf16.msra.mxu0 %v3538
        %3592 = vmatprep.subr.bf16.mxu0 0
        %3593 = vmatpush1.bf16.msra.mxu0 %v3539
        %3594 = vmatprep.subr.bf16.mxu0 0
        %3595 = vmatpush1.bf16.msra.mxu0 0
        %3596 = vmatprep.subr.bf16.mxu0 0
        %3597 = vmatpush1.bf16.msra.mxu0 0
        %3598 = vmatprep.subr.bf16.mxu0 0
        %3599 = vmatpush1.bf16.msra.mxu0 0
        %3600 = vmatprep.subr.bf16.mxu0 0
        %3601 = vmatpush1.bf16.msra.mxu0 0
        %3602 = vmatprep.subr.bf16.mxu0 0
        %3603 = vmatpush1.bf16.msra.mxu0 0
        %3604 = vmatprep.subr.bf16.mxu0 0
        %3605 = vmatpush1.bf16.msra.mxu0 0
        %3606 = vmatprep.subr.bf16.mxu0 0
        %3607 = vmatpush1.bf16.msra.mxu0 0
        %3608 = vmatprep.subr.bf16.mxu0 0
        %3609 = vmatpush1.bf16.msra.mxu0 0
        %3610 = vmatprep.subr.bf16.mxu0 0
        %3611 = vmatpush1.bf16.msra.mxu0 0
        %3612 = vmatprep.subr.bf16.mxu0 0
        %3613 = vmatpush1.bf16.msra.mxu0 0
        %3614 = vmatprep.subr.bf16.mxu0 0
        %3615 = vmatpush1.bf16.msra.mxu0 0
        %3616 = vmatprep.subr.bf16.mxu0 0
        %3617 = vmatpush1.bf16.msra.mxu0 0
        %3618 = vmatprep.subr.bf16.mxu0 0
        %3619 = vmatpush1.bf16.msra.mxu0 0
        %3620 = vmatprep.subr.bf16.mxu0 0
        %3621 = vmatpush1.bf16.msra.mxu0 0
        %3622 = vmatprep.mubr.bf16.mxu0 0
        %3623 = vmatmul.mubr.bf16.gmra.mrb[0].mxu0 %v3543
        %v3624 = vpop.f32.mrb[0].mxu0
        %v3625 = vadd.f32 %v3404, %v3624
        %v3626 = vpop.f32.mrb[0].mxu0
        %v3627 = vpop.f32.mrb[0].mxu0
        %v3628 = vadd.f32 %v3407, %v3627
        %v3629 = vpop.f32.mrb[0].mxu0
        %3630 = vmatprep.mubr.bf16.mxu0 0
        %3631 = vmatmul.mubr.bf16.gmra.mrb[0].mxu0 %v3546
        %v3632 = vpop.f32.mrb[0].mxu0
        %v3633 = vadd.f32 %v3412, %v3632
        %v3634 = vpop.f32.mrb[0].mxu0
        %v3635 = vpop.f32.mrb[0].mxu0
        %v3636 = vadd.f32 %v3415, %v3635
        %v3637 = vpop.f32.mrb[0].mxu0
        %3638 = vmatprep.mubr.bf16.mxu0 0
        %3639 = vmatmul.mubr.bf16.gmra.mrb[0].mxu0 %v3549
        %v3640 = vpop.f32.mrb[0].mxu0
        %v3641 = vadd.f32 %v3420, %v3640
        %v3642 = vpop.f32.mrb[0].mxu0
        %v3643 = vpop.f32.mrb[0].mxu0
        %v3644 = vadd.f32 %v3423, %v3643
        %v3645 = vpop.f32.mrb[0].mxu0
        %3646 = vmatprep.mubr.bf16.mxu0 0
        %3647 = vmatmul.mubr.bf16.gmra.mrb[0].mxu0 %v3552
        %v3648 = vpop.f32.mrb[0].mxu0
        %v3649 = vadd.f32 %v3428, %v3648
        %v3650 = vpop.f32.mrb[0].mxu0
        %v3651 = vpop.f32.mrb[0].mxu0
        %v3652 = vadd.f32 %v3431, %v3651
        %v3653 = vpop.f32.mrb[0].mxu0
        %3654 = vmatprep.mubr.bf16.mxu0 0
        %3655 = vmatmul.mubr.bf16.gmra.mrb[0].mxu0 %v3555
        %v3656 = vpop.f32.mrb[0].mxu0
        %v3657 = vadd.f32 %v3436, %v3656
        %v3658 = vpop.f32.mrb[0].mxu0
        %v3659 = vpop.f32.mrb[0].mxu0
        %v3660 = vadd.f32 %v3439, %v3659
        %v3661 = vpop.f32.mrb[0].mxu0
        %3662 = vmatprep.mubr.bf16.mxu0 0
        %3663 = vmatmul.mubr.bf16.gmra.mrb[0].mxu0 %v3558
        %v3664 = vpop.f32.mrb[0].mxu0
        %v3665 = vadd.f32 %v3444, %v3664
        %v3666 = vpop.f32.mrb[0].mxu0
        %v3667 = vpop.f32.mrb[0].mxu0
        %v3668 = vadd.f32 %v3447, %v3667
        %v3669 = vpop.f32.mrb[0].mxu0
        %3670 = vmatprep.mubr.bf16.mxu0 0
        %3671 = vmatmul.mubr.bf16.gmra.mrb[0].mxu0 %v3561
        %v3672 = vpop.f32.mrb[0].mxu0
        %v3673 = vadd.f32 %v3452, %v3672
        %v3674 = vpop.f32.mrb[0].mxu0
        %v3675 = vpop.f32.mrb[0].mxu0
        %v3676 = vadd.f32 %v3455, %v3675
        %v3677 = vpop.f32.mrb[0].mxu0
        %3678 = vmatprep.mubr.bf16.mxu0 0
        %3679 = vmatmul.mubr.bf16.gmra.mrb[0].mxu0 %v3564
        %v3680 = vpop.f32.mrb[0].mxu0
        %v3681 = vadd.f32 %v3460, %v3680
        %v3682 = vpop.f32.mrb[0].mxu0
        %v3683 = vpop.f32.mrb[0].mxu0
        %v3684 = vadd.f32 %v3463, %v3683
        %v3685 = vpop.f32.mrb[0].mxu0
        %3686 = vmatprep.mubr.bf16.mxu0 0
        %3687 = vmatmul.mubr.bf16.gmra.mrb[0].mxu0 %v3567
        %v3688 = vpop.f32.mrb[0].mxu0
        %v3689 = vadd.f32 %v3468, %v3688
        %v3690 = vpop.f32.mrb[0].mxu0
        %v3691 = vpop.f32.mrb[0].mxu0
        %v3692 = vadd.f32 %v3471, %v3691
        %v3693 = vpop.f32.mrb[0].mxu0
        %3694 = vmatprep.mubr.bf16.mxu0 0
        %3695 = vmatmul.mubr.bf16.gmra.mrb[0].mxu0 %v3570
        %v3696 = vpop.f32.mrb[0].mxu0
        %v3697 = vadd.f32 %v3476, %v3696
        %v3698 = vpop.f32.mrb[0].mxu0
        %v3699 = vpop.f32.mrb[0].mxu0
        %v3700 = vadd.f32 %v3479, %v3699
        %v3701 = vpop.f32.mrb[0].mxu0
        %3702 = vmatprep.mubr.bf16.mxu0 0
        %3703 = vmatmul.mubr.bf16.gmra.mrb[0].mxu0 %v3573
        %v3704 = vpop.f32.mrb[0].mxu0
        %v3705 = vadd.f32 %v3484, %v3704
        %v3706 = vpop.f32.mrb[0].mxu0
        %v3707 = vpop.f32.mrb[0].mxu0
        %v3708 = vadd.f32 %v3487, %v3707
        %v3709 = vpop.f32.mrb[0].mxu0
        %3710 = vmatprep.mubr.bf16.mxu0 0
        %3711 = vmatmul.mubr.bf16.gmra.mrb[0].mxu0 %v3576
        %v3712 = vpop.f32.mrb[0].mxu0
        %v3713 = vadd.f32 %v3492, %v3712
        %v3714 = vpop.f32.mrb[0].mxu0
        %v3715 = vpop.f32.mrb[0].mxu0
        %v3716 = vadd.f32 %v3495, %v3715
        %v3717 = vpop.f32.mrb[0].mxu0
        %3718 = vmatprep.mubr.bf16.mxu0 0
        %3719 = vmatmul.mubr.bf16.gmra.mrb[0].mxu0 %v3579
        %v3720 = vpop.f32.mrb[0].mxu0
        %v3721 = vadd.f32 %v3500, %v3720
        %v3722 = vpop.f32.mrb[0].mxu0
        %v3723 = vpop.f32.mrb[0].mxu0
        %v3724 = vadd.f32 %v3503, %v3723
        %v3725 = vpop.f32.mrb[0].mxu0
        %3726 = vmatprep.mubr.bf16.mxu0 0
        %3727 = vmatmul.mubr.bf16.gmra.mrb[0].mxu0 %v3582
        %v3728 = vpop.f32.mrb[0].mxu0
        %v3729 = vadd.f32 %v3508, %v3728
        %v3730 = vpop.f32.mrb[0].mxu0
        %v3731 = vpop.f32.mrb[0].mxu0
        %v3732 = vadd.f32 %v3511, %v3731
        %v3733 = vpop.f32.mrb[0].mxu0
        %3734 = vmatprep.mubr.bf16.mxu0 0
        %3735 = vmatmul.mubr.bf16.gmra.mrb[0].mxu0 %v3585
        %v3736 = vpop.f32.mrb[0].mxu0
        %v3737 = vadd.f32 %v3516, %v3736
        %v3738 = vpop.f32.mrb[0].mxu0
        %v3739 = vpop.f32.mrb[0].mxu0
        %v3740 = vadd.f32 %v3519, %v3739
        %v3741 = vpop.f32.mrb[0].mxu0
        %3742 = vmatprep.mubr.bf16.mxu0 0
        %3743 = vmatmul.mubr.bf16.gmra.mrb[0].mxu0 %v3588
        %v3744 = vpop.f32.mrb[0].mxu0
        %v3745 = vadd.f32 %v3524, %v3744
        %v3746 = vpop.f32.mrb[0].mxu0
        %v3747 = vpop.f32.mrb[0].mxu0
        %v3748 = vadd.f32 %v3527, %v3747
        %v3749 = vpop.f32.mrb[0].mxu0
        %3750 = vdwg.mxu0
        %v3751 = vld [vmem:[%s427 + $0x9] sm:$0xff]
        %v3752 = vld [vmem:[%s427 + $0x11] sm:$0xff]
        %v3753 = vld [vmem:[%s427 + $0x29] sm:$0xff]
        %v3754 = vld [vmem:[%s427 + $0x31] sm:$0xff]
        %v3755 = vld [vmem:[%s427 + $0x49] sm:$0xff]
        %v3756 = vld [vmem:[%s427 + $0x51] sm:$0xff]
        %v3757 = vld [vmem:[%s427 + $0x69] sm:$0xff]
        %v3758 = vld [vmem:[%s427 + $0x71] sm:$0xff]
        %v3759 = vld [vmem:[%s427 + $0x89] sm:$0xff]
        %v3760 = vld [vmem:[%s427 + $0x91] sm:$0xff]
        %v3761 = vld [vmem:[%s427 + $0xa9] sm:$0xff]
        %v3762 = vld [vmem:[%s427 + $0xb1] sm:$0xff]
        %v3763 = vld [vmem:[%s427 + $0xc9] sm:$0xff]
        %v3764 = vld [vmem:[%s427 + $0xd1] sm:$0xff]
        %v3765 = vld [vmem:[%s427 + $0xe9] sm:$0xff]
        %v3766 = vld [vmem:[%s427 + $0xf1] sm:$0xff]
        %v3767 = vld [vmem:[%s427 + $0x109] sm:$0xff]
        %v3768 = vld [vmem:[%s427 + $0x111] sm:$0xff]
        %v3769 = vld [vmem:[%s427 + $0x129] sm:$0xff]
        %v3770 = vld [vmem:[%s427 + $0x131] sm:$0xff]
        %v3771 = vld [vmem:[%s427 + $0x149] sm:$0xff]
        %v3772 = vld [vmem:[%s427 + $0x151] sm:$0xff]
        %v3773 = vld [vmem:[%s427 + $0x169] sm:$0xff]
        %v3774 = vld [vmem:[%s427 + $0x171] sm:$0xff]
        %v3775 = vld [vmem:[%s427 + $0x189] sm:$0xff]
        %v3776 = vld [vmem:[%s427 + $0x191] sm:$0xff]
        %v3777 = vld [vmem:[%s427 + $0x1a9] sm:$0xff]
        %v3778 = vld [vmem:[%s427 + $0x1b1] sm:$0xff]
        %v3779 = vld [vmem:[%s427 + $0x1c9] sm:$0xff]
        %v3780 = vld [vmem:[%s427 + $0x1d1] sm:$0xff]
        %v3781 = vld [vmem:[%s427 + $0x1e9] sm:$0xff]
        %v3782 = vld [vmem:[%s427 + $0x1f1] sm:$0xff]
        %v3783 = vpack.c.bf16 %v3752, %v3751
        %v3784 = vpack.c.bf16 %v3754, %v3753
        %v3785 = vpack.c.bf16 %v3756, %v3755
        %v3786 = vpack.c.bf16 %v3758, %v3757
        %v3787 = vpack.c.bf16 %v3760, %v3759
        %v3788 = vpack.c.bf16 %v3762, %v3761
        %v3789 = vpack.c.bf16 %v3764, %v3763
        %v3790 = vpack.c.bf16 %v3766, %v3765
        %v3791 = vpack.c.bf16 %v3768, %v3767
        %v3792 = vpack.c.bf16 %v3770, %v3769
        %v3793 = vpack.c.bf16 %v3772, %v3771
        %v3794 = vpack.c.bf16 %v3774, %v3773
        %v3795 = vpack.c.bf16 %v3776, %v3775
        %v3796 = vpack.c.bf16 %v3778, %v3777
        %v3797 = vpack.c.bf16 %v3780, %v3779
        %v3798 = vpack.c.bf16 %v3782, %v3781
        %v3803 = vunpack.c.l.b16 %v3185
        %v3804 = vunpack.c.l.b16 %v3186
        %v3805 = vunpack.c.l.b16 %v3187
        %v3806 = vunpack.c.l.b16 %v3188
        %v3807 = vpack.c.b16 %v3804, %v3803
        %v3808 = vpack.c.b16 %v3806, %v3805
        %v3812 = vsel %vm256, %v3783, 0
        %v3815 = vsel %vm256, %v3784, 0
        %v3818 = vsel %vm256, %v3785, 0
        %v3821 = vsel %vm256, %v3786, 0
        %v3824 = vsel %vm256, %v3787, 0
        %v3827 = vsel %vm256, %v3788, 0
        %v3830 = vsel %vm256, %v3789, 0
        %v3833 = vsel %vm256, %v3790, 0
        %v3836 = vsel %vm256, %v3791, 0
        %v3839 = vsel %vm256, %v3792, 0
        %v3842 = vsel %vm256, %v3793, 0
        %v3845 = vsel %vm256, %v3794, 0
        %v3848 = vsel %vm256, %v3795, 0
        %v3851 = vsel %vm256, %v3796, 0
        %v3854 = vsel %vm256, %v3797, 0
        %v3857 = vsel %vm256, %v3798, 0
        %3859 = vmatprep.subr.bf16.mxu0 0
        %3860 = vmatpush1.bf16.msra.mxu0 %v3807
        %3861 = vmatprep.subr.bf16.mxu0 0
        %3862 = vmatpush1.bf16.msra.mxu0 %v3808
        %3863 = vmatprep.subr.bf16.mxu0 0
        %3864 = vmatpush1.bf16.msra.mxu0 0
        %3865 = vmatprep.subr.bf16.mxu0 0
        %3866 = vmatpush1.bf16.msra.mxu0 0
        %3867 = vmatprep.subr.bf16.mxu0 0
        %3868 = vmatpush1.bf16.msra.mxu0 0
        %3869 = vmatprep.subr.bf16.mxu0 0
        %3870 = vmatpush1.bf16.msra.mxu0 0
        %3871 = vmatprep.subr.bf16.mxu0 0
        %3872 = vmatpush1.bf16.msra.mxu0 0
        %3873 = vmatprep.subr.bf16.mxu0 0
        %3874 = vmatpush1.bf16.msra.mxu0 0
        %3875 = vmatprep.subr.bf16.mxu0 0
        %3876 = vmatpush1.bf16.msra.mxu0 0
        %3877 = vmatprep.subr.bf16.mxu0 0
        %3878 = vmatpush1.bf16.msra.mxu0 0
        %3879 = vmatprep.subr.bf16.mxu0 0
        %3880 = vmatpush1.bf16.msra.mxu0 0
        %3881 = vmatprep.subr.bf16.mxu0 0
        %3882 = vmatpush1.bf16.msra.mxu0 0
        %3883 = vmatprep.subr.bf16.mxu0 0
        %3884 = vmatpush1.bf16.msra.mxu0 0
        %3885 = vmatprep.subr.bf16.mxu0 0
        %3886 = vmatpush1.bf16.msra.mxu0 0
        %3887 = vmatprep.subr.bf16.mxu0 0
        %3888 = vmatpush1.bf16.msra.mxu0 0
        %3889 = vmatprep.subr.bf16.mxu0 0
        %3890 = vmatpush1.bf16.msra.mxu0 0
        %3891 = vmatprep.mubr.bf16.mxu0 0
        %3892 = vmatmul.mubr.bf16.gmra.mrb[0].mxu0 %v3812
        %v3893 = vpop.f32.mrb[0].mxu0
        %v3894 = vadd.f32 0.0, %v3893
        %v3895 = vpop.f32.mrb[0].mxu0
        %v3896 = vpop.f32.mrb[0].mxu0
        %v3897 = vadd.f32 0.0, %v3896
        %v3898 = vpop.f32.mrb[0].mxu0
        %3899 = vmatprep.mubr.bf16.mxu0 0
        %3900 = vmatmul.mubr.bf16.gmra.mrb[0].mxu0 %v3815
        %v3901 = vpop.f32.mrb[0].mxu0
        %v3902 = vadd.f32 0.0, %v3901
        %v3903 = vpop.f32.mrb[0].mxu0
        %v3904 = vpop.f32.mrb[0].mxu0
        %v3905 = vadd.f32 0.0, %v3904
        %v3906 = vpop.f32.mrb[0].mxu0
        %3907 = vmatprep.mubr.bf16.mxu0 0
        %3908 = vmatmul.mubr.bf16.gmra.mrb[0].mxu0 %v3818
        %v3909 = vpop.f32.mrb[0].mxu0
        %v3910 = vadd.f32 0.0, %v3909
        %v3911 = vpop.f32.mrb[0].mxu0
        %v3912 = vpop.f32.mrb[0].mxu0
        %v3913 = vadd.f32 0.0, %v3912
        %v3914 = vpop.f32.mrb[0].mxu0
        %3915 = vmatprep.mubr.bf16.mxu0 0
        %3916 = vmatmul.mubr.bf16.gmra.mrb[0].mxu0 %v3821
        %v3917 = vpop.f32.mrb[0].mxu0
        %v3918 = vadd.f32 0.0, %v3917
        %v3919 = vpop.f32.mrb[0].mxu0
        %v3920 = vpop.f32.mrb[0].mxu0
        %v3921 = vadd.f32 0.0, %v3920
        %v3922 = vpop.f32.mrb[0].mxu0
        %3923 = vmatprep.mubr.bf16.mxu0 0
        %3924 = vmatmul.mubr.bf16.gmra.mrb[0].mxu0 %v3824
        %v3925 = vpop.f32.mrb[0].mxu0
        %v3926 = vadd.f32 0.0, %v3925
        %v3927 = vpop.f32.mrb[0].mxu0
        %v3928 = vpop.f32.mrb[0].mxu0
        %v3929 = vadd.f32 0.0, %v3928
        %v3930 = vpop.f32.mrb[0].mxu0
        %3931 = vmatprep.mubr.bf16.mxu0 0
        %3932 = vmatmul.mubr.bf16.gmra.mrb[0].mxu0 %v3827
        %v3933 = vpop.f32.mrb[0].mxu0
        %v3934 = vadd.f32 0.0, %v3933
        %v3935 = vpop.f32.mrb[0].mxu0
        %v3936 = vpop.f32.mrb[0].mxu0
        %v3937 = vadd.f32 0.0, %v3936
        %v3938 = vpop.f32.mrb[0].mxu0
        %3939 = vmatprep.mubr.bf16.mxu0 0
        %3940 = vmatmul.mubr.bf16.gmra.mrb[0].mxu0 %v3830
        %v3941 = vpop.f32.mrb[0].mxu0
        %v3942 = vadd.f32 0.0, %v3941
        %v3943 = vpop.f32.mrb[0].mxu0
        %v3944 = vpop.f32.mrb[0].mxu0
        %v3945 = vadd.f32 0.0, %v3944
        %v3946 = vpop.f32.mrb[0].mxu0
        %3947 = vmatprep.mubr.bf16.mxu0 0
        %3948 = vmatmul.mubr.bf16.gmra.mrb[0].mxu0 %v3833
        %v3949 = vpop.f32.mrb[0].mxu0
        %v3950 = vadd.f32 0.0, %v3949
        %v3951 = vpop.f32.mrb[0].mxu0
        %v3952 = vpop.f32.mrb[0].mxu0
        %v3953 = vadd.f32 0.0, %v3952
        %v3954 = vpop.f32.mrb[0].mxu0
        %3955 = vmatprep.mubr.bf16.mxu0 0
        %3956 = vmatmul.mubr.bf16.gmra.mrb[0].mxu0 %v3836
        %v3957 = vpop.f32.mrb[0].mxu0
        %v3958 = vadd.f32 0.0, %v3957
        %v3959 = vpop.f32.mrb[0].mxu0
        %v3960 = vpop.f32.mrb[0].mxu0
        %v3961 = vadd.f32 0.0, %v3960
        %v3962 = vpop.f32.mrb[0].mxu0
        %3963 = vmatprep.mubr.bf16.mxu0 0
        %3964 = vmatmul.mubr.bf16.gmra.mrb[0].mxu0 %v3839
        %v3965 = vpop.f32.mrb[0].mxu0
        %v3966 = vadd.f32 0.0, %v3965
        %v3967 = vpop.f32.mrb[0].mxu0
        %v3968 = vpop.f32.mrb[0].mxu0
        %v3969 = vadd.f32 0.0, %v3968
        %v3970 = vpop.f32.mrb[0].mxu0
        %3971 = vmatprep.mubr.bf16.mxu0 0
        %3972 = vmatmul.mubr.bf16.gmra.mrb[0].mxu0 %v3842
        %v3973 = vpop.f32.mrb[0].mxu0
        %v3974 = vadd.f32 0.0, %v3973
        %v3975 = vpop.f32.mrb[0].mxu0
        %v3976 = vpop.f32.mrb[0].mxu0
        %v3977 = vadd.f32 0.0, %v3976
        %v3978 = vpop.f32.mrb[0].mxu0
        %3979 = vmatprep.mubr.bf16.mxu0 0
        %3980 = vmatmul.mubr.bf16.gmra.mrb[0].mxu0 %v3845
        %v3981 = vpop.f32.mrb[0].mxu0
        %v3982 = vadd.f32 0.0, %v3981
        %v3983 = vpop.f32.mrb[0].mxu0
        %v3984 = vpop.f32.mrb[0].mxu0
        %v3985 = vadd.f32 0.0, %v3984
        %v3986 = vpop.f32.mrb[0].mxu0
        %3987 = vmatprep.mubr.bf16.mxu0 0
        %3988 = vmatmul.mubr.bf16.gmra.mrb[0].mxu0 %v3848
        %v3989 = vpop.f32.mrb[0].mxu0
        %v3990 = vadd.f32 0.0, %v3989
        %v3991 = vpop.f32.mrb[0].mxu0
        %v3992 = vpop.f32.mrb[0].mxu0
        %v3993 = vadd.f32 0.0, %v3992
        %v3994 = vpop.f32.mrb[0].mxu0
        %3995 = vmatprep.mubr.bf16.mxu0 0
        %3996 = vmatmul.mubr.bf16.gmra.mrb[0].mxu0 %v3851
        %v3997 = vpop.f32.mrb[0].mxu0
        %v3998 = vadd.f32 0.0, %v3997
        %v3999 = vpop.f32.mrb[0].mxu0
        %v4000 = vpop.f32.mrb[0].mxu0
        %v4001 = vadd.f32 0.0, %v4000
        %v4002 = vpop.f32.mrb[0].mxu0
        %4003 = vmatprep.mubr.bf16.mxu0 0
        %4004 = vmatmul.mubr.bf16.gmra.mrb[0].mxu0 %v3854
        %v4005 = vpop.f32.mrb[0].mxu0
        %v4006 = vadd.f32 0.0, %v4005
        %v4007 = vpop.f32.mrb[0].mxu0
        %v4008 = vpop.f32.mrb[0].mxu0
        %v4009 = vadd.f32 0.0, %v4008
        %v4010 = vpop.f32.mrb[0].mxu0
        %4011 = vmatprep.mubr.bf16.mxu0 0
        %4012 = vmatmul.mubr.bf16.gmra.mrb[0].mxu0 %v3857
        %v4013 = vpop.f32.mrb[0].mxu0
        %v4014 = vadd.f32 0.0, %v4013
        %v4015 = vpop.f32.mrb[0].mxu0
        %v4016 = vpop.f32.mrb[0].mxu0
        %v4017 = vadd.f32 0.0, %v4016
        %v4018 = vpop.f32.mrb[0].mxu0
        %4019 = vdwg.mxu0
        %v4020 = vadd.f32 %v3625, %v3894
        %v4021 = vadd.f32 %v3628, %v3897
        %v4022 = vadd.f32 %v3633, %v3902
        %v4023 = vadd.f32 %v3636, %v3905
        %v4024 = vadd.f32 %v3641, %v3910
        %v4025 = vadd.f32 %v3644, %v3913
        %v4026 = vadd.f32 %v3649, %v3918
        %v4027 = vadd.f32 %v3652, %v3921
        %v4028 = vadd.f32 %v3657, %v3926
        %v4029 = vadd.f32 %v3660, %v3929
        %v4030 = vadd.f32 %v3665, %v3934
        %v4031 = vadd.f32 %v3668, %v3937
        %v4032 = vadd.f32 %v3673, %v3942
        %v4033 = vadd.f32 %v3676, %v3945
        %v4034 = vadd.f32 %v3681, %v3950
        %v4035 = vadd.f32 %v3684, %v3953
        %v4036 = vadd.f32 %v3689, %v3958
        %v4037 = vadd.f32 %v3692, %v3961
        %v4038 = vadd.f32 %v3697, %v3966
        %v4039 = vadd.f32 %v3700, %v3969
        %v4040 = vadd.f32 %v3705, %v3974
        %v4041 = vadd.f32 %v3708, %v3977
        %v4042 = vadd.f32 %v3713, %v3982
        %v4043 = vadd.f32 %v3716, %v3985
        %v4044 = vadd.f32 %v3721, %v3990
        %v4045 = vadd.f32 %v3724, %v3993
        %v4046 = vadd.f32 %v3729, %v3998
        %v4047 = vadd.f32 %v3732, %v4001
        %v4048 = vadd.f32 %v3737, %v4006
        %v4049 = vadd.f32 %v3740, %v4009
        %v4050 = vadd.f32 %v3745, %v4014
        %v4051 = vadd.f32 %v3748, %v4017
        %v4052 = vld [vmem:[%s358 + $0x7] sm:$0xff]
        %v4053 = vld [vmem:[%s358 + $0xf] sm:$0xff]
        %v4054 = vld [vmem:[%s358 + $0x27] sm:$0xff]
        %v4055 = vld [vmem:[%s358 + $0x2f] sm:$0xff]
        %v4056 = vld [vmem:[%s358 + $0x47] sm:$0xff]
        %v4057 = vld [vmem:[%s358 + $0x4f] sm:$0xff]
        %v4058 = vld [vmem:[%s358 + $0x67] sm:$0xff]
        %v4059 = vld [vmem:[%s358 + $0x6f] sm:$0xff]
        %v4060 = vld [vmem:[%s358 + $0x87] sm:$0xff]
        %v4061 = vld [vmem:[%s358 + $0x8f] sm:$0xff]
        %v4062 = vld [vmem:[%s358 + $0xa7] sm:$0xff]
        %v4063 = vld [vmem:[%s358 + $0xaf] sm:$0xff]
        %v4064 = vld [vmem:[%s358 + $0xc7] sm:$0xff]
        %v4065 = vld [vmem:[%s358 + $0xcf] sm:$0xff]
        %v4066 = vld [vmem:[%s358 + $0xe7] sm:$0xff]
        %v4067 = vld [vmem:[%s358 + $0xef] sm:$0xff]
        %v4068 = vld [vmem:[%s358 + $0x107] sm:$0xff]
        %v4069 = vld [vmem:[%s358 + $0x10f] sm:$0xff]
        %v4070 = vld [vmem:[%s358 + $0x127] sm:$0xff]
        %v4071 = vld [vmem:[%s358 + $0x12f] sm:$0xff]
        %v4072 = vld [vmem:[%s358 + $0x147] sm:$0xff]
        %v4073 = vld [vmem:[%s358 + $0x14f] sm:$0xff]
        %v4074 = vld [vmem:[%s358 + $0x167] sm:$0xff]
        %v4075 = vld [vmem:[%s358 + $0x16f] sm:$0xff]
        %v4076 = vld [vmem:[%s358 + $0x187] sm:$0xff]
        %v4077 = vld [vmem:[%s358 + $0x18f] sm:$0xff]
        %v4078 = vld [vmem:[%s358 + $0x1a7] sm:$0xff]
        %v4079 = vld [vmem:[%s358 + $0x1af] sm:$0xff]
        %v4080 = vld [vmem:[%s358 + $0x1c7] sm:$0xff]
        %v4081 = vld [vmem:[%s358 + $0x1cf] sm:$0xff]
        %v4082 = vld [vmem:[%s358 + $0x1e7] sm:$0xff]
        %v4083 = vld [vmem:[%s358 + $0x1ef] sm:$0xff]
        %v4084 = vpack.c.bf16 %v4053, %v4052
        %v4085 = vpack.c.bf16 %v4055, %v4054
        %v4086 = vpack.c.bf16 %v4057, %v4056
        %v4087 = vpack.c.bf16 %v4059, %v4058
        %v4088 = vpack.c.bf16 %v4061, %v4060
        %v4089 = vpack.c.bf16 %v4063, %v4062
        %v4090 = vpack.c.bf16 %v4065, %v4064
        %v4091 = vpack.c.bf16 %v4067, %v4066
        %v4092 = vpack.c.bf16 %v4069, %v4068
        %v4093 = vpack.c.bf16 %v4071, %v4070
        %v4094 = vpack.c.bf16 %v4073, %v4072
        %v4095 = vpack.c.bf16 %v4075, %v4074
        %v4096 = vpack.c.bf16 %v4077, %v4076
        %v4097 = vpack.c.bf16 %v4079, %v4078
        %v4098 = vpack.c.bf16 %v4081, %v4080
        %v4099 = vpack.c.bf16 %v4083, %v4082
        %v4104 = vunpack.c.l.b16 %v3189
        %v4105 = vunpack.c.l.b16 %v3190
        %v4106 = vunpack.c.l.b16 %v3191
        %v4107 = vunpack.c.l.b16 %v3192
        %v4108 = vpack.c.b16 %v4105, %v4104
        %v4109 = vpack.c.b16 %v4107, %v4106
        %v4113 = vsel %vm256, %v4084, 0
        %v4116 = vsel %vm256, %v4085, 0
        %v4119 = vsel %vm256, %v4086, 0
        %v4122 = vsel %vm256, %v4087, 0
        %v4125 = vsel %vm256, %v4088, 0
        %v4128 = vsel %vm256, %v4089, 0
        %v4131 = vsel %vm256, %v4090, 0
        %v4134 = vsel %vm256, %v4091, 0
        %v4137 = vsel %vm256, %v4092, 0
        %v4140 = vsel %vm256, %v4093, 0
        %v4143 = vsel %vm256, %v4094, 0
        %v4146 = vsel %vm256, %v4095, 0
        %v4149 = vsel %vm256, %v4096, 0
        %v4152 = vsel %vm256, %v4097, 0
        %v4155 = vsel %vm256, %v4098, 0
        %v4158 = vsel %vm256, %v4099, 0
        %4160 = vmatprep.subr.bf16.mxu0 0
        %4161 = vmatpush1.bf16.msra.mxu0 %v4108
        %4162 = vmatprep.subr.bf16.mxu0 0
        %4163 = vmatpush1.bf16.msra.mxu0 %v4109
        %4164 = vmatprep.subr.bf16.mxu0 0
        %4165 = vmatpush1.bf16.msra.mxu0 0
        %4166 = vmatprep.subr.bf16.mxu0 0
        %4167 = vmatpush1.bf16.msra.mxu0 0
        %4168 = vmatprep.subr.bf16.mxu0 0
        %4169 = vmatpush1.bf16.msra.mxu0 0
        %4170 = vmatprep.subr.bf16.mxu0 0
        %4171 = vmatpush1.bf16.msra.mxu0 0
        %4172 = vmatprep.subr.bf16.mxu0 0
        %4173 = vmatpush1.bf16.msra.mxu0 0
        %4174 = vmatprep.subr.bf16.mxu0 0
        %4175 = vmatpush1.bf16.msra.mxu0 0
        %4176 = vmatprep.subr.bf16.mxu0 0
        %4177 = vmatpush1.bf16.msra.mxu0 0
        %4178 = vmatprep.subr.bf16.mxu0 0
        %4179 = vmatpush1.bf16.msra.mxu0 0
        %4180 = vmatprep.subr.bf16.mxu0 0
        %4181 = vmatpush1.bf16.msra.mxu0 0
        %4182 = vmatprep.subr.bf16.mxu0 0
        %4183 = vmatpush1.bf16.msra.mxu0 0
        %4184 = vmatprep.subr.bf16.mxu0 0
        %4185 = vmatpush1.bf16.msra.mxu0 0
        %4186 = vmatprep.subr.bf16.mxu0 0
        %4187 = vmatpush1.bf16.msra.mxu0 0
        %4188 = vmatprep.subr.bf16.mxu0 0
        %4189 = vmatpush1.bf16.msra.mxu0 0
        %4190 = vmatprep.subr.bf16.mxu0 0
        %4191 = vmatpush1.bf16.msra.mxu0 0
        %4192 = vmatprep.mubr.bf16.mxu0 0
        %4193 = vmatmul.mubr.bf16.gmra.mrb[0].mxu0 %v4113
        %v4194 = vpop.f32.mrb[0].mxu0
        %v4195 = vadd.f32 0.0, %v4194
        %v4196 = vpop.f32.mrb[0].mxu0
        %v4197 = vpop.f32.mrb[0].mxu0
        %v4198 = vadd.f32 0.0, %v4197
        %v4199 = vpop.f32.mrb[0].mxu0
        %4200 = vmatprep.mubr.bf16.mxu0 0
        %4201 = vmatmul.mubr.bf16.gmra.mrb[0].mxu0 %v4116
        %v4202 = vpop.f32.mrb[0].mxu0
        %v4203 = vadd.f32 0.0, %v4202
        %v4204 = vpop.f32.mrb[0].mxu0
        %v4205 = vpop.f32.mrb[0].mxu0
        %v4206 = vadd.f32 0.0, %v4205
        %v4207 = vpop.f32.mrb[0].mxu0
        %4208 = vmatprep.mubr.bf16.mxu0 0
        %4209 = vmatmul.mubr.bf16.gmra.mrb[0].mxu0 %v4119
        %v4210 = vpop.f32.mrb[0].mxu0
        %v4211 = vadd.f32 0.0, %v4210
        %v4212 = vpop.f32.mrb[0].mxu0
        %v4213 = vpop.f32.mrb[0].mxu0
        %v4214 = vadd.f32 0.0, %v4213
        %v4215 = vpop.f32.mrb[0].mxu0
        %4216 = vmatprep.mubr.bf16.mxu0 0
        %4217 = vmatmul.mubr.bf16.gmra.mrb[0].mxu0 %v4122
        %v4218 = vpop.f32.mrb[0].mxu0
        %v4219 = vadd.f32 0.0, %v4218
        %v4220 = vpop.f32.mrb[0].mxu0
        %v4221 = vpop.f32.mrb[0].mxu0
        %v4222 = vadd.f32 0.0, %v4221
        %v4223 = vpop.f32.mrb[0].mxu0
        %4224 = vmatprep.mubr.bf16.mxu0 0
        %4225 = vmatmul.mubr.bf16.gmra.mrb[0].mxu0 %v4125
        %v4226 = vpop.f32.mrb[0].mxu0
        %v4227 = vadd.f32 0.0, %v4226
        %v4228 = vpop.f32.mrb[0].mxu0
        %v4229 = vpop.f32.mrb[0].mxu0
        %v4230 = vadd.f32 0.0, %v4229
        %v4231 = vpop.f32.mrb[0].mxu0
        %4232 = vmatprep.mubr.bf16.mxu0 0
        %4233 = vmatmul.mubr.bf16.gmra.mrb[0].mxu0 %v4128
        %v4234 = vpop.f32.mrb[0].mxu0
        %v4235 = vadd.f32 0.0, %v4234
        %v4236 = vpop.f32.mrb[0].mxu0
        %v4237 = vpop.f32.mrb[0].mxu0
        %v4238 = vadd.f32 0.0, %v4237
        %v4239 = vpop.f32.mrb[0].mxu0
        %4240 = vmatprep.mubr.bf16.mxu0 0
        %4241 = vmatmul.mubr.bf16.gmra.mrb[0].mxu0 %v4131
        %v4242 = vpop.f32.mrb[0].mxu0
        %v4243 = vadd.f32 0.0, %v4242
        %v4244 = vpop.f32.mrb[0].mxu0
        %v4245 = vpop.f32.mrb[0].mxu0
        %v4246 = vadd.f32 0.0, %v4245
        %v4247 = vpop.f32.mrb[0].mxu0
        %4248 = vmatprep.mubr.bf16.mxu0 0
        %4249 = vmatmul.mubr.bf16.gmra.mrb[0].mxu0 %v4134
        %v4250 = vpop.f32.mrb[0].mxu0
        %v4251 = vadd.f32 0.0, %v4250
        %v4252 = vpop.f32.mrb[0].mxu0
        %v4253 = vpop.f32.mrb[0].mxu0
        %v4254 = vadd.f32 0.0, %v4253
        %v4255 = vpop.f32.mrb[0].mxu0
        %4256 = vmatprep.mubr.bf16.mxu0 0
        %4257 = vmatmul.mubr.bf16.gmra.mrb[0].mxu0 %v4137
        %v4258 = vpop.f32.mrb[0].mxu0
        %v4259 = vadd.f32 0.0, %v4258
        %v4260 = vpop.f32.mrb[0].mxu0
        %v4261 = vpop.f32.mrb[0].mxu0
        %v4262 = vadd.f32 0.0, %v4261
        %v4263 = vpop.f32.mrb[0].mxu0
        %4264 = vmatprep.mubr.bf16.mxu0 0
        %4265 = vmatmul.mubr.bf16.gmra.mrb[0].mxu0 %v4140
        %v4266 = vpop.f32.mrb[0].mxu0
        %v4267 = vadd.f32 0.0, %v4266
        %v4268 = vpop.f32.mrb[0].mxu0
        %v4269 = vpop.f32.mrb[0].mxu0
        %v4270 = vadd.f32 0.0, %v4269
        %v4271 = vpop.f32.mrb[0].mxu0
        %4272 = vmatprep.mubr.bf16.mxu0 0
        %4273 = vmatmul.mubr.bf16.gmra.mrb[0].mxu0 %v4143
        %v4274 = vpop.f32.mrb[0].mxu0
        %v4275 = vadd.f32 0.0, %v4274
        %v4276 = vpop.f32.mrb[0].mxu0
        %v4277 = vpop.f32.mrb[0].mxu0
        %v4278 = vadd.f32 0.0, %v4277
        %v4279 = vpop.f32.mrb[0].mxu0
        %4280 = vmatprep.mubr.bf16.mxu0 0
        %4281 = vmatmul.mubr.bf16.gmra.mrb[0].mxu0 %v4146
        %v4282 = vpop.f32.mrb[0].mxu0
        %v4283 = vadd.f32 0.0, %v4282
        %v4284 = vpop.f32.mrb[0].mxu0
        %v4285 = vpop.f32.mrb[0].mxu0
        %v4286 = vadd.f32 0.0, %v4285
        %v4287 = vpop.f32.mrb[0].mxu0
        %4288 = vmatprep.mubr.bf16.mxu0 0
        %4289 = vmatmul.mubr.bf16.gmra.mrb[0].mxu0 %v4149
        %v4290 = vpop.f32.mrb[0].mxu0
        %v4291 = vadd.f32 0.0, %v4290
        %v4292 = vpop.f32.mrb[0].mxu0
        %v4293 = vpop.f32.mrb[0].mxu0
        %v4294 = vadd.f32 0.0, %v4293
        %v4295 = vpop.f32.mrb[0].mxu0
        %4296 = vmatprep.mubr.bf16.mxu0 0
        %4297 = vmatmul.mubr.bf16.gmra.mrb[0].mxu0 %v4152
        %v4298 = vpop.f32.mrb[0].mxu0
        %v4299 = vadd.f32 0.0, %v4298
        %v4300 = vpop.f32.mrb[0].mxu0
        %v4301 = vpop.f32.mrb[0].mxu0
        %v4302 = vadd.f32 0.0, %v4301
        %v4303 = vpop.f32.mrb[0].mxu0
        %4304 = vmatprep.mubr.bf16.mxu0 0
        %4305 = vmatmul.mubr.bf16.gmra.mrb[0].mxu0 %v4155
        %v4306 = vpop.f32.mrb[0].mxu0
        %v4307 = vadd.f32 0.0, %v4306
        %v4308 = vpop.f32.mrb[0].mxu0
        %v4309 = vpop.f32.mrb[0].mxu0
        %v4310 = vadd.f32 0.0, %v4309
        %v4311 = vpop.f32.mrb[0].mxu0
        %4312 = vmatprep.mubr.bf16.mxu0 0
        %4313 = vmatmul.mubr.bf16.gmra.mrb[0].mxu0 %v4158
        %v4314 = vpop.f32.mrb[0].mxu0
        %v4315 = vadd.f32 0.0, %v4314
        %v4316 = vpop.f32.mrb[0].mxu0
        %v4317 = vpop.f32.mrb[0].mxu0
        %v4318 = vadd.f32 0.0, %v4317
        %v4319 = vpop.f32.mrb[0].mxu0
        %4320 = vdwg.mxu0
        %v4321 = vadd.f32 %v4020, %v4195
        %v4322 = vadd.f32 %v4021, %v4198
        %v4323 = vadd.f32 %v4022, %v4203
        %v4324 = vadd.f32 %v4023, %v4206
        %v4325 = vadd.f32 %v4024, %v4211
        %v4326 = vadd.f32 %v4025, %v4214
        %v4327 = vadd.f32 %v4026, %v4219
        %v4328 = vadd.f32 %v4027, %v4222
        %v4329 = vadd.f32 %v4028, %v4227
        %v4330 = vadd.f32 %v4029, %v4230
        %v4331 = vadd.f32 %v4030, %v4235
        %v4332 = vadd.f32 %v4031, %v4238
        %v4333 = vadd.f32 %v4032, %v4243
        %v4334 = vadd.f32 %v4033, %v4246
        %v4335 = vadd.f32 %v4034, %v4251
        %v4336 = vadd.f32 %v4035, %v4254
        %v4337 = vadd.f32 %v4036, %v4259
        %v4338 = vadd.f32 %v4037, %v4262
        %v4339 = vadd.f32 %v4038, %v4267
        %v4340 = vadd.f32 %v4039, %v4270
        %v4341 = vadd.f32 %v4040, %v4275
        %v4342 = vadd.f32 %v4041, %v4278
        %v4343 = vadd.f32 %v4042, %v4283
        %v4344 = vadd.f32 %v4043, %v4286
        %v4345 = vadd.f32 %v4044, %v4291
        %v4346 = vadd.f32 %v4045, %v4294
        %v4347 = vadd.f32 %v4046, %v4299
        %v4348 = vadd.f32 %v4047, %v4302
        %v4349 = vadd.f32 %v4048, %v4307
        %v4350 = vadd.f32 %v4049, %v4310
        %v4351 = vadd.f32 %v4050, %v4315
        %v4352 = vadd.f32 %v4051, %v4318
        %v4353 = vld [vmem:[%s358 + $0x8] sm:$0xff]
        %v4354 = vld [vmem:[%s358 + $0x10] sm:$0xff]
        %v4355 = vld [vmem:[%s358 + $0x28] sm:$0xff]
        %v4356 = vld [vmem:[%s358 + $0x30] sm:$0xff]
        %v4357 = vld [vmem:[%s358 + $0x48] sm:$0xff]
        %v4358 = vld [vmem:[%s358 + $0x50] sm:$0xff]
        %v4359 = vld [vmem:[%s358 + $0x68] sm:$0xff]
        %v4360 = vld [vmem:[%s358 + $0x70] sm:$0xff]
        %v4361 = vld [vmem:[%s358 + $0x88] sm:$0xff]
        %v4362 = vld [vmem:[%s358 + $0x90] sm:$0xff]
        %v4363 = vld [vmem:[%s358 + $0xa8] sm:$0xff]
        %v4364 = vld [vmem:[%s358 + $0xb0] sm:$0xff]
        %v4365 = vld [vmem:[%s358 + $0xc8] sm:$0xff]
        %v4366 = vld [vmem:[%s358 + $0xd0] sm:$0xff]
        %v4367 = vld [vmem:[%s358 + $0xe8] sm:$0xff]
        %v4368 = vld [vmem:[%s358 + $0xf0] sm:$0xff]
        %v4369 = vld [vmem:[%s358 + $0x108] sm:$0xff]
        %v4370 = vld [vmem:[%s358 + $0x110] sm:$0xff]
        %v4371 = vld [vmem:[%s358 + $0x128] sm:$0xff]
        %v4372 = vld [vmem:[%s358 + $0x130] sm:$0xff]
        %v4373 = vld [vmem:[%s358 + $0x148] sm:$0xff]
        %v4374 = vld [vmem:[%s358 + $0x150] sm:$0xff]
        %v4375 = vld [vmem:[%s358 + $0x168] sm:$0xff]
        %v4376 = vld [vmem:[%s358 + $0x170] sm:$0xff]
        %v4377 = vld [vmem:[%s358 + $0x188] sm:$0xff]
        %v4378 = vld [vmem:[%s358 + $0x190] sm:$0xff]
        %v4379 = vld [vmem:[%s358 + $0x1a8] sm:$0xff]
        %v4380 = vld [vmem:[%s358 + $0x1b0] sm:$0xff]
        %v4381 = vld [vmem:[%s358 + $0x1c8] sm:$0xff]
        %v4382 = vld [vmem:[%s358 + $0x1d0] sm:$0xff]
        %v4383 = vld [vmem:[%s358 + $0x1e8] sm:$0xff]
        %v4384 = vld [vmem:[%s358 + $0x1f0] sm:$0xff]
        %v4385 = vpack.c.bf16 %v4354, %v4353
        %v4386 = vpack.c.bf16 %v4356, %v4355
        %v4387 = vpack.c.bf16 %v4358, %v4357
        %v4388 = vpack.c.bf16 %v4360, %v4359
        %v4389 = vpack.c.bf16 %v4362, %v4361
        %v4390 = vpack.c.bf16 %v4364, %v4363
        %v4391 = vpack.c.bf16 %v4366, %v4365
        %v4392 = vpack.c.bf16 %v4368, %v4367
        %v4393 = vpack.c.bf16 %v4370, %v4369
        %v4394 = vpack.c.bf16 %v4372, %v4371
        %v4395 = vpack.c.bf16 %v4374, %v4373
        %v4396 = vpack.c.bf16 %v4376, %v4375
        %v4397 = vpack.c.bf16 %v4378, %v4377
        %v4398 = vpack.c.bf16 %v4380, %v4379
        %v4399 = vpack.c.bf16 %v4382, %v4381
        %v4400 = vpack.c.bf16 %v4384, %v4383
        %v4405 = vunpack.c.l.b16 %v3193
        %v4406 = vunpack.c.l.b16 %v3194
        %v4407 = vunpack.c.l.b16 %v3195
        %v4408 = vunpack.c.l.b16 %v3196
        %v4409 = vpack.c.b16 %v4406, %v4405
        %v4410 = vpack.c.b16 %v4408, %v4407
        %v4414 = vsel %vm256, %v4385, 0
        %v4417 = vsel %vm256, %v4386, 0
        %v4420 = vsel %vm256, %v4387, 0
        %v4423 = vsel %vm256, %v4388, 0
        %v4426 = vsel %vm256, %v4389, 0
        %v4429 = vsel %vm256, %v4390, 0
        %v4432 = vsel %vm256, %v4391, 0
        %v4435 = vsel %vm256, %v4392, 0
        %v4438 = vsel %vm256, %v4393, 0
        %v4441 = vsel %vm256, %v4394, 0
        %v4444 = vsel %vm256, %v4395, 0
        %v4447 = vsel %vm256, %v4396, 0
        %v4450 = vsel %vm256, %v4397, 0
        %v4453 = vsel %vm256, %v4398, 0
        %v4456 = vsel %vm256, %v4399, 0
        %v4459 = vsel %vm256, %v4400, 0
        %4461 = vmatprep.subr.bf16.mxu0 0
        %4462 = vmatpush1.bf16.msra.mxu0 %v4409
        %4463 = vmatprep.subr.bf16.mxu0 0
        %4464 = vmatpush1.bf16.msra.mxu0 %v4410
        %4465 = vmatprep.subr.bf16.mxu0 0
        %4466 = vmatpush1.bf16.msra.mxu0 0
        %4467 = vmatprep.subr.bf16.mxu0 0
        %4468 = vmatpush1.bf16.msra.mxu0 0
        %4469 = vmatprep.subr.bf16.mxu0 0
        %4470 = vmatpush1.bf16.msra.mxu0 0
        %4471 = vmatprep.subr.bf16.mxu0 0
        %4472 = vmatpush1.bf16.msra.mxu0 0
        %4473 = vmatprep.subr.bf16.mxu0 0
        %4474 = vmatpush1.bf16.msra.mxu0 0
        %4475 = vmatprep.subr.bf16.mxu0 0
        %4476 = vmatpush1.bf16.msra.mxu0 0
        %4477 = vmatprep.subr.bf16.mxu0 0
        %4478 = vmatpush1.bf16.msra.mxu0 0
        %4479 = vmatprep.subr.bf16.mxu0 0
        %4480 = vmatpush1.bf16.msra.mxu0 0
        %4481 = vmatprep.subr.bf16.mxu0 0
        %4482 = vmatpush1.bf16.msra.mxu0 0
        %4483 = vmatprep.subr.bf16.mxu0 0
        %4484 = vmatpush1.bf16.msra.mxu0 0
        %4485 = vmatprep.subr.bf16.mxu0 0
        %4486 = vmatpush1.bf16.msra.mxu0 0
        %4487 = vmatprep.subr.bf16.mxu0 0
        %4488 = vmatpush1.bf16.msra.mxu0 0
        %4489 = vmatprep.subr.bf16.mxu0 0
        %4490 = vmatpush1.bf16.msra.mxu0 0
        %4491 = vmatprep.subr.bf16.mxu0 0
        %4492 = vmatpush1.bf16.msra.mxu0 0
        %4493 = vmatprep.mubr.bf16.mxu0 0
        %4494 = vmatmul.mubr.bf16.gmra.mrb[0].mxu0 %v4414
        %v4495 = vpop.f32.mrb[0].mxu0
        %v4496 = vadd.f32 0.0, %v4495
        %v4497 = vpop.f32.mrb[0].mxu0
        %v4498 = vpop.f32.mrb[0].mxu0
        %v4499 = vadd.f32 0.0, %v4498
        %v4500 = vpop.f32.mrb[0].mxu0
        %4501 = vmatprep.mubr.bf16.mxu0 0
        %4502 = vmatmul.mubr.bf16.gmra.mrb[0].mxu0 %v4417
        %v4503 = vpop.f32.mrb[0].mxu0
        %v4504 = vadd.f32 0.0, %v4503
        %v4505 = vpop.f32.mrb[0].mxu0
        %v4506 = vpop.f32.mrb[0].mxu0
        %v4507 = vadd.f32 0.0, %v4506
        %v4508 = vpop.f32.mrb[0].mxu0
        %4509 = vmatprep.mubr.bf16.mxu0 0
        %4510 = vmatmul.mubr.bf16.gmra.mrb[0].mxu0 %v4420
        %v4511 = vpop.f32.mrb[0].mxu0
        %v4512 = vadd.f32 0.0, %v4511
        %v4513 = vpop.f32.mrb[0].mxu0
        %v4514 = vpop.f32.mrb[0].mxu0
        %v4515 = vadd.f32 0.0, %v4514
        %v4516 = vpop.f32.mrb[0].mxu0
        %4517 = vmatprep.mubr.bf16.mxu0 0
        %4518 = vmatmul.mubr.bf16.gmra.mrb[0].mxu0 %v4423
        %v4519 = vpop.f32.mrb[0].mxu0
        %v4520 = vadd.f32 0.0, %v4519
        %v4521 = vpop.f32.mrb[0].mxu0
        %v4522 = vpop.f32.mrb[0].mxu0
        %v4523 = vadd.f32 0.0, %v4522
        %v4524 = vpop.f32.mrb[0].mxu0
        %4525 = vmatprep.mubr.bf16.mxu0 0
        %4526 = vmatmul.mubr.bf16.gmra.mrb[0].mxu0 %v4426
        %v4527 = vpop.f32.mrb[0].mxu0
        %v4528 = vadd.f32 0.0, %v4527
        %v4529 = vpop.f32.mrb[0].mxu0
        %v4530 = vpop.f32.mrb[0].mxu0
        %v4531 = vadd.f32 0.0, %v4530
        %v4532 = vpop.f32.mrb[0].mxu0
        %4533 = vmatprep.mubr.bf16.mxu0 0
        %4534 = vmatmul.mubr.bf16.gmra.mrb[0].mxu0 %v4429
        %v4535 = vpop.f32.mrb[0].mxu0
        %v4536 = vadd.f32 0.0, %v4535
        %v4537 = vpop.f32.mrb[0].mxu0
        %v4538 = vpop.f32.mrb[0].mxu0
        %v4539 = vadd.f32 0.0, %v4538
        %v4540 = vpop.f32.mrb[0].mxu0
        %4541 = vmatprep.mubr.bf16.mxu0 0
        %4542 = vmatmul.mubr.bf16.gmra.mrb[0].mxu0 %v4432
        %v4543 = vpop.f32.mrb[0].mxu0
        %v4544 = vadd.f32 0.0, %v4543
        %v4545 = vpop.f32.mrb[0].mxu0
        %v4546 = vpop.f32.mrb[0].mxu0
        %v4547 = vadd.f32 0.0, %v4546
        %v4548 = vpop.f32.mrb[0].mxu0
        %4549 = vmatprep.mubr.bf16.mxu0 0
        %4550 = vmatmul.mubr.bf16.gmra.mrb[0].mxu0 %v4435
        %v4551 = vpop.f32.mrb[0].mxu0
        %v4552 = vadd.f32 0.0, %v4551
        %v4553 = vpop.f32.mrb[0].mxu0
        %v4554 = vpop.f32.mrb[0].mxu0
        %v4555 = vadd.f32 0.0, %v4554
        %v4556 = vpop.f32.mrb[0].mxu0
        %4557 = vmatprep.mubr.bf16.mxu0 0
        %4558 = vmatmul.mubr.bf16.gmra.mrb[0].mxu0 %v4438
        %v4559 = vpop.f32.mrb[0].mxu0
        %v4560 = vadd.f32 0.0, %v4559
        %v4561 = vpop.f32.mrb[0].mxu0
        %v4562 = vpop.f32.mrb[0].mxu0
        %v4563 = vadd.f32 0.0, %v4562
        %v4564 = vpop.f32.mrb[0].mxu0
        %4565 = vmatprep.mubr.bf16.mxu0 0
        %4566 = vmatmul.mubr.bf16.gmra.mrb[0].mxu0 %v4441
        %v4567 = vpop.f32.mrb[0].mxu0
        %v4568 = vadd.f32 0.0, %v4567
        %v4569 = vpop.f32.mrb[0].mxu0
        %v4570 = vpop.f32.mrb[0].mxu0
        %v4571 = vadd.f32 0.0, %v4570
        %v4572 = vpop.f32.mrb[0].mxu0
        %4573 = vmatprep.mubr.bf16.mxu0 0
        %4574 = vmatmul.mubr.bf16.gmra.mrb[0].mxu0 %v4444
        %v4575 = vpop.f32.mrb[0].mxu0
        %v4576 = vadd.f32 0.0, %v4575
        %v4577 = vpop.f32.mrb[0].mxu0
        %v4578 = vpop.f32.mrb[0].mxu0
        %v4579 = vadd.f32 0.0, %v4578
        %v4580 = vpop.f32.mrb[0].mxu0
        %4581 = vmatprep.mubr.bf16.mxu0 0
        %4582 = vmatmul.mubr.bf16.gmra.mrb[0].mxu0 %v4447
        %v4583 = vpop.f32.mrb[0].mxu0
        %v4584 = vadd.f32 0.0, %v4583
        %v4585 = vpop.f32.mrb[0].mxu0
        %v4586 = vpop.f32.mrb[0].mxu0
        %v4587 = vadd.f32 0.0, %v4586
        %v4588 = vpop.f32.mrb[0].mxu0
        %4589 = vmatprep.mubr.bf16.mxu0 0
        %4590 = vmatmul.mubr.bf16.gmra.mrb[0].mxu0 %v4450
        %v4591 = vpop.f32.mrb[0].mxu0
        %v4592 = vadd.f32 0.0, %v4591
        %v4593 = vpop.f32.mrb[0].mxu0
        %v4594 = vpop.f32.mrb[0].mxu0
        %v4595 = vadd.f32 0.0, %v4594
        %v4596 = vpop.f32.mrb[0].mxu0
        %4597 = vmatprep.mubr.bf16.mxu0 0
        %4598 = vmatmul.mubr.bf16.gmra.mrb[0].mxu0 %v4453
        %v4599 = vpop.f32.mrb[0].mxu0
        %v4600 = vadd.f32 0.0, %v4599
        %v4601 = vpop.f32.mrb[0].mxu0
        %v4602 = vpop.f32.mrb[0].mxu0
        %v4603 = vadd.f32 0.0, %v4602
        %v4604 = vpop.f32.mrb[0].mxu0
        %4605 = vmatprep.mubr.bf16.mxu0 0
        %4606 = vmatmul.mubr.bf16.gmra.mrb[0].mxu0 %v4456
        %v4607 = vpop.f32.mrb[0].mxu0
        %v4608 = vadd.f32 0.0, %v4607
        %v4609 = vpop.f32.mrb[0].mxu0
        %v4610 = vpop.f32.mrb[0].mxu0
        %v4611 = vadd.f32 0.0, %v4610
        %v4612 = vpop.f32.mrb[0].mxu0
        %4613 = vmatprep.mubr.bf16.mxu0 0
        %4614 = vmatmul.mubr.bf16.gmra.mrb[0].mxu0 %v4459
        %v4615 = vpop.f32.mrb[0].mxu0
        %v4616 = vadd.f32 0.0, %v4615
        %v4617 = vpop.f32.mrb[0].mxu0
        %v4618 = vpop.f32.mrb[0].mxu0
        %v4619 = vadd.f32 0.0, %v4618
        %v4620 = vpop.f32.mrb[0].mxu0
        %4621 = vdwg.mxu0
        %v4622 = vadd.f32 %v4321, %v4496
        %v4623 = vadd.f32 %v4322, %v4499
        %v4624 = vadd.f32 %v4323, %v4504
        %v4625 = vadd.f32 %v4324, %v4507
        %v4626 = vadd.f32 %v4325, %v4512
        %v4627 = vadd.f32 %v4326, %v4515
        %v4628 = vadd.f32 %v4327, %v4520
        %v4629 = vadd.f32 %v4328, %v4523
        %v4630 = vadd.f32 %v4329, %v4528
        %v4631 = vadd.f32 %v4330, %v4531
        %v4632 = vadd.f32 %v4331, %v4536
        %v4633 = vadd.f32 %v4332, %v4539
        %v4634 = vadd.f32 %v4333, %v4544
        %v4635 = vadd.f32 %v4334, %v4547
        %v4636 = vadd.f32 %v4335, %v4552
        %v4637 = vadd.f32 %v4336, %v4555
        %v4638 = vadd.f32 %v4337, %v4560
        %v4639 = vadd.f32 %v4338, %v4563
        %v4640 = vadd.f32 %v4339, %v4568
        %v4641 = vadd.f32 %v4340, %v4571
        %v4642 = vadd.f32 %v4341, %v4576
        %v4643 = vadd.f32 %v4342, %v4579
        %v4644 = vadd.f32 %v4343, %v4584
        %v4645 = vadd.f32 %v4344, %v4587
        %v4646 = vadd.f32 %v4345, %v4592
        %v4647 = vadd.f32 %v4346, %v4595
        %v4648 = vadd.f32 %v4347, %v4600
        %v4649 = vadd.f32 %v4348, %v4603
        %v4650 = vadd.f32 %v4349, %v4608
        %v4651 = vadd.f32 %v4350, %v4611
        %v4652 = vadd.f32 %v4351, %v4616
        %v4653 = vadd.f32 %v4352, %v4619
        %v4654 = vld [vmem:[%s358 + $0x9] sm:$0xff]
        %v4655 = vld [vmem:[%s358 + $0x11] sm:$0xff]
        %v4656 = vld [vmem:[%s358 + $0x29] sm:$0xff]
        %v4657 = vld [vmem:[%s358 + $0x31] sm:$0xff]
        %v4658 = vld [vmem:[%s358 + $0x49] sm:$0xff]
        %v4659 = vld [vmem:[%s358 + $0x51] sm:$0xff]
        %v4660 = vld [vmem:[%s358 + $0x69] sm:$0xff]
        %v4661 = vld [vmem:[%s358 + $0x71] sm:$0xff]
        %v4662 = vld [vmem:[%s358 + $0x89] sm:$0xff]
        %v4663 = vld [vmem:[%s358 + $0x91] sm:$0xff]
        %v4664 = vld [vmem:[%s358 + $0xa9] sm:$0xff]
        %v4665 = vld [vmem:[%s358 + $0xb1] sm:$0xff]
        %v4666 = vld [vmem:[%s358 + $0xc9] sm:$0xff]
        %v4667 = vld [vmem:[%s358 + $0xd1] sm:$0xff]
        %v4668 = vld [vmem:[%s358 + $0xe9] sm:$0xff]
        %v4669 = vld [vmem:[%s358 + $0xf1] sm:$0xff]
        %v4670 = vld [vmem:[%s358 + $0x109] sm:$0xff]
        %v4671 = vld [vmem:[%s358 + $0x111] sm:$0xff]
        %v4672 = vld [vmem:[%s358 + $0x129] sm:$0xff]
        %v4673 = vld [vmem:[%s358 + $0x131] sm:$0xff]
        %v4674 = vld [vmem:[%s358 + $0x149] sm:$0xff]
        %v4675 = vld [vmem:[%s358 + $0x151] sm:$0xff]
        %v4676 = vld [vmem:[%s358 + $0x169] sm:$0xff]
        %v4677 = vld [vmem:[%s358 + $0x171] sm:$0xff]
        %v4678 = vld [vmem:[%s358 + $0x189] sm:$0xff]
        %v4679 = vld [vmem:[%s358 + $0x191] sm:$0xff]
        %v4680 = vld [vmem:[%s358 + $0x1a9] sm:$0xff]
        %v4681 = vld [vmem:[%s358 + $0x1b1] sm:$0xff]
        %v4682 = vld [vmem:[%s358 + $0x1c9] sm:$0xff]
        %v4683 = vld [vmem:[%s358 + $0x1d1] sm:$0xff]
        %v4684 = vld [vmem:[%s358 + $0x1e9] sm:$0xff]
        %v4685 = vld [vmem:[%s358 + $0x1f1] sm:$0xff]
        %v4686 = vpack.c.bf16 %v4655, %v4654
        %v4687 = vpack.c.bf16 %v4657, %v4656
        %v4688 = vpack.c.bf16 %v4659, %v4658
        %v4689 = vpack.c.bf16 %v4661, %v4660
        %v4690 = vpack.c.bf16 %v4663, %v4662
        %v4691 = vpack.c.bf16 %v4665, %v4664
        %v4692 = vpack.c.bf16 %v4667, %v4666
        %v4693 = vpack.c.bf16 %v4669, %v4668
        %v4694 = vpack.c.bf16 %v4671, %v4670
        %v4695 = vpack.c.bf16 %v4673, %v4672
        %v4696 = vpack.c.bf16 %v4675, %v4674
        %v4697 = vpack.c.bf16 %v4677, %v4676
        %v4698 = vpack.c.bf16 %v4679, %v4678
        %v4699 = vpack.c.bf16 %v4681, %v4680
        %v4700 = vpack.c.bf16 %v4683, %v4682
        %v4701 = vpack.c.bf16 %v4685, %v4684
        %v4706 = vunpack.c.l.b16 %v3197
        %v4707 = vunpack.c.l.b16 %v3198
        %v4708 = vunpack.c.l.b16 %v3199
        %v4709 = vunpack.c.l.b16 %v3200
        %v4710 = vpack.c.b16 %v4707, %v4706
        %v4711 = vpack.c.b16 %v4709, %v4708
        %v4715 = vsel %vm256, %v4686, 0
        %v4718 = vsel %vm256, %v4687, 0
        %v4721 = vsel %vm256, %v4688, 0
        %v4724 = vsel %vm256, %v4689, 0
        %v4727 = vsel %vm256, %v4690, 0
        %v4730 = vsel %vm256, %v4691, 0
        %v4733 = vsel %vm256, %v4692, 0
        %v4736 = vsel %vm256, %v4693, 0
        %v4739 = vsel %vm256, %v4694, 0
        %v4742 = vsel %vm256, %v4695, 0
        %v4745 = vsel %vm256, %v4696, 0
        %v4748 = vsel %vm256, %v4697, 0
        %v4751 = vsel %vm256, %v4698, 0
        %v4754 = vsel %vm256, %v4699, 0
        %v4757 = vsel %vm256, %v4700, 0
        %v4760 = vsel %vm256, %v4701, 0
        %4762 = vmatprep.subr.bf16.mxu0 0
        %4763 = vmatpush1.bf16.msra.mxu0 %v4710
        %4764 = vmatprep.subr.bf16.mxu0 0
        %4765 = vmatpush1.bf16.msra.mxu0 %v4711
        %4766 = vmatprep.subr.bf16.mxu0 0
        %4767 = vmatpush1.bf16.msra.mxu0 0
        %4768 = vmatprep.subr.bf16.mxu0 0
        %4769 = vmatpush1.bf16.msra.mxu0 0
        %4770 = vmatprep.subr.bf16.mxu0 0
        %4771 = vmatpush1.bf16.msra.mxu0 0
        %4772 = vmatprep.subr.bf16.mxu0 0
        %4773 = vmatpush1.bf16.msra.mxu0 0
        %4774 = vmatprep.subr.bf16.mxu0 0
        %4775 = vmatpush1.bf16.msra.mxu0 0
        %4776 = vmatprep.subr.bf16.mxu0 0
        %4777 = vmatpush1.bf16.msra.mxu0 0
        %4778 = vmatprep.subr.bf16.mxu0 0
        %4779 = vmatpush1.bf16.msra.mxu0 0
        %4780 = vmatprep.subr.bf16.mxu0 0
        %4781 = vmatpush1.bf16.msra.mxu0 0
        %4782 = vmatprep.subr.bf16.mxu0 0
        %4783 = vmatpush1.bf16.msra.mxu0 0
        %4784 = vmatprep.subr.bf16.mxu0 0
        %4785 = vmatpush1.bf16.msra.mxu0 0
        %4786 = vmatprep.subr.bf16.mxu0 0
        %4787 = vmatpush1.bf16.msra.mxu0 0
        %4788 = vmatprep.subr.bf16.mxu0 0
        %4789 = vmatpush1.bf16.msra.mxu0 0
        %4790 = vmatprep.subr.bf16.mxu0 0
        %4791 = vmatpush1.bf16.msra.mxu0 0
        %4792 = vmatprep.subr.bf16.mxu0 0
        %4793 = vmatpush1.bf16.msra.mxu0 0
        %4794 = vmatprep.mubr.bf16.mxu0 0
        %4795 = vmatmul.mubr.bf16.gmra.mrb[0].mxu0 %v4715
        %v4796 = vpop.f32.mrb[0].mxu0
        %v4797 = vadd.f32 0.0, %v4796
        %v4798 = vpop.f32.mrb[0].mxu0
        %v4799 = vpop.f32.mrb[0].mxu0
        %v4800 = vadd.f32 0.0, %v4799
        %v4801 = vpop.f32.mrb[0].mxu0
        %4802 = vmatprep.mubr.bf16.mxu0 0
        %4803 = vmatmul.mubr.bf16.gmra.mrb[0].mxu0 %v4718
        %v4804 = vpop.f32.mrb[0].mxu0
        %v4805 = vadd.f32 0.0, %v4804
        %v4806 = vpop.f32.mrb[0].mxu0
        %v4807 = vpop.f32.mrb[0].mxu0
        %v4808 = vadd.f32 0.0, %v4807
        %v4809 = vpop.f32.mrb[0].mxu0
        %4810 = vmatprep.mubr.bf16.mxu0 0
        %4811 = vmatmul.mubr.bf16.gmra.mrb[0].mxu0 %v4721
        %v4812 = vpop.f32.mrb[0].mxu0
        %v4813 = vadd.f32 0.0, %v4812
        %v4814 = vpop.f32.mrb[0].mxu0
        %v4815 = vpop.f32.mrb[0].mxu0
        %v4816 = vadd.f32 0.0, %v4815
        %v4817 = vpop.f32.mrb[0].mxu0
        %4818 = vmatprep.mubr.bf16.mxu0 0
        %4819 = vmatmul.mubr.bf16.gmra.mrb[0].mxu0 %v4724
        %v4820 = vpop.f32.mrb[0].mxu0
        %v4821 = vadd.f32 0.0, %v4820
        %v4822 = vpop.f32.mrb[0].mxu0
        %v4823 = vpop.f32.mrb[0].mxu0
        %v4824 = vadd.f32 0.0, %v4823
        %v4825 = vpop.f32.mrb[0].mxu0
        %4826 = vmatprep.mubr.bf16.mxu0 0
        %4827 = vmatmul.mubr.bf16.gmra.mrb[0].mxu0 %v4727
        %v4828 = vpop.f32.mrb[0].mxu0
        %v4829 = vadd.f32 0.0, %v4828
        %v4830 = vpop.f32.mrb[0].mxu0
        %v4831 = vpop.f32.mrb[0].mxu0
        %v4832 = vadd.f32 0.0, %v4831
        %v4833 = vpop.f32.mrb[0].mxu0
        %4834 = vmatprep.mubr.bf16.mxu0 0
        %4835 = vmatmul.mubr.bf16.gmra.mrb[0].mxu0 %v4730
        %v4836 = vpop.f32.mrb[0].mxu0
        %v4837 = vadd.f32 0.0, %v4836
        %v4838 = vpop.f32.mrb[0].mxu0
        %v4839 = vpop.f32.mrb[0].mxu0
        %v4840 = vadd.f32 0.0, %v4839
        %v4841 = vpop.f32.mrb[0].mxu0
        %4842 = vmatprep.mubr.bf16.mxu0 0
        %4843 = vmatmul.mubr.bf16.gmra.mrb[0].mxu0 %v4733
        %v4844 = vpop.f32.mrb[0].mxu0
        %v4845 = vadd.f32 0.0, %v4844
        %v4846 = vpop.f32.mrb[0].mxu0
        %v4847 = vpop.f32.mrb[0].mxu0
        %v4848 = vadd.f32 0.0, %v4847
        %v4849 = vpop.f32.mrb[0].mxu0
        %4850 = vmatprep.mubr.bf16.mxu0 0
        %4851 = vmatmul.mubr.bf16.gmra.mrb[0].mxu0 %v4736
        %v4852 = vpop.f32.mrb[0].mxu0
        %v4853 = vadd.f32 0.0, %v4852
        %v4854 = vpop.f32.mrb[0].mxu0
        %v4855 = vpop.f32.mrb[0].mxu0
        %v4856 = vadd.f32 0.0, %v4855
        %v4857 = vpop.f32.mrb[0].mxu0
        %4858 = vmatprep.mubr.bf16.mxu0 0
        %4859 = vmatmul.mubr.bf16.gmra.mrb[0].mxu0 %v4739
        %v4860 = vpop.f32.mrb[0].mxu0
        %v4861 = vadd.f32 0.0, %v4860
        %v4862 = vpop.f32.mrb[0].mxu0
        %v4863 = vpop.f32.mrb[0].mxu0
        %v4864 = vadd.f32 0.0, %v4863
        %v4865 = vpop.f32.mrb[0].mxu0
        %4866 = vmatprep.mubr.bf16.mxu0 0
        %4867 = vmatmul.mubr.bf16.gmra.mrb[0].mxu0 %v4742
        %v4868 = vpop.f32.mrb[0].mxu0
        %v4869 = vadd.f32 0.0, %v4868
        %v4870 = vpop.f32.mrb[0].mxu0
        %v4871 = vpop.f32.mrb[0].mxu0
        %v4872 = vadd.f32 0.0, %v4871
        %v4873 = vpop.f32.mrb[0].mxu0
        %4874 = vmatprep.mubr.bf16.mxu0 0
        %4875 = vmatmul.mubr.bf16.gmra.mrb[0].mxu0 %v4745
        %v4876 = vpop.f32.mrb[0].mxu0
        %v4877 = vadd.f32 0.0, %v4876
        %v4878 = vpop.f32.mrb[0].mxu0
        %v4879 = vpop.f32.mrb[0].mxu0
        %v4880 = vadd.f32 0.0, %v4879
        %v4881 = vpop.f32.mrb[0].mxu0
        %4882 = vmatprep.mubr.bf16.mxu0 0
        %4883 = vmatmul.mubr.bf16.gmra.mrb[0].mxu0 %v4748
        %v4884 = vpop.f32.mrb[0].mxu0
        %v4885 = vadd.f32 0.0, %v4884
        %v4886 = vpop.f32.mrb[0].mxu0
        %v4887 = vpop.f32.mrb[0].mxu0
        %v4888 = vadd.f32 0.0, %v4887
        %v4889 = vpop.f32.mrb[0].mxu0
        %4890 = vmatprep.mubr.bf16.mxu0 0
        %4891 = vmatmul.mubr.bf16.gmra.mrb[0].mxu0 %v4751
        %v4892 = vpop.f32.mrb[0].mxu0
        %v4893 = vadd.f32 0.0, %v4892
        %v4894 = vpop.f32.mrb[0].mxu0
        %v4895 = vpop.f32.mrb[0].mxu0
        %v4896 = vadd.f32 0.0, %v4895
        %v4897 = vpop.f32.mrb[0].mxu0
        %4898 = vmatprep.mubr.bf16.mxu0 0
        %4899 = vmatmul.mubr.bf16.gmra.mrb[0].mxu0 %v4754
        %v4900 = vpop.f32.mrb[0].mxu0
        %v4901 = vadd.f32 0.0, %v4900
        %v4902 = vpop.f32.mrb[0].mxu0
        %v4903 = vpop.f32.mrb[0].mxu0
        %v4904 = vadd.f32 0.0, %v4903
        %v4905 = vpop.f32.mrb[0].mxu0
        %4906 = vmatprep.mubr.bf16.mxu0 0
        %4907 = vmatmul.mubr.bf16.gmra.mrb[0].mxu0 %v4757
        %v4908 = vpop.f32.mrb[0].mxu0
        %v4909 = vadd.f32 0.0, %v4908
        %v4910 = vpop.f32.mrb[0].mxu0
        %v4911 = vpop.f32.mrb[0].mxu0
        %v4912 = vadd.f32 0.0, %v4911
        %v4913 = vpop.f32.mrb[0].mxu0
        %4914 = vmatprep.mubr.bf16.mxu0 0
        %4915 = vmatmul.mubr.bf16.gmra.mrb[0].mxu0 %v4760
        %v4916 = vpop.f32.mrb[0].mxu0
        %v4917 = vadd.f32 0.0, %v4916
        %v4918 = vpop.f32.mrb[0].mxu0
        %v4919 = vpop.f32.mrb[0].mxu0
        %v4920 = vadd.f32 0.0, %v4919
        %v4921 = vpop.f32.mrb[0].mxu0
        %4922 = vdwg.mxu0
        %v4923 = vadd.f32 %v4622, %v4797
        %v4924 = vadd.f32 %v4623, %v4800
        %v4925 = vadd.f32 %v4624, %v4805
        %v4926 = vadd.f32 %v4625, %v4808
        %v4927 = vadd.f32 %v4626, %v4813
        %v4928 = vadd.f32 %v4627, %v4816
        %v4929 = vadd.f32 %v4628, %v4821
        %v4930 = vadd.f32 %v4629, %v4824
        %v4931 = vadd.f32 %v4630, %v4829
        %v4932 = vadd.f32 %v4631, %v4832
        %v4933 = vadd.f32 %v4632, %v4837
        %v4934 = vadd.f32 %v4633, %v4840
        %v4935 = vadd.f32 %v4634, %v4845
        %v4936 = vadd.f32 %v4635, %v4848
        %v4937 = vadd.f32 %v4636, %v4853
        %v4938 = vadd.f32 %v4637, %v4856
        %v4939 = vadd.f32 %v4638, %v4861
        %v4940 = vadd.f32 %v4639, %v4864
        %v4941 = vadd.f32 %v4640, %v4869
        %v4942 = vadd.f32 %v4641, %v4872
        %v4943 = vadd.f32 %v4642, %v4877
        %v4944 = vadd.f32 %v4643, %v4880
        %v4945 = vadd.f32 %v4644, %v4885
        %v4946 = vadd.f32 %v4645, %v4888
        %v4947 = vadd.f32 %v4646, %v4893
        %v4948 = vadd.f32 %v4647, %v4896
        %v4949 = vadd.f32 %v4648, %v4901
        %v4950 = vadd.f32 %v4649, %v4904
        %v4951 = vadd.f32 %v4650, %v4909
        %v4952 = vadd.f32 %v4651, %v4912
        %v4953 = vadd.f32 %v4652, %v4917
        %v4954 = vadd.f32 %v4653, %v4920
        %v4955 = vld [vmem:[%s2170 + $0x7] sm:$0xff]
        %v4956 = vld [vmem:[%s2170 + $0xf] sm:$0xff]
        %v4957 = vld [vmem:[%s2170 + $0x27] sm:$0xff]
        %v4958 = vld [vmem:[%s2170 + $0x2f] sm:$0xff]
        %v4959 = vld [vmem:[%s2170 + $0x47] sm:$0xff]
        %v4960 = vld [vmem:[%s2170 + $0x4f] sm:$0xff]
        %v4961 = vld [vmem:[%s2170 + $0x67] sm:$0xff]
        %v4962 = vld [vmem:[%s2170 + $0x6f] sm:$0xff]
        %v4963 = vld [vmem:[%s2170 + $0x87] sm:$0xff]
        %v4964 = vld [vmem:[%s2170 + $0x8f] sm:$0xff]
        %v4965 = vld [vmem:[%s2170 + $0xa7] sm:$0xff]
        %v4966 = vld [vmem:[%s2170 + $0xaf] sm:$0xff]
        %v4967 = vld [vmem:[%s2170 + $0xc7] sm:$0xff]
        %v4968 = vld [vmem:[%s2170 + $0xcf] sm:$0xff]
        %v4969 = vld [vmem:[%s2170 + $0xe7] sm:$0xff]
        %v4970 = vld [vmem:[%s2170 + $0xef] sm:$0xff]
        %v4971 = vld [vmem:[%s2170 + $0x107] sm:$0xff]
        %v4972 = vld [vmem:[%s2170 + $0x10f] sm:$0xff]
        %v4973 = vld [vmem:[%s2170 + $0x127] sm:$0xff]
        %v4974 = vld [vmem:[%s2170 + $0x12f] sm:$0xff]
        %v4975 = vld [vmem:[%s2170 + $0x147] sm:$0xff]
        %v4976 = vld [vmem:[%s2170 + $0x14f] sm:$0xff]
        %v4977 = vld [vmem:[%s2170 + $0x167] sm:$0xff]
        %v4978 = vld [vmem:[%s2170 + $0x16f] sm:$0xff]
        %v4979 = vld [vmem:[%s2170 + $0x187] sm:$0xff]
        %v4980 = vld [vmem:[%s2170 + $0x18f] sm:$0xff]
        %v4981 = vld [vmem:[%s2170 + $0x1a7] sm:$0xff]
        %v4982 = vld [vmem:[%s2170 + $0x1af] sm:$0xff]
        %v4983 = vld [vmem:[%s2170 + $0x1c7] sm:$0xff]
        %v4984 = vld [vmem:[%s2170 + $0x1cf] sm:$0xff]
        %v4985 = vld [vmem:[%s2170 + $0x1e7] sm:$0xff]
        %v4986 = vld [vmem:[%s2170 + $0x1ef] sm:$0xff]
        %v4987 = vpack.c.bf16 %v4956, %v4955
        %v4988 = vpack.c.bf16 %v4958, %v4957
        %v4989 = vpack.c.bf16 %v4960, %v4959
        %v4990 = vpack.c.bf16 %v4962, %v4961
        %v4991 = vpack.c.bf16 %v4964, %v4963
        %v4992 = vpack.c.bf16 %v4966, %v4965
        %v4993 = vpack.c.bf16 %v4968, %v4967
        %v4994 = vpack.c.bf16 %v4970, %v4969
        %v4995 = vpack.c.bf16 %v4972, %v4971
        %v4996 = vpack.c.bf16 %v4974, %v4973
        %v4997 = vpack.c.bf16 %v4976, %v4975
        %v4998 = vpack.c.bf16 %v4978, %v4977
        %v4999 = vpack.c.bf16 %v4980, %v4979
        %v5000 = vpack.c.bf16 %v4982, %v4981
        %v5001 = vpack.c.bf16 %v4984, %v4983
        %v5002 = vpack.c.bf16 %v4986, %v4985
        %v5007 = vunpack.c.l.b16 %v3201
        %v5008 = vunpack.c.l.b16 %v3202
        %v5009 = vunpack.c.l.b16 %v3203
        %v5010 = vunpack.c.l.b16 %v3204
        %v5011 = vpack.c.b16 %v5008, %v5007
        %v5012 = vpack.c.b16 %v5010, %v5009
        %v5016 = vsel %vm256, %v4987, 0
        %v5019 = vsel %vm256, %v4988, 0
        %v5022 = vsel %vm256, %v4989, 0
        %v5025 = vsel %vm256, %v4990, 0
        %v5028 = vsel %vm256, %v4991, 0
        %v5031 = vsel %vm256, %v4992, 0
        %v5034 = vsel %vm256, %v4993, 0
        %v5037 = vsel %vm256, %v4994, 0
        %v5040 = vsel %vm256, %v4995, 0
        %v5043 = vsel %vm256, %v4996, 0
        %v5046 = vsel %vm256, %v4997, 0
        %v5049 = vsel %vm256, %v4998, 0
        %v5052 = vsel %vm256, %v4999, 0
        %v5055 = vsel %vm256, %v5000, 0
        %v5058 = vsel %vm256, %v5001, 0
        %v5061 = vsel %vm256, %v5002, 0
        %5063 = vmatprep.subr.bf16.mxu0 0
        %5064 = vmatpush1.bf16.msra.mxu0 %v5011
        %5065 = vmatprep.subr.bf16.mxu0 0
        %5066 = vmatpush1.bf16.msra.mxu0 %v5012
        %5067 = vmatprep.subr.bf16.mxu0 0
        %5068 = vmatpush1.bf16.msra.mxu0 0
        %5069 = vmatprep.subr.bf16.mxu0 0
        %5070 = vmatpush1.bf16.msra.mxu0 0
        %5071 = vmatprep.subr.bf16.mxu0 0
        %5072 = vmatpush1.bf16.msra.mxu0 0
        %5073 = vmatprep.subr.bf16.mxu0 0
        %5074 = vmatpush1.bf16.msra.mxu0 0
        %5075 = vmatprep.subr.bf16.mxu0 0
        %5076 = vmatpush1.bf16.msra.mxu0 0
        %5077 = vmatprep.subr.bf16.mxu0 0
        %5078 = vmatpush1.bf16.msra.mxu0 0
        %5079 = vmatprep.subr.bf16.mxu0 0
        %5080 = vmatpush1.bf16.msra.mxu0 0
        %5081 = vmatprep.subr.bf16.mxu0 0
        %5082 = vmatpush1.bf16.msra.mxu0 0
        %5083 = vmatprep.subr.bf16.mxu0 0
        %5084 = vmatpush1.bf16.msra.mxu0 0
        %5085 = vmatprep.subr.bf16.mxu0 0
        %5086 = vmatpush1.bf16.msra.mxu0 0
        %5087 = vmatprep.subr.bf16.mxu0 0
        %5088 = vmatpush1.bf16.msra.mxu0 0
        %5089 = vmatprep.subr.bf16.mxu0 0
        %5090 = vmatpush1.bf16.msra.mxu0 0
        %5091 = vmatprep.subr.bf16.mxu0 0
        %5092 = vmatpush1.bf16.msra.mxu0 0
        %5093 = vmatprep.subr.bf16.mxu0 0
        %5094 = vmatpush1.bf16.msra.mxu0 0
        %5095 = vmatprep.mubr.bf16.mxu0 0
        %5096 = vmatmul.mubr.bf16.gmra.mrb[0].mxu0 %v5016
        %v5097 = vpop.f32.mrb[0].mxu0
        %v5098 = vadd.f32 0.0, %v5097
        %v5099 = vpop.f32.mrb[0].mxu0
        %v5100 = vpop.f32.mrb[0].mxu0
        %v5101 = vadd.f32 0.0, %v5100
        %v5102 = vpop.f32.mrb[0].mxu0
        %5103 = vmatprep.mubr.bf16.mxu0 0
        %5104 = vmatmul.mubr.bf16.gmra.mrb[0].mxu0 %v5019
        %v5105 = vpop.f32.mrb[0].mxu0
        %v5106 = vadd.f32 0.0, %v5105
        %v5107 = vpop.f32.mrb[0].mxu0
        %v5108 = vpop.f32.mrb[0].mxu0
        %v5109 = vadd.f32 0.0, %v5108
        %v5110 = vpop.f32.mrb[0].mxu0
        %5111 = vmatprep.mubr.bf16.mxu0 0
        %5112 = vmatmul.mubr.bf16.gmra.mrb[0].mxu0 %v5022
        %v5113 = vpop.f32.mrb[0].mxu0
        %v5114 = vadd.f32 0.0, %v5113
        %v5115 = vpop.f32.mrb[0].mxu0
        %v5116 = vpop.f32.mrb[0].mxu0
        %v5117 = vadd.f32 0.0, %v5116
        %v5118 = vpop.f32.mrb[0].mxu0
        %5119 = vmatprep.mubr.bf16.mxu0 0
        %5120 = vmatmul.mubr.bf16.gmra.mrb[0].mxu0 %v5025
        %v5121 = vpop.f32.mrb[0].mxu0
        %v5122 = vadd.f32 0.0, %v5121
        %v5123 = vpop.f32.mrb[0].mxu0
        %v5124 = vpop.f32.mrb[0].mxu0
        %v5125 = vadd.f32 0.0, %v5124
        %v5126 = vpop.f32.mrb[0].mxu0
        %5127 = vmatprep.mubr.bf16.mxu0 0
        %5128 = vmatmul.mubr.bf16.gmra.mrb[0].mxu0 %v5028
        %v5129 = vpop.f32.mrb[0].mxu0
        %v5130 = vadd.f32 0.0, %v5129
        %v5131 = vpop.f32.mrb[0].mxu0
        %v5132 = vpop.f32.mrb[0].mxu0
        %v5133 = vadd.f32 0.0, %v5132
        %v5134 = vpop.f32.mrb[0].mxu0
        %5135 = vmatprep.mubr.bf16.mxu0 0
        %5136 = vmatmul.mubr.bf16.gmra.mrb[0].mxu0 %v5031
        %v5137 = vpop.f32.mrb[0].mxu0
        %v5138 = vadd.f32 0.0, %v5137
        %v5139 = vpop.f32.mrb[0].mxu0
        %v5140 = vpop.f32.mrb[0].mxu0
        %v5141 = vadd.f32 0.0, %v5140
        %v5142 = vpop.f32.mrb[0].mxu0
        %5143 = vmatprep.mubr.bf16.mxu0 0
        %5144 = vmatmul.mubr.bf16.gmra.mrb[0].mxu0 %v5034
        %v5145 = vpop.f32.mrb[0].mxu0
        %v5146 = vadd.f32 0.0, %v5145
        %v5147 = vpop.f32.mrb[0].mxu0
        %v5148 = vpop.f32.mrb[0].mxu0
        %v5149 = vadd.f32 0.0, %v5148
        %v5150 = vpop.f32.mrb[0].mxu0
        %5151 = vmatprep.mubr.bf16.mxu0 0
        %5152 = vmatmul.mubr.bf16.gmra.mrb[0].mxu0 %v5037
        %v5153 = vpop.f32.mrb[0].mxu0
        %v5154 = vadd.f32 0.0, %v5153
        %v5155 = vpop.f32.mrb[0].mxu0
        %v5156 = vpop.f32.mrb[0].mxu0
        %v5157 = vadd.f32 0.0, %v5156
        %v5158 = vpop.f32.mrb[0].mxu0
        %5159 = vmatprep.mubr.bf16.mxu0 0
        %5160 = vmatmul.mubr.bf16.gmra.mrb[0].mxu0 %v5040
        %v5161 = vpop.f32.mrb[0].mxu0
        %v5162 = vadd.f32 0.0, %v5161
        %v5163 = vpop.f32.mrb[0].mxu0
        %v5164 = vpop.f32.mrb[0].mxu0
        %v5165 = vadd.f32 0.0, %v5164
        %v5166 = vpop.f32.mrb[0].mxu0
        %5167 = vmatprep.mubr.bf16.mxu0 0
        %5168 = vmatmul.mubr.bf16.gmra.mrb[0].mxu0 %v5043
        %v5169 = vpop.f32.mrb[0].mxu0
        %v5170 = vadd.f32 0.0, %v5169
        %v5171 = vpop.f32.mrb[0].mxu0
        %v5172 = vpop.f32.mrb[0].mxu0
        %v5173 = vadd.f32 0.0, %v5172
        %v5174 = vpop.f32.mrb[0].mxu0
        %5175 = vmatprep.mubr.bf16.mxu0 0
        %5176 = vmatmul.mubr.bf16.gmra.mrb[0].mxu0 %v5046
        %v5177 = vpop.f32.mrb[0].mxu0
        %v5178 = vadd.f32 0.0, %v5177
        %v5179 = vpop.f32.mrb[0].mxu0
        %v5180 = vpop.f32.mrb[0].mxu0
        %v5181 = vadd.f32 0.0, %v5180
        %v5182 = vpop.f32.mrb[0].mxu0
        %5183 = vmatprep.mubr.bf16.mxu0 0
        %5184 = vmatmul.mubr.bf16.gmra.mrb[0].mxu0 %v5049
        %v5185 = vpop.f32.mrb[0].mxu0
        %v5186 = vadd.f32 0.0, %v5185
        %v5187 = vpop.f32.mrb[0].mxu0
        %v5188 = vpop.f32.mrb[0].mxu0
        %v5189 = vadd.f32 0.0, %v5188
        %v5190 = vpop.f32.mrb[0].mxu0
        %5191 = vmatprep.mubr.bf16.mxu0 0
        %5192 = vmatmul.mubr.bf16.gmra.mrb[0].mxu0 %v5052
        %v5193 = vpop.f32.mrb[0].mxu0
        %v5194 = vadd.f32 0.0, %v5193
        %v5195 = vpop.f32.mrb[0].mxu0
        %v5196 = vpop.f32.mrb[0].mxu0
        %v5197 = vadd.f32 0.0, %v5196
        %v5198 = vpop.f32.mrb[0].mxu0
        %5199 = vmatprep.mubr.bf16.mxu0 0
        %5200 = vmatmul.mubr.bf16.gmra.mrb[0].mxu0 %v5055
        %v5201 = vpop.f32.mrb[0].mxu0
        %v5202 = vadd.f32 0.0, %v5201
        %v5203 = vpop.f32.mrb[0].mxu0
        %v5204 = vpop.f32.mrb[0].mxu0
        %v5205 = vadd.f32 0.0, %v5204
        %v5206 = vpop.f32.mrb[0].mxu0
        %5207 = vmatprep.mubr.bf16.mxu0 0
        %5208 = vmatmul.mubr.bf16.gmra.mrb[0].mxu0 %v5058
        %v5209 = vpop.f32.mrb[0].mxu0
        %v5210 = vadd.f32 0.0, %v5209
        %v5211 = vpop.f32.mrb[0].mxu0
        %v5212 = vpop.f32.mrb[0].mxu0
        %v5213 = vadd.f32 0.0, %v5212
        %v5214 = vpop.f32.mrb[0].mxu0
        %5215 = vmatprep.mubr.bf16.mxu0 0
        %5216 = vmatmul.mubr.bf16.gmra.mrb[0].mxu0 %v5061
        %v5217 = vpop.f32.mrb[0].mxu0
        %v5218 = vadd.f32 0.0, %v5217
        %v5219 = vpop.f32.mrb[0].mxu0
        %v5220 = vpop.f32.mrb[0].mxu0
        %v5221 = vadd.f32 0.0, %v5220
        %v5222 = vpop.f32.mrb[0].mxu0
        %5223 = vdwg.mxu0
        %v5224 = vadd.f32 %v4923, %v5098
        %v5225 = vadd.f32 %v4924, %v5101
        %v5226 = vadd.f32 %v4925, %v5106
        %v5227 = vadd.f32 %v4926, %v5109
        %v5228 = vadd.f32 %v4927, %v5114
        %v5229 = vadd.f32 %v4928, %v5117
        %v5230 = vadd.f32 %v4929, %v5122
        %v5231 = vadd.f32 %v4930, %v5125
        %v5232 = vadd.f32 %v4931, %v5130
        %v5233 = vadd.f32 %v4932, %v5133
        %v5234 = vadd.f32 %v4933, %v5138
        %v5235 = vadd.f32 %v4934, %v5141
        %v5236 = vadd.f32 %v4935, %v5146
        %v5237 = vadd.f32 %v4936, %v5149
        %v5238 = vadd.f32 %v4937, %v5154
        %v5239 = vadd.f32 %v4938, %v5157
        %v5240 = vadd.f32 %v4939, %v5162
        %v5241 = vadd.f32 %v4940, %v5165
        %v5242 = vadd.f32 %v4941, %v5170
        %v5243 = vadd.f32 %v4942, %v5173
        %v5244 = vadd.f32 %v4943, %v5178
        %v5245 = vadd.f32 %v4944, %v5181
        %v5246 = vadd.f32 %v4945, %v5186
        %v5247 = vadd.f32 %v4946, %v5189
        %v5248 = vadd.f32 %v4947, %v5194
        %v5249 = vadd.f32 %v4948, %v5197
        %v5250 = vadd.f32 %v4949, %v5202
        %v5251 = vadd.f32 %v4950, %v5205
        %v5252 = vadd.f32 %v4951, %v5210
        %v5253 = vadd.f32 %v4952, %v5213
        %v5254 = vadd.f32 %v4953, %v5218
        %v5255 = vadd.f32 %v4954, %v5221
        %v5256 = vld [vmem:[%s2170 + $0x8] sm:$0xff]
        %v5257 = vld [vmem:[%s2170 + $0x10] sm:$0xff]
        %v5258 = vld [vmem:[%s2170 + $0x28] sm:$0xff]
        %v5259 = vld [vmem:[%s2170 + $0x30] sm:$0xff]
        %v5260 = vld [vmem:[%s2170 + $0x48] sm:$0xff]
        %v5261 = vld [vmem:[%s2170 + $0x50] sm:$0xff]
        %v5262 = vld [vmem:[%s2170 + $0x68] sm:$0xff]
        %v5263 = vld [vmem:[%s2170 + $0x70] sm:$0xff]
        %v5264 = vld [vmem:[%s2170 + $0x88] sm:$0xff]
        %v5265 = vld [vmem:[%s2170 + $0x90] sm:$0xff]
        %v5266 = vld [vmem:[%s2170 + $0xa8] sm:$0xff]
        %v5267 = vld [vmem:[%s2170 + $0xb0] sm:$0xff]
        %v5268 = vld [vmem:[%s2170 + $0xc8] sm:$0xff]
        %v5269 = vld [vmem:[%s2170 + $0xd0] sm:$0xff]
        %v5270 = vld [vmem:[%s2170 + $0xe8] sm:$0xff]
        %v5271 = vld [vmem:[%s2170 + $0xf0] sm:$0xff]
        %v5272 = vld [vmem:[%s2170 + $0x108] sm:$0xff]
        %v5273 = vld [vmem:[%s2170 + $0x110] sm:$0xff]
        %v5274 = vld [vmem:[%s2170 + $0x128] sm:$0xff]
        %v5275 = vld [vmem:[%s2170 + $0x130] sm:$0xff]
        %v5276 = vld [vmem:[%s2170 + $0x148] sm:$0xff]
        %v5277 = vld [vmem:[%s2170 + $0x150] sm:$0xff]
        %v5278 = vld [vmem:[%s2170 + $0x168] sm:$0xff]
        %v5279 = vld [vmem:[%s2170 + $0x170] sm:$0xff]
        %v5280 = vld [vmem:[%s2170 + $0x188] sm:$0xff]
        %v5281 = vld [vmem:[%s2170 + $0x190] sm:$0xff]
        %v5282 = vld [vmem:[%s2170 + $0x1a8] sm:$0xff]
        %v5283 = vld [vmem:[%s2170 + $0x1b0] sm:$0xff]
        %v5284 = vld [vmem:[%s2170 + $0x1c8] sm:$0xff]
        %v5285 = vld [vmem:[%s2170 + $0x1d0] sm:$0xff]
        %v5286 = vld [vmem:[%s2170 + $0x1e8] sm:$0xff]
        %v5287 = vld [vmem:[%s2170 + $0x1f0] sm:$0xff]
        %v5288 = vpack.c.bf16 %v5257, %v5256
        %v5289 = vpack.c.bf16 %v5259, %v5258
        %v5290 = vpack.c.bf16 %v5261, %v5260
        %v5291 = vpack.c.bf16 %v5263, %v5262
        %v5292 = vpack.c.bf16 %v5265, %v5264
        %v5293 = vpack.c.bf16 %v5267, %v5266
        %v5294 = vpack.c.bf16 %v5269, %v5268
        %v5295 = vpack.c.bf16 %v5271, %v5270
        %v5296 = vpack.c.bf16 %v5273, %v5272
        %v5297 = vpack.c.bf16 %v5275, %v5274
        %v5298 = vpack.c.bf16 %v5277, %v5276
        %v5299 = vpack.c.bf16 %v5279, %v5278
        %v5300 = vpack.c.bf16 %v5281, %v5280
        %v5301 = vpack.c.bf16 %v5283, %v5282
        %v5302 = vpack.c.bf16 %v5285, %v5284
        %v5303 = vpack.c.bf16 %v5287, %v5286
        %v5308 = vunpack.c.l.b16 %v3205
        %v5309 = vunpack.c.l.b16 %v3206
        %v5310 = vunpack.c.l.b16 %v3207
        %v5311 = vunpack.c.l.b16 %v3208
        %v5312 = vpack.c.b16 %v5309, %v5308
        %v5313 = vpack.c.b16 %v5311, %v5310
        %v5317 = vsel %vm256, %v5288, 0
        %v5320 = vsel %vm256, %v5289, 0
        %v5323 = vsel %vm256, %v5290, 0
        %v5326 = vsel %vm256, %v5291, 0
        %v5329 = vsel %vm256, %v5292, 0
        %v5332 = vsel %vm256, %v5293, 0
        %v5335 = vsel %vm256, %v5294, 0
        %v5338 = vsel %vm256, %v5295, 0
        %v5341 = vsel %vm256, %v5296, 0
        %v5344 = vsel %vm256, %v5297, 0
        %v5347 = vsel %vm256, %v5298, 0
        %v5350 = vsel %vm256, %v5299, 0
        %v5353 = vsel %vm256, %v5300, 0
        %v5356 = vsel %vm256, %v5301, 0
        %v5359 = vsel %vm256, %v5302, 0
        %v5362 = vsel %vm256, %v5303, 0
        %5364 = vmatprep.subr.bf16.mxu0 0
        %5365 = vmatpush1.bf16.msra.mxu0 %v5312
        %5366 = vmatprep.subr.bf16.mxu0 0
        %5367 = vmatpush1.bf16.msra.mxu0 %v5313
        %5368 = vmatprep.subr.bf16.mxu0 0
        %5369 = vmatpush1.bf16.msra.mxu0 0
        %5370 = vmatprep.subr.bf16.mxu0 0
        %5371 = vmatpush1.bf16.msra.mxu0 0
        %5372 = vmatprep.subr.bf16.mxu0 0
        %5373 = vmatpush1.bf16.msra.mxu0 0
        %5374 = vmatprep.subr.bf16.mxu0 0
        %5375 = vmatpush1.bf16.msra.mxu0 0
        %5376 = vmatprep.subr.bf16.mxu0 0
        %5377 = vmatpush1.bf16.msra.mxu0 0
        %5378 = vmatprep.subr.bf16.mxu0 0
        %5379 = vmatpush1.bf16.msra.mxu0 0
        %5380 = vmatprep.subr.bf16.mxu0 0
        %5381 = vmatpush1.bf16.msra.mxu0 0
        %5382 = vmatprep.subr.bf16.mxu0 0
        %5383 = vmatpush1.bf16.msra.mxu0 0
        %5384 = vmatprep.subr.bf16.mxu0 0
        %5385 = vmatpush1.bf16.msra.mxu0 0
        %5386 = vmatprep.subr.bf16.mxu0 0
        %5387 = vmatpush1.bf16.msra.mxu0 0
        %5388 = vmatprep.subr.bf16.mxu0 0
        %5389 = vmatpush1.bf16.msra.mxu0 0
        %5390 = vmatprep.subr.bf16.mxu0 0
        %5391 = vmatpush1.bf16.msra.mxu0 0
        %5392 = vmatprep.subr.bf16.mxu0 0
        %5393 = vmatpush1.bf16.msra.mxu0 0
        %5394 = vmatprep.subr.bf16.mxu0 0
        %5395 = vmatpush1.bf16.msra.mxu0 0
        %5396 = vmatprep.mubr.bf16.mxu0 0
        %5397 = vmatmul.mubr.bf16.gmra.mrb[0].mxu0 %v5317
        %v5398 = vpop.f32.mrb[0].mxu0
        %v5399 = vadd.f32 0.0, %v5398
        %v5400 = vpop.f32.mrb[0].mxu0
        %v5401 = vpop.f32.mrb[0].mxu0
        %v5402 = vadd.f32 0.0, %v5401
        %v5403 = vpop.f32.mrb[0].mxu0
        %5404 = vmatprep.mubr.bf16.mxu0 0
        %5405 = vmatmul.mubr.bf16.gmra.mrb[0].mxu0 %v5320
        %v5406 = vpop.f32.mrb[0].mxu0
        %v5407 = vadd.f32 0.0, %v5406
        %v5408 = vpop.f32.mrb[0].mxu0
        %v5409 = vpop.f32.mrb[0].mxu0
        %v5410 = vadd.f32 0.0, %v5409
        %v5411 = vpop.f32.mrb[0].mxu0
        %5412 = vmatprep.mubr.bf16.mxu0 0
        %5413 = vmatmul.mubr.bf16.gmra.mrb[0].mxu0 %v5323
        %v5414 = vpop.f32.mrb[0].mxu0
        %v5415 = vadd.f32 0.0, %v5414
        %v5416 = vpop.f32.mrb[0].mxu0
        %v5417 = vpop.f32.mrb[0].mxu0
        %v5418 = vadd.f32 0.0, %v5417
        %v5419 = vpop.f32.mrb[0].mxu0
        %5420 = vmatprep.mubr.bf16.mxu0 0
        %5421 = vmatmul.mubr.bf16.gmra.mrb[0].mxu0 %v5326
        %v5422 = vpop.f32.mrb[0].mxu0
        %v5423 = vadd.f32 0.0, %v5422
        %v5424 = vpop.f32.mrb[0].mxu0
        %v5425 = vpop.f32.mrb[0].mxu0
        %v5426 = vadd.f32 0.0, %v5425
        %v5427 = vpop.f32.mrb[0].mxu0
        %5428 = vmatprep.mubr.bf16.mxu0 0
        %5429 = vmatmul.mubr.bf16.gmra.mrb[0].mxu0 %v5329
        %v5430 = vpop.f32.mrb[0].mxu0
        %v5431 = vadd.f32 0.0, %v5430
        %v5432 = vpop.f32.mrb[0].mxu0
        %v5433 = vpop.f32.mrb[0].mxu0
        %v5434 = vadd.f32 0.0, %v5433
        %v5435 = vpop.f32.mrb[0].mxu0
        %5436 = vmatprep.mubr.bf16.mxu0 0
        %5437 = vmatmul.mubr.bf16.gmra.mrb[0].mxu0 %v5332
        %v5438 = vpop.f32.mrb[0].mxu0
        %v5439 = vadd.f32 0.0, %v5438
        %v5440 = vpop.f32.mrb[0].mxu0
        %v5441 = vpop.f32.mrb[0].mxu0
        %v5442 = vadd.f32 0.0, %v5441
        %v5443 = vpop.f32.mrb[0].mxu0
        %5444 = vmatprep.mubr.bf16.mxu0 0
        %5445 = vmatmul.mubr.bf16.gmra.mrb[0].mxu0 %v5335
        %v5446 = vpop.f32.mrb[0].mxu0
        %v5447 = vadd.f32 0.0, %v5446
        %v5448 = vpop.f32.mrb[0].mxu0
        %v5449 = vpop.f32.mrb[0].mxu0
        %v5450 = vadd.f32 0.0, %v5449
        %v5451 = vpop.f32.mrb[0].mxu0
        %5452 = vmatprep.mubr.bf16.mxu0 0
        %5453 = vmatmul.mubr.bf16.gmra.mrb[0].mxu0 %v5338
        %v5454 = vpop.f32.mrb[0].mxu0
        %v5455 = vadd.f32 0.0, %v5454
        %v5456 = vpop.f32.mrb[0].mxu0
        %v5457 = vpop.f32.mrb[0].mxu0
        %v5458 = vadd.f32 0.0, %v5457
        %v5459 = vpop.f32.mrb[0].mxu0
        %5460 = vmatprep.mubr.bf16.mxu0 0
        %5461 = vmatmul.mubr.bf16.gmra.mrb[0].mxu0 %v5341
        %v5462 = vpop.f32.mrb[0].mxu0
        %v5463 = vadd.f32 0.0, %v5462
        %v5464 = vpop.f32.mrb[0].mxu0
        %v5465 = vpop.f32.mrb[0].mxu0
        %v5466 = vadd.f32 0.0, %v5465
        %v5467 = vpop.f32.mrb[0].mxu0
        %5468 = vmatprep.mubr.bf16.mxu0 0
        %5469 = vmatmul.mubr.bf16.gmra.mrb[0].mxu0 %v5344
        %v5470 = vpop.f32.mrb[0].mxu0
        %v5471 = vadd.f32 0.0, %v5470
        %v5472 = vpop.f32.mrb[0].mxu0
        %v5473 = vpop.f32.mrb[0].mxu0
        %v5474 = vadd.f32 0.0, %v5473
        %v5475 = vpop.f32.mrb[0].mxu0
        %5476 = vmatprep.mubr.bf16.mxu0 0
        %5477 = vmatmul.mubr.bf16.gmra.mrb[0].mxu0 %v5347
        %v5478 = vpop.f32.mrb[0].mxu0
        %v5479 = vadd.f32 0.0, %v5478
        %v5480 = vpop.f32.mrb[0].mxu0
        %v5481 = vpop.f32.mrb[0].mxu0
        %v5482 = vadd.f32 0.0, %v5481
        %v5483 = vpop.f32.mrb[0].mxu0
        %5484 = vmatprep.mubr.bf16.mxu0 0
        %5485 = vmatmul.mubr.bf16.gmra.mrb[0].mxu0 %v5350
        %v5486 = vpop.f32.mrb[0].mxu0
        %v5487 = vadd.f32 0.0, %v5486
        %v5488 = vpop.f32.mrb[0].mxu0
        %v5489 = vpop.f32.mrb[0].mxu0
        %v5490 = vadd.f32 0.0, %v5489
        %v5491 = vpop.f32.mrb[0].mxu0
        %5492 = vmatprep.mubr.bf16.mxu0 0
        %5493 = vmatmul.mubr.bf16.gmra.mrb[0].mxu0 %v5353
        %v5494 = vpop.f32.mrb[0].mxu0
        %v5495 = vadd.f32 0.0, %v5494
        %v5496 = vpop.f32.mrb[0].mxu0
        %v5497 = vpop.f32.mrb[0].mxu0
        %v5498 = vadd.f32 0.0, %v5497
        %v5499 = vpop.f32.mrb[0].mxu0
        %5500 = vmatprep.mubr.bf16.mxu0 0
        %5501 = vmatmul.mubr.bf16.gmra.mrb[0].mxu0 %v5356
        %v5502 = vpop.f32.mrb[0].mxu0
        %v5503 = vadd.f32 0.0, %v5502
        %v5504 = vpop.f32.mrb[0].mxu0
        %v5505 = vpop.f32.mrb[0].mxu0
        %v5506 = vadd.f32 0.0, %v5505
        %v5507 = vpop.f32.mrb[0].mxu0
        %5508 = vmatprep.mubr.bf16.mxu0 0
        %5509 = vmatmul.mubr.bf16.gmra.mrb[0].mxu0 %v5359
        %v5510 = vpop.f32.mrb[0].mxu0
        %v5511 = vadd.f32 0.0, %v5510
        %v5512 = vpop.f32.mrb[0].mxu0
        %v5513 = vpop.f32.mrb[0].mxu0
        %v5514 = vadd.f32 0.0, %v5513
        %v5515 = vpop.f32.mrb[0].mxu0
        %5516 = vmatprep.mubr.bf16.mxu0 0
        %5517 = vmatmul.mubr.bf16.gmra.mrb[0].mxu0 %v5362
        %v5518 = vpop.f32.mrb[0].mxu0
        %v5519 = vadd.f32 0.0, %v5518
        %v5520 = vpop.f32.mrb[0].mxu0
        %v5521 = vpop.f32.mrb[0].mxu0
        %v5522 = vadd.f32 0.0, %v5521
        %v5523 = vpop.f32.mrb[0].mxu0
        %5524 = vdwg.mxu0
        %v5525 = vadd.f32 %v5224, %v5399
        %v5526 = vadd.f32 %v5225, %v5402
        %v5527 = vadd.f32 %v5226, %v5407
        %v5528 = vadd.f32 %v5227, %v5410
        %v5529 = vadd.f32 %v5228, %v5415
        %v5530 = vadd.f32 %v5229, %v5418
        %v5531 = vadd.f32 %v5230, %v5423
        %v5532 = vadd.f32 %v5231, %v5426
        %v5533 = vadd.f32 %v5232, %v5431
        %v5534 = vadd.f32 %v5233, %v5434
        %v5535 = vadd.f32 %v5234, %v5439
        %v5536 = vadd.f32 %v5235, %v5442
        %v5537 = vadd.f32 %v5236, %v5447
        %v5538 = vadd.f32 %v5237, %v5450
        %v5539 = vadd.f32 %v5238, %v5455
        %v5540 = vadd.f32 %v5239, %v5458
        %v5541 = vadd.f32 %v5240, %v5463
        %v5542 = vadd.f32 %v5241, %v5466
        %v5543 = vadd.f32 %v5242, %v5471
        %v5544 = vadd.f32 %v5243, %v5474
        %v5545 = vadd.f32 %v5244, %v5479
        %v5546 = vadd.f32 %v5245, %v5482
        %v5547 = vadd.f32 %v5246, %v5487
        %v5548 = vadd.f32 %v5247, %v5490
        %v5549 = vadd.f32 %v5248, %v5495
        %v5550 = vadd.f32 %v5249, %v5498
        %v5551 = vadd.f32 %v5250, %v5503
        %v5552 = vadd.f32 %v5251, %v5506
        %v5553 = vadd.f32 %v5252, %v5511
        %v5554 = vadd.f32 %v5253, %v5514
        %v5555 = vadd.f32 %v5254, %v5519
        %v5556 = vadd.f32 %v5255, %v5522
        %v5557 = vld [vmem:[%s2170 + $0x9] sm:$0xff]
        %v5558 = vld [vmem:[%s2170 + $0x11] sm:$0xff]
        %v5559 = vld [vmem:[%s2170 + $0x29] sm:$0xff]
        %v5560 = vld [vmem:[%s2170 + $0x31] sm:$0xff]
        %v5561 = vld [vmem:[%s2170 + $0x49] sm:$0xff]
        %v5562 = vld [vmem:[%s2170 + $0x51] sm:$0xff]
        %v5563 = vld [vmem:[%s2170 + $0x69] sm:$0xff]
        %v5564 = vld [vmem:[%s2170 + $0x71] sm:$0xff]
        %v5565 = vld [vmem:[%s2170 + $0x89] sm:$0xff]
        %v5566 = vld [vmem:[%s2170 + $0x91] sm:$0xff]
        %v5567 = vld [vmem:[%s2170 + $0xa9] sm:$0xff]
        %v5568 = vld [vmem:[%s2170 + $0xb1] sm:$0xff]
        %v5569 = vld [vmem:[%s2170 + $0xc9] sm:$0xff]
        %v5570 = vld [vmem:[%s2170 + $0xd1] sm:$0xff]
        %v5571 = vld [vmem:[%s2170 + $0xe9] sm:$0xff]
        %v5572 = vld [vmem:[%s2170 + $0xf1] sm:$0xff]
        %v5573 = vld [vmem:[%s2170 + $0x109] sm:$0xff]
        %v5574 = vld [vmem:[%s2170 + $0x111] sm:$0xff]
        %v5575 = vld [vmem:[%s2170 + $0x129] sm:$0xff]
        %v5576 = vld [vmem:[%s2170 + $0x131] sm:$0xff]
        %v5577 = vld [vmem:[%s2170 + $0x149] sm:$0xff]
        %v5578 = vld [vmem:[%s2170 + $0x151] sm:$0xff]
        %v5579 = vld [vmem:[%s2170 + $0x169] sm:$0xff]
        %v5580 = vld [vmem:[%s2170 + $0x171] sm:$0xff]
        %v5581 = vld [vmem:[%s2170 + $0x189] sm:$0xff]
        %v5582 = vld [vmem:[%s2170 + $0x191] sm:$0xff]
        %v5583 = vld [vmem:[%s2170 + $0x1a9] sm:$0xff]
        %v5584 = vld [vmem:[%s2170 + $0x1b1] sm:$0xff]
        %v5585 = vld [vmem:[%s2170 + $0x1c9] sm:$0xff]
        %v5586 = vld [vmem:[%s2170 + $0x1d1] sm:$0xff]
        %v5587 = vld [vmem:[%s2170 + $0x1e9] sm:$0xff]
        %v5588 = vld [vmem:[%s2170 + $0x1f1] sm:$0xff]
        %v5589 = vpack.c.bf16 %v5558, %v5557
        %v5590 = vpack.c.bf16 %v5560, %v5559
        %v5591 = vpack.c.bf16 %v5562, %v5561
        %v5592 = vpack.c.bf16 %v5564, %v5563
        %v5593 = vpack.c.bf16 %v5566, %v5565
        %v5594 = vpack.c.bf16 %v5568, %v5567
        %v5595 = vpack.c.bf16 %v5570, %v5569
        %v5596 = vpack.c.bf16 %v5572, %v5571
        %v5597 = vpack.c.bf16 %v5574, %v5573
        %v5598 = vpack.c.bf16 %v5576, %v5575
        %v5599 = vpack.c.bf16 %v5578, %v5577
        %v5600 = vpack.c.bf16 %v5580, %v5579
        %v5601 = vpack.c.bf16 %v5582, %v5581
        %v5602 = vpack.c.bf16 %v5584, %v5583
        %v5603 = vpack.c.bf16 %v5586, %v5585
        %v5604 = vpack.c.bf16 %v5588, %v5587
        %v5609 = vunpack.c.l.b16 %v3209
        %v5610 = vunpack.c.l.b16 %v3210
        %v5611 = vunpack.c.l.b16 %v3211
        %v5612 = vunpack.c.l.b16 %v3212
        %v5613 = vpack.c.b16 %v5610, %v5609
        %v5614 = vpack.c.b16 %v5612, %v5611
        %v5618 = vsel %vm256, %v5589, 0
        %v5621 = vsel %vm256, %v5590, 0
        %v5624 = vsel %vm256, %v5591, 0
        %v5627 = vsel %vm256, %v5592, 0
        %v5630 = vsel %vm256, %v5593, 0
        %v5633 = vsel %vm256, %v5594, 0
        %v5636 = vsel %vm256, %v5595, 0
        %v5639 = vsel %vm256, %v5596, 0
        %v5642 = vsel %vm256, %v5597, 0
        %v5645 = vsel %vm256, %v5598, 0
        %v5648 = vsel %vm256, %v5599, 0
        %v5651 = vsel %vm256, %v5600, 0
        %v5654 = vsel %vm256, %v5601, 0
        %v5657 = vsel %vm256, %v5602, 0
        %v5660 = vsel %vm256, %v5603, 0
        %v5663 = vsel %vm256, %v5604, 0
        %5665 = vmatprep.subr.bf16.mxu0 0
        %5666 = vmatpush1.bf16.msra.mxu0 %v5613
        %5667 = vmatprep.subr.bf16.mxu0 0
        %5668 = vmatpush1.bf16.msra.mxu0 %v5614
        %5669 = vmatprep.subr.bf16.mxu0 0
        %5670 = vmatpush1.bf16.msra.mxu0 0
        %5671 = vmatprep.subr.bf16.mxu0 0
        %5672 = vmatpush1.bf16.msra.mxu0 0
        %5673 = vmatprep.subr.bf16.mxu0 0
        %5674 = vmatpush1.bf16.msra.mxu0 0
        %5675 = vmatprep.subr.bf16.mxu0 0
        %5676 = vmatpush1.bf16.msra.mxu0 0
        %5677 = vmatprep.subr.bf16.mxu0 0
        %5678 = vmatpush1.bf16.msra.mxu0 0
        %5679 = vmatprep.subr.bf16.mxu0 0
        %5680 = vmatpush1.bf16.msra.mxu0 0
        %5681 = vmatprep.subr.bf16.mxu0 0
        %5682 = vmatpush1.bf16.msra.mxu0 0
        %5683 = vmatprep.subr.bf16.mxu0 0
        %5684 = vmatpush1.bf16.msra.mxu0 0
        %5685 = vmatprep.subr.bf16.mxu0 0
        %5686 = vmatpush1.bf16.msra.mxu0 0
        %5687 = vmatprep.subr.bf16.mxu0 0
        %5688 = vmatpush1.bf16.msra.mxu0 0
        %5689 = vmatprep.subr.bf16.mxu0 0
        %5690 = vmatpush1.bf16.msra.mxu0 0
        %5691 = vmatprep.subr.bf16.mxu0 0
        %5692 = vmatpush1.bf16.msra.mxu0 0
        %5693 = vmatprep.subr.bf16.mxu0 0
        %5694 = vmatpush1.bf16.msra.mxu0 0
        %5695 = vmatprep.subr.bf16.mxu0 0
        %5696 = vmatpush1.bf16.msra.mxu0 0
        %5697 = vmatprep.mubr.bf16.mxu0 0
        %5698 = vmatmul.mubr.bf16.gmra.mrb[0].mxu0 %v5618
        %v5699 = vpop.f32.mrb[0].mxu0
        %v5700 = vadd.f32 0.0, %v5699
        %v5701 = vpop.f32.mrb[0].mxu0
        %v5702 = vpop.f32.mrb[0].mxu0
        %v5703 = vadd.f32 0.0, %v5702
        %v5704 = vpop.f32.mrb[0].mxu0
        %5705 = vmatprep.mubr.bf16.mxu0 0
        %5706 = vmatmul.mubr.bf16.gmra.mrb[0].mxu0 %v5621
        %v5707 = vpop.f32.mrb[0].mxu0
        %v5708 = vadd.f32 0.0, %v5707
        %v5709 = vpop.f32.mrb[0].mxu0
        %v5710 = vpop.f32.mrb[0].mxu0
        %v5711 = vadd.f32 0.0, %v5710
        %v5712 = vpop.f32.mrb[0].mxu0
        %5713 = vmatprep.mubr.bf16.mxu0 0
        %5714 = vmatmul.mubr.bf16.gmra.mrb[0].mxu0 %v5624
        %v5715 = vpop.f32.mrb[0].mxu0
        %v5716 = vadd.f32 0.0, %v5715
        %v5717 = vpop.f32.mrb[0].mxu0
        %v5718 = vpop.f32.mrb[0].mxu0
        %v5719 = vadd.f32 0.0, %v5718
        %v5720 = vpop.f32.mrb[0].mxu0
        %5721 = vmatprep.mubr.bf16.mxu0 0
        %5722 = vmatmul.mubr.bf16.gmra.mrb[0].mxu0 %v5627
        %v5723 = vpop.f32.mrb[0].mxu0
        %v5724 = vadd.f32 0.0, %v5723
        %v5725 = vpop.f32.mrb[0].mxu0
        %v5726 = vpop.f32.mrb[0].mxu0
        %v5727 = vadd.f32 0.0, %v5726
        %v5728 = vpop.f32.mrb[0].mxu0
        %5729 = vmatprep.mubr.bf16.mxu0 0
        %5730 = vmatmul.mubr.bf16.gmra.mrb[0].mxu0 %v5630
        %v5731 = vpop.f32.mrb[0].mxu0
        %v5732 = vadd.f32 0.0, %v5731
        %v5733 = vpop.f32.mrb[0].mxu0
        %v5734 = vpop.f32.mrb[0].mxu0
        %v5735 = vadd.f32 0.0, %v5734
        %v5736 = vpop.f32.mrb[0].mxu0
        %5737 = vmatprep.mubr.bf16.mxu0 0
        %5738 = vmatmul.mubr.bf16.gmra.mrb[0].mxu0 %v5633
        %v5739 = vpop.f32.mrb[0].mxu0
        %v5740 = vadd.f32 0.0, %v5739
        %v5741 = vpop.f32.mrb[0].mxu0
        %v5742 = vpop.f32.mrb[0].mxu0
        %v5743 = vadd.f32 0.0, %v5742
        %v5744 = vpop.f32.mrb[0].mxu0
        %5745 = vmatprep.mubr.bf16.mxu0 0
        %5746 = vmatmul.mubr.bf16.gmra.mrb[0].mxu0 %v5636
        %v5747 = vpop.f32.mrb[0].mxu0
        %v5748 = vadd.f32 0.0, %v5747
        %v5749 = vpop.f32.mrb[0].mxu0
        %v5750 = vpop.f32.mrb[0].mxu0
        %v5751 = vadd.f32 0.0, %v5750
        %v5752 = vpop.f32.mrb[0].mxu0
        %5753 = vmatprep.mubr.bf16.mxu0 0
        %5754 = vmatmul.mubr.bf16.gmra.mrb[0].mxu0 %v5639
        %v5755 = vpop.f32.mrb[0].mxu0
        %v5756 = vadd.f32 0.0, %v5755
        %v5757 = vpop.f32.mrb[0].mxu0
        %v5758 = vpop.f32.mrb[0].mxu0
        %v5759 = vadd.f32 0.0, %v5758
        %v5760 = vpop.f32.mrb[0].mxu0
        %5761 = vmatprep.mubr.bf16.mxu0 0
        %5762 = vmatmul.mubr.bf16.gmra.mrb[0].mxu0 %v5642
        %v5763 = vpop.f32.mrb[0].mxu0
        %v5764 = vadd.f32 0.0, %v5763
        %v5765 = vpop.f32.mrb[0].mxu0
        %v5766 = vpop.f32.mrb[0].mxu0
        %v5767 = vadd.f32 0.0, %v5766
        %v5768 = vpop.f32.mrb[0].mxu0
        %5769 = vmatprep.mubr.bf16.mxu0 0
        %5770 = vmatmul.mubr.bf16.gmra.mrb[0].mxu0 %v5645
        %v5771 = vpop.f32.mrb[0].mxu0
        %v5772 = vadd.f32 0.0, %v5771
        %v5773 = vpop.f32.mrb[0].mxu0
        %v5774 = vpop.f32.mrb[0].mxu0
        %v5775 = vadd.f32 0.0, %v5774
        %v5776 = vpop.f32.mrb[0].mxu0
        %5777 = vmatprep.mubr.bf16.mxu0 0
        %5778 = vmatmul.mubr.bf16.gmra.mrb[0].mxu0 %v5648
        %v5779 = vpop.f32.mrb[0].mxu0
        %v5780 = vadd.f32 0.0, %v5779
        %v5781 = vpop.f32.mrb[0].mxu0
        %v5782 = vpop.f32.mrb[0].mxu0
        %v5783 = vadd.f32 0.0, %v5782
        %v5784 = vpop.f32.mrb[0].mxu0
        %5785 = vmatprep.mubr.bf16.mxu0 0
        %5786 = vmatmul.mubr.bf16.gmra.mrb[0].mxu0 %v5651
        %v5787 = vpop.f32.mrb[0].mxu0
        %v5788 = vadd.f32 0.0, %v5787
        %v5789 = vpop.f32.mrb[0].mxu0
        %v5790 = vpop.f32.mrb[0].mxu0
        %v5791 = vadd.f32 0.0, %v5790
        %v5792 = vpop.f32.mrb[0].mxu0
        %5793 = vmatprep.mubr.bf16.mxu0 0
        %5794 = vmatmul.mubr.bf16.gmra.mrb[0].mxu0 %v5654
        %v5795 = vpop.f32.mrb[0].mxu0
        %v5796 = vadd.f32 0.0, %v5795
        %v5797 = vpop.f32.mrb[0].mxu0
        %v5798 = vpop.f32.mrb[0].mxu0
        %v5799 = vadd.f32 0.0, %v5798
        %v5800 = vpop.f32.mrb[0].mxu0
        %5801 = vmatprep.mubr.bf16.mxu0 0
        %5802 = vmatmul.mubr.bf16.gmra.mrb[0].mxu0 %v5657
        %v5803 = vpop.f32.mrb[0].mxu0
        %v5804 = vadd.f32 0.0, %v5803
        %v5805 = vpop.f32.mrb[0].mxu0
        %v5806 = vpop.f32.mrb[0].mxu0
        %v5807 = vadd.f32 0.0, %v5806
        %v5808 = vpop.f32.mrb[0].mxu0
        %5809 = vmatprep.mubr.bf16.mxu0 0
        %5810 = vmatmul.mubr.bf16.gmra.mrb[0].mxu0 %v5660
        %v5811 = vpop.f32.mrb[0].mxu0
        %v5812 = vadd.f32 0.0, %v5811
        %v5813 = vpop.f32.mrb[0].mxu0
        %v5814 = vpop.f32.mrb[0].mxu0
        %v5815 = vadd.f32 0.0, %v5814
        %v5816 = vpop.f32.mrb[0].mxu0
        %5817 = vmatprep.mubr.bf16.mxu0 0
        %5818 = vmatmul.mubr.bf16.gmra.mrb[0].mxu0 %v5663
        %v5819 = vpop.f32.mrb[0].mxu0
        %v5820 = vadd.f32 0.0, %v5819
        %v5821 = vpop.f32.mrb[0].mxu0
        %v5822 = vpop.f32.mrb[0].mxu0
        %v5823 = vadd.f32 0.0, %v5822
        %v5824 = vpop.f32.mrb[0].mxu0
        %5825 = vdwg.mxu0
        %v5826 = vadd.f32 %v5525, %v5700
        %v5827 = vadd.f32 %v5526, %v5703
        %v5828 = vadd.f32 %v5527, %v5708
        %v5829 = vadd.f32 %v5528, %v5711
        %v5830 = vadd.f32 %v5529, %v5716
        %v5831 = vadd.f32 %v5530, %v5719
        %v5832 = vadd.f32 %v5531, %v5724
        %v5833 = vadd.f32 %v5532, %v5727
        %v5834 = vadd.f32 %v5533, %v5732
        %v5835 = vadd.f32 %v5534, %v5735
        %v5836 = vadd.f32 %v5535, %v5740
        %v5837 = vadd.f32 %v5536, %v5743
        %v5838 = vadd.f32 %v5537, %v5748
        %v5839 = vadd.f32 %v5538, %v5751
        %v5840 = vadd.f32 %v5539, %v5756
        %v5841 = vadd.f32 %v5540, %v5759
        %v5842 = vadd.f32 %v5541, %v5764
        %v5843 = vadd.f32 %v5542, %v5767
        %v5844 = vadd.f32 %v5543, %v5772
        %v5845 = vadd.f32 %v5544, %v5775
        %v5846 = vadd.f32 %v5545, %v5780
        %v5847 = vadd.f32 %v5546, %v5783
        %v5848 = vadd.f32 %v5547, %v5788
        %v5849 = vadd.f32 %v5548, %v5791
        %v5850 = vadd.f32 %v5549, %v5796
        %v5851 = vadd.f32 %v5550, %v5799
        %v5852 = vadd.f32 %v5551, %v5804
        %v5853 = vadd.f32 %v5552, %v5807
        %v5854 = vadd.f32 %v5553, %v5812
        %v5855 = vadd.f32 %v5554, %v5815
        %v5856 = vadd.f32 %v5555, %v5820
        %v5857 = vadd.f32 %v5556, %v5823
        %v5858 = vld [vmem:[%s4] sm:$0x1]
        %v5860 = vlaneseq
        %v5861 = vshrl.u32 %v5860, 7
        %v5862 = vsub.s32 0, %v5861
        %v5863 = vrot.slane %v5858, %v5862
        %v5865 = vadd.f32 %v5826, %v5863
        %v5866 = vadd.f32 %v5827, %v5863
        %v5867 = vadd.f32 %v5828, %v5863
        %v5868 = vadd.f32 %v5829, %v5863
        %v5869 = vadd.f32 %v5830, %v5863
        %v5870 = vadd.f32 %v5831, %v5863
        %v5871 = vadd.f32 %v5832, %v5863
        %v5872 = vadd.f32 %v5833, %v5863
        %v5873 = vadd.f32 %v5834, %v5863
        %v5874 = vadd.f32 %v5835, %v5863
        %v5875 = vadd.f32 %v5836, %v5863
        %v5876 = vadd.f32 %v5837, %v5863
        %v5877 = vadd.f32 %v5838, %v5863
        %v5878 = vadd.f32 %v5839, %v5863
        %v5879 = vadd.f32 %v5840, %v5863
        %v5880 = vadd.f32 %v5841, %v5863
        %v5881 = vadd.f32 %v5842, %v5863
        %v5882 = vadd.f32 %v5843, %v5863
        %v5883 = vadd.f32 %v5844, %v5863
        %v5884 = vadd.f32 %v5845, %v5863
        %v5885 = vadd.f32 %v5846, %v5863
        %v5886 = vadd.f32 %v5847, %v5863
        %v5887 = vadd.f32 %v5848, %v5863
        %v5888 = vadd.f32 %v5849, %v5863
        %v5889 = vadd.f32 %v5850, %v5863
        %v5890 = vadd.f32 %v5851, %v5863
        %v5891 = vadd.f32 %v5852, %v5863
        %v5892 = vadd.f32 %v5853, %v5863
        %v5893 = vadd.f32 %v5854, %v5863
        %v5894 = vadd.f32 %v5855, %v5863
        %v5895 = vadd.f32 %v5856, %v5863
        %v5896 = vadd.f32 %v5857, %v5863
        %v5897 = vadd.f32 %v5865, %v224
        %v5898 = vadd.f32 %v5866, %v225
        %v5899 = vadd.f32 %v5867, %v226
        %v5900 = vadd.f32 %v5868, %v227
        %v5901 = vadd.f32 %v5869, %v228
        %v5902 = vadd.f32 %v5870, %v229
        %v5903 = vadd.f32 %v5871, %v230
        %v5904 = vadd.f32 %v5872, %v231
        %v5905 = vadd.f32 %v5873, %v232
        %v5906 = vadd.f32 %v5874, %v233
        %v5907 = vadd.f32 %v5875, %v234
        %v5908 = vadd.f32 %v5876, %v235
        %v5909 = vadd.f32 %v5877, %v236
        %v5910 = vadd.f32 %v5878, %v237
        %v5911 = vadd.f32 %v5879, %v238
        %v5912 = vadd.f32 %v5880, %v239
        %v5913 = vadd.f32 %v5881, %v240
        %v5914 = vadd.f32 %v5882, %v241
        %v5915 = vadd.f32 %v5883, %v242
        %v5916 = vadd.f32 %v5884, %v243
        %v5917 = vadd.f32 %v5885, %v244
        %v5918 = vadd.f32 %v5886, %v245
        %v5919 = vadd.f32 %v5887, %v246
        %v5920 = vadd.f32 %v5888, %v247
        %v5921 = vadd.f32 %v5889, %v248
        %v5922 = vadd.f32 %v5890, %v249
        %v5923 = vadd.f32 %v5891, %v250
        %v5924 = vadd.f32 %v5892, %v251
        %v5925 = vadd.f32 %v5893, %v252
        %v5926 = vadd.f32 %v5894, %v253
        %v5927 = vadd.f32 %v5895, %v254
        %v5928 = vadd.f32 %v5896, %v255
        %5929 = vst.msk [vmem:[%s217] sm:$0xff] %vm256, %v5897
        %5930 = vst.msk [vmem:[%s217 + $0x8] sm:$0xff] %vm256, %v5898
        %5931 = vst.msk [vmem:[%s217 + $0x10] sm:$0xff] %vm256, %v5899
        %5932 = vst.msk [vmem:[%s217 + $0x18] sm:$0xff] %vm256, %v5900
        %5933 = vst.msk [vmem:[%s217 + $0x20] sm:$0xff] %vm256, %v5901
        %5934 = vst.msk [vmem:[%s217 + $0x28] sm:$0xff] %vm256, %v5902
        %5935 = vst.msk [vmem:[%s217 + $0x30] sm:$0xff] %vm256, %v5903
        %5936 = vst.msk [vmem:[%s217 + $0x38] sm:$0xff] %vm256, %v5904
        %5937 = vst.msk [vmem:[%s217 + $0x40] sm:$0xff] %vm256, %v5905
        %5938 = vst.msk [vmem:[%s217 + $0x48] sm:$0xff] %vm256, %v5906
        %5939 = vst.msk [vmem:[%s217 + $0x50] sm:$0xff] %vm256, %v5907
        %5940 = vst.msk [vmem:[%s217 + $0x58] sm:$0xff] %vm256, %v5908
        %5941 = vst.msk [vmem:[%s217 + $0x60] sm:$0xff] %vm256, %v5909
        %5942 = vst.msk [vmem:[%s217 + $0x68] sm:$0xff] %vm256, %v5910
        %5943 = vst.msk [vmem:[%s217 + $0x70] sm:$0xff] %vm256, %v5911
        %5944 = vst.msk [vmem:[%s217 + $0x78] sm:$0xff] %vm256, %v5912
        %5945 = vst.msk [vmem:[%s217 + $0x80] sm:$0xff] %vm256, %v5913
        %5946 = vst.msk [vmem:[%s217 + $0x88] sm:$0xff] %vm256, %v5914
        %5947 = vst.msk [vmem:[%s217 + $0x90] sm:$0xff] %vm256, %v5915
        %5948 = vst.msk [vmem:[%s217 + $0x98] sm:$0xff] %vm256, %v5916
        %5949 = vst.msk [vmem:[%s217 + $0xa0] sm:$0xff] %vm256, %v5917
        %5950 = vst.msk [vmem:[%s217 + $0xa8] sm:$0xff] %vm256, %v5918
        %5951 = vst.msk [vmem:[%s217 + $0xb0] sm:$0xff] %vm256, %v5919
        %5952 = vst.msk [vmem:[%s217 + $0xb8] sm:$0xff] %vm256, %v5920
        %5953 = vst.msk [vmem:[%s217 + $0xc0] sm:$0xff] %vm256, %v5921
        %5954 = vst.msk [vmem:[%s217 + $0xc8] sm:$0xff] %vm256, %v5922
        %5955 = vst.msk [vmem:[%s217 + $0xd0] sm:$0xff] %vm256, %v5923
        %5956 = vst.msk [vmem:[%s217 + $0xd8] sm:$0xff] %vm256, %v5924
        %5957 = vst.msk [vmem:[%s217 + $0xe0] sm:$0xff] %vm256, %v5925
        %5958 = vst.msk [vmem:[%s217 + $0xe8] sm:$0xff] %vm256, %v5926
        %5959 = vst.msk [vmem:[%s217 + $0xf0] sm:$0xff] %vm256, %v5927
        %5960 = vst.msk [vmem:[%s217 + $0xf8] sm:$0xff] %vm256, %v5928
        %s5961 = sand.u32 %s137, 1
        %s5962 = scalar_lea.sflag [#allocation4], %s5961
        %s5963 = sand.u32 %s137, 1
        %s5964 = smul.addr %s5963, 256
        %s5965 = scalar_lea.vmem [#allocation3], %s5964
        // Predicated region
        $region41: #{residual_block_forward.1} parent=39 // pred_check
          %p5966 = pneg %p147
        $region42: #{residual_block_forward.1} parent=39 // pred_check_branch
          %5968 = sbr.rel (%p5966) target = $region44
        $region43: #{residual_block_forward.1} parent=39 // pred_region
          %s5970 = ssub.s32 4096, 4096
          %5971 = vsyncadd %s5962, %s5970
          %s5972 = smul.addr %s19, 32
          %s5973 = smul.addr %s5972, 128
          %s5974 = scalar_lea.hbm %s5, %s5973
          %s5975 = sshll.u32 %s5965, 4
          %s5976 = int_to_ptr.vmem [resolvable:$true] %s5975
          %5981 = dma.vmem_to_hbm [thread:$0]  %s5976, 4096, %s5974, %s5962, 128, 128, 8
        $region44: #{residual_block_forward.1} parent=39 // pred_fallthru
          _
      $region40: #{residual_block_forward.1} parent=5 // pred_fallthru
        _
      %p5982 = scmp.le.s32.totalorder 2, %s14
      // Predicated region
      $region45: #{residual_block_forward.1} parent=5 // pred_check
        %p5983 = pneg %p5982
      $region46: #{residual_block_forward.1} parent=5 // pred_check_branch
        %5985 = sbr.rel (%p5983) target = $region48
      $region47: #{residual_block_forward.1} parent=5 // pred_region
        %s5986 = ssub.s32 %s14, 2
        // Predicated region
        $region49: #{residual_block_forward.1} parent=47 // pred_check
          %p5987 = pneg %p153
        $region50: #{residual_block_forward.1} parent=47 // pred_check_branch
          %5989 = sbr.rel (%p5987) target = $region52
        $region51: #{residual_block_forward.1} parent=47 // pred_region
          %s5990 = sand.u32 %s138, 1
          %s5991 = scalar_lea.sflag [#allocation4], %s5990
          %s5992 = sand.u32 %s138, 1
          %s5993 = smul.addr %s5992, 256
          %s5994 = scalar_lea.vmem [#allocation3], %s5993
          %5995 = dma.done %s5991, 4096
        $region52: #{residual_block_forward.1} parent=47 // pred_fallthru
          _
      $region48: #{residual_block_forward.1} parent=5 // pred_fallthru
        _
    $region6: #{residual_block_forward.1} parent=1 // loop_footer
      %s18 = sadd.s32 1, %s14
    $region7: #{residual_block_forward.1} parent=1 // loop_footer_branch
      %13 = sbr.rel target = $region3
    $region8: #{residual_block_forward.1} parent=1 // loop_exit
      _
    %5996 = vsyncpa [#allocation4], 1
    %s5997 = scalar_lea.sflag [#allocation4], 1
    %5998 = vsyncpa %s5997, 1

</llo_original>
